<compile_context>
chip_gen: v6e
topology: v6e:2x2x1
jax: 0.10.0
libtpu: 0.0.40
codegen_flags: <defaults>
</compile_context>

<pallas_src>
import math
import functools

import jax
import jax.numpy as jnp
from jax.experimental import pallas as pl
from jax.experimental.pallas import tpu as pltpu


# ---------------------------------------------------------------------------
# Kernels
# ---------------------------------------------------------------------------
def linear_kernel(x_ref, wt_ref, b_ref, y_ref):
    """y = x @ W + b on one token tile (bf16 operands, f32 accumulation)."""
    y = jnp.dot(x_ref[...], wt_ref[...],
                preferred_element_type=jnp.float32) + b_ref[...]
    y_ref[...] = y.astype(y_ref.dtype)


def attn_kernel(q_ref, k_ref, v_ref, bias_ref, o_ref, w_ref, *, scale, num_heads):
    """Attention for one (batch, query-tile) grid step, all heads at once.

    q_ref:    (tL, H, Dh) bf16
    k_ref:    (S,  H, Dh) bf16
    v_ref:    (S,  H, Dh) bf16
    bias_ref: (1, S) f32 additive key-padding bias (0 keep, -1e30 ignore)
    o_ref:    (tL, H, Dh) bf16 per-head context (head-minor -> no merge transpose)
    w_ref:    (tL, S) f32 head-AVERAGED attention probabilities
    """
    bias = bias_ref[...]                                      # (1, S) f32
    w_acc = jnp.zeros(w_ref.shape, jnp.float32)               # (tL, S)
    for h in range(num_heads):                                # static, unrolled
        q_h = q_ref[:, h, :]                                  # (tL, Dh) bf16
        k_h = k_ref[:, h, :]                                  # (S,  Dh) bf16
        v_h = v_ref[:, h, :]                                  # (S,  Dh) bf16
        # scores = (q @ k^T) * scale + bias, accumulated / kept in f32
        scores = jax.lax.dot_general(
            q_h, k_h, (((1,), (1,)), ((), ())),
            preferred_element_type=jnp.float32)               # (tL, S)
        scores = scores * scale + bias
        m = jnp.max(scores, axis=-1, keepdims=True)
        e = jnp.exp(scores - m)
        s = jnp.sum(e, axis=-1, keepdims=True)
        probs = e * pl.reciprocal(s, approx=True)             # EUP slot, f32
        ctx = jnp.dot(probs.astype(v_h.dtype), v_h,
                      preferred_element_type=jnp.float32)     # (tL, Dh)
        o_ref[:, h, :] = ctx.astype(o_ref.dtype)
        w_acc = w_acc + probs
    w_ref[...] = (w_acc * (1.0 / num_heads)).astype(w_ref.dtype)


# ---------------------------------------------------------------------------
# pallas_call wrappers
# ---------------------------------------------------------------------------
def _token_tile(T):
    # >=512-wide tiles approach the HBM roofline; smaller extents use the full
    # dimension (legal: block == full array dim). Remainder tiles come from the
    # cdiv grid and are masked by Pallas.
    return 512 if T >= 512 else T


def pallas_linear(x2d, wt, b, out_dtype):
    """(T, E_in) @ (E_in, E_out) + b, tiled over tokens with a cdiv grid."""
    T, E_in = x2d.shape
    E_out = wt.shape[1]
    tT = _token_tile(T)
    # TODO(synk): on v7x, mark the grid-invariant weight/bias specs single-buffered
    # (pipeline_mode=pl.Buffered(1)) and size vmem_limit_bytes explicitly.
    return pl.pallas_call(
        linear_kernel,
        out_shape=jax.ShapeDtypeStruct((T, E_out), out_dtype),
        grid=(pl.cdiv(T, tT),),
        in_specs=[
            pl.BlockSpec((tT, E_in), lambda i: (i, 0)),
            pl.BlockSpec((E_in, E_out), lambda i: (0, 0)),   # grid-invariant weight
            pl.BlockSpec((1, E_out), lambda i: (0, 0)),      # grid-invariant bias
        ],
        out_specs=pl.BlockSpec((tT, E_out), lambda i: (i, 0)),
        compiler_params=pltpu.CompilerParams(dimension_semantics=("parallel",)),
    )(x2d, wt, b.reshape(1, -1))


def pallas_attention(qkv, mask_bias, *, num_heads):
    """qkv: (L, N, 3, H, Dh) bf16; mask_bias: (N, 1, S) f32.

    Returns ctx (L, N, H, Dh) bf16 and head-averaged probs (N, L, S) f32.
    """
    L, N, _, H, Dh = qkv.shape
    S = L
    scale = 1.0 / math.sqrt(Dh)
    tL = _token_tile(L)          # query-axis tiling bounds VMEM for large L
    n_l = pl.cdiv(L, tL)

    cost = pl.CostEstimate(
        flops=int(4 * N * H * L * S * Dh),
        transcendentals=int(N * H * L * S),
        bytes_accessed=int(2 * 3 * N * L * H * Dh    # q/k/v bf16 reads
                           + 2 * N * L * H * Dh      # ctx bf16 write
                           + 4 * N * L * S           # averaged probs f32 write
                           + 4 * N * S),             # bias
    )

    ctx, probs = pl.pallas_call(
        functools.partial(attn_kernel, scale=scale, num_heads=H),
        out_shape=(jax.ShapeDtypeStruct((L, N, H, Dh), jnp.bfloat16),
                   jax.ShapeDtypeStruct((N, L, S), jnp.float32)),
        grid=(N, n_l),
        in_specs=[
            # q: one query tile, all heads            -> kernel sees (tL, H, Dh)
            pl.BlockSpec((tL, None, None, H, Dh), lambda n, l: (l, n, 0, 0, 0)),
            # k: full key sequence, all heads         -> (S, H, Dh)
            pl.BlockSpec((S, None, None, H, Dh), lambda n, l: (0, n, 1, 0, 0)),
            # v: full key sequence, all heads         -> (S, H, Dh)
            pl.BlockSpec((S, None, None, H, Dh), lambda n, l: (0, n, 2, 0, 0)),
            # additive key-padding bias               -> (1, S)
            pl.BlockSpec((None, 1, S), lambda n, l: (n, 0, 0)),
        ],
        out_specs=(
            pl.BlockSpec((tL, None, H, Dh), lambda n, l: (l, n, 0, 0)),
            pl.BlockSpec((None, tL, S), lambda n, l: (n, l, 0)),
        ),
        compiler_params=pltpu.CompilerParams(
            dimension_semantics=("parallel", "parallel")),
        cost_estimate=cost,
    )(qkv, qkv, qkv, mask_bias)
    return ctx, probs


# ---------------------------------------------------------------------------
# Parameter folding + full module forward
# ---------------------------------------------------------------------------
def fold_params(params):
    """Fold each q/k/v double-linear into one matmul and concatenate into (E, 3E).

    (x @ W1^T + b1) @ W2^T + b2 == x @ (W1^T W2^T) + (b1 W2^T + b2)
    (weights are stored pre-transposed as (in, out)).
    """
    def fold(w1t, b1, w2t, b2):
        return w1t @ w2t, b1 @ w2t + b2

    wq, bq = fold(params["wq_T"], params["bq"], params["wq_in_T"], params["bq_in"])
    wk, bk = fold(params["wk_T"], params["bk"], params["wk_in_T"], params["bk_in"])
    wv, bv = fold(params["wv_T"], params["bv"], params["wv_in_T"], params["bv_in"])
    return jnp.concatenate([wq, wk, wv], axis=1), jnp.concatenate([bq, bk, bv])


def multi_head_attention_forward(x, key_padding_mask, params, *, num_heads):
    """Pallas equivalent of MultiHeadAttension.forward (eval mode).

    x:                 (L, N, E) float32   (seq, batch, d_model; batch_first=False)
    key_padding_mask:  (N, S) bool, True = ignore that key position
    returns:           attn_output (L, N, E) f32, attn_weights (N, L, S) f32
    """
    L, N, E = x.shape
    H = num_heads
    assert E % H == 0
    Dh = E // H
    S = L  # self-attention

    # One fused QKV projection (folded weights, bf16 MXU operands, f32 accumulate).
    w_qkv, b_qkv = fold_params(params)                          # (E, 3E), (3E,) f32
    x2d = x.reshape(L * N, E).astype(jnp.bfloat16)
    qkv2d = pallas_linear(x2d, w_qkv.astype(jnp.bfloat16), b_qkv, jnp.bfloat16)
    # (L*N, 3E) -> (L, N, 3, H, Dh) is a pure view (PyTorch's head-major E split).
    qkv = qkv2d.reshape(L, N, 3, H, Dh)

    # Key-padding mask -> additive bias (0 keep, -1e30 ignore), kept in f32.
    mask_bias = jnp.where(key_padding_mask, -1e30, 0.0).astype(jnp.float32)
    mask_bias = mask_bias.reshape(N, 1, S)

    ctx, attn_weights = pallas_attention(qkv, mask_bias, num_heads=H)

    # ctx is (L, N, H, Dh): reshaping to (L*N, E) is a pure view -> no merge transpose.
    out2d = pallas_linear(ctx.reshape(L * N, E),
                          params["wo_T"].astype(jnp.bfloat16),
                          params["bo"], jnp.float32)
    return out2d.reshape(L, N, E), attn_weights


# ---------------------------------------------------------------------------
# Plain-JAX reference (same math + same bf16 casts, no Pallas)
# ---------------------------------------------------------------------------
def reference_forward(x, key_padding_mask, params, *, num_heads):
    L, N, E = x.shape
    H = num_heads
    Dh = E // H
    S = L

    w_qkv, b_qkv = fold_params(params)
    x2d = x.reshape(L * N, E).astype(jnp.bfloat16)
    qkv = (jnp.dot(x2d, w_qkv.astype(jnp.bfloat16),
                   preferred_element_type=jnp.float32) + b_qkv).astype(jnp.bfloat16)
    qkv = qkv.reshape(L, N, 3, H, Dh)
    q = qkv[:, :, 0].transpose(1, 2, 0, 3)                      # (N, H, L, Dh)
    k = qkv[:, :, 1].transpose(1, 2, 0, 3)
    v = qkv[:, :, 2].transpose(1, 2, 0, 3)

    scores = jnp.einsum("nhld,nhsd->nhls", q, k,
                        preferred_element_type=jnp.float32) * (1.0 / math.sqrt(Dh))
    bias = jnp.where(key_padding_mask, -1e30, 0.0).astype(jnp.float32)  # (N, S)
    scores = scores + bias[:, None, None, :]
    probs = jax.nn.softmax(scores, axis=-1)                     # f32
    ctx = jnp.einsum("nhls,nhsd->nhld", probs.astype(jnp.bfloat16), v,
                     preferred_element_type=jnp.float32).astype(jnp.bfloat16)

    merged = ctx.transpose(2, 0, 1, 3).reshape(L * N, E)        # (L, N, H, Dh) layout
    out = (jnp.dot(merged, params["wo_T"].astype(jnp.bfloat16),
                   preferred_element_type=jnp.float32) + params["bo"])
    return out.reshape(L, N, E), probs.mean(axis=1)


# ---------------------------------------------------------------------------
# Demo / self-check
# ---------------------------------------------------------------------------
if __name__ == "__main__":
    d_model = 32      # NOTE: production d_model should be a multiple of 128 for
    num_heads = 4     #       lane-dense stores; small sizes use full-dim blocks.
    dropout = 0.1     # unused in eval-mode forward (attention dropout is train-only)
    L, N = 8, 2       # seq len, batch

    key = jax.random.PRNGKey(0)
    keys = jax.random.split(key, 16)
    sc = 1.0 / math.sqrt(d_model)

    def w(k):  # weight already stored as (in, out) == PyTorch weight.T
        return jax.random.normal(k, (d_model, d_model), jnp.float32) * sc

    def b(k):
        return jax.random.normal(k, (d_model,), jnp.float32) * 0.1

    params = {
        "wq_T": w(keys[0]), "bq": b(keys[1]),
        "wk_T": w(keys[2]), "bk": b(keys[3]),
        "wv_T": w(keys[4]), "bv": b(keys[5]),
        "wq_in_T": w(keys[6]), "bq_in": b(keys[7]),
        "wk_in_T": w(keys[8]), "bk_in": b(keys[9]),
        "wv_in_T": w(keys[10]), "bv_in": b(keys[11]),
        "wo_T": w(keys[12]), "bo": b(keys[13]),
    }

    x = jax.random.normal(keys[14], (L, N, d_model), jnp.float32)
    # key_padding_mask: ignore the last 3 key positions of batch element 1.
    mask = jnp.zeros((N, L), dtype=bool).at[1, L - 3:].set(True)

    fwd = jax.jit(functools.partial(multi_head_attention_forward, num_heads=num_heads))
    attn_out, attn_w = fwd(x, mask, params)
    attn_out, attn_w = jax.block_until_ready((attn_out, attn_w))

    ref_out, ref_w = reference_forward(x, mask, params, num_heads=num_heads)

    assert attn_out.shape == (L, N, d_model)
    assert attn_w.shape == (N, L, L)
    assert attn_out.dtype == jnp.float32
    # Tolerances cover bf16 matmul operands + approx reciprocal in the softmax.
    assert jnp.allclose(attn_out, ref_out, atol=2e-2, rtol=2e-2), \
        float(jnp.max(jnp.abs(attn_out - ref_out)))
    assert jnp.allclose(attn_w, ref_w, atol=5e-3, rtol=5e-3), \
        float(jnp.max(jnp.abs(attn_w - ref_w)))
    # masked key positions must get ~zero attention weight
    assert float(jnp.max(attn_w[1, :, L - 3:])) < 1e-6

    print("KERNEL_OK")
</pallas_src>

<mosaic_0001>
module attributes {stable_mosaic.version = 11 : i64} {
  func.func @linear_kernel(%arg0: i32, %arg1: memref<16x32xbf16, #tpu.memory_space<vmem>>, %arg2: memref<32x96xbf16, #tpu.memory_space<vmem>>, %arg3: memref<1x96xf32, #tpu.memory_space<vmem>>, %arg4: memref<16x96xbf16, #tpu.memory_space<vmem>>) attributes {dimension_semantics = [#tpu.dimension_semantics<parallel>], iteration_bounds = array<i64: 1>, scalar_prefetch = 0 : i64, scratch_operands = 0 : i64, tpu.core_type = #tpu.core_type<tc>, window_params = [{transform_indices = @transform_0, window_bounds = array<i64: 16, 32>}, {pipeline_mode = #tpu.pipeline_mode<synchronous>, transform_indices = @transform_1, window_bounds = array<i64: 32, 96>}, {pipeline_mode = #tpu.pipeline_mode<synchronous>, transform_indices = @transform_2, window_bounds = array<i64: 1, 96>}, {transform_indices = @transform_3, window_bounds = array<i64: 16, 96>}]} {
    %c0 = arith.constant 0 : index
    %c0_0 = arith.constant 0 : index
    %0 = vector.load %arg1[%c0, %c0_0] : memref<16x32xbf16, #tpu.memory_space<vmem>>, vector<16x32xbf16>
    %c0_1 = arith.constant 0 : index
    %c0_2 = arith.constant 0 : index
    %1 = vector.load %arg2[%c0_1, %c0_2] : memref<32x96xbf16, #tpu.memory_space<vmem>>, vector<32x96xbf16>
    %cst = arith.constant dense<0.000000e+00> : vector<16x96xf32>
    %2 = tpu.matmul %0, %1, %cst {dimension_numbers = #tpu.dot_dimension_numbers<[1], [0], [0], [1], [0, 0, 1, 1], [], []>} : vector<16x32xbf16>, vector<32x96xbf16>, vector<16x96xf32> -> vector<16x96xf32>
    %c0_3 = arith.constant 0 : index
    %c0_4 = arith.constant 0 : index
    %3 = vector.load %arg3[%c0_3, %c0_4] : memref<1x96xf32, #tpu.memory_space<vmem>>, vector<1x96xf32>
    %4 = vector.broadcast %3 : vector<1x96xf32> to vector<16x96xf32>
    %5 = arith.addf %2, %4 : vector<16x96xf32>
    %6 = arith.truncf %5 : vector<16x96xf32> to vector<16x96xbf16>
    %c0_5 = arith.constant 0 : index
    %c0_6 = arith.constant 0 : index
    %7 = vector.load %arg4[%c0_5, %c0_6] : memref<16x96xbf16, #tpu.memory_space<vmem>>, vector<16x96xbf16>
    tpu.vector_store %arg4[%c0_5, %c0_6], %6 {strides = array<i32>} : memref<16x96xbf16, #tpu.memory_space<vmem>>, vector<16x96xbf16>,
    return
  }
  func.func @transform_0(%arg0: i32) -> (i32, i32) {
    %c0_i32 = arith.constant 0 : i32
    %c0_i32_0 = arith.constant 0 : i32
    return %arg0, %c0_i32 : i32, i32
  }
  func.func @transform_1(%arg0: i32) -> (i32, i32) {
    %c0_i32 = arith.constant 0 : i32
    %c0_i32_0 = arith.constant 0 : i32
    %c0_i32_1 = arith.constant 0 : i32
    return %c0_i32, %c0_i32_0 : i32, i32
  }
  func.func @transform_2(%arg0: i32) -> (i32, i32) {
    %c0_i32 = arith.constant 0 : i32
    %c0_i32_0 = arith.constant 0 : i32
    %c0_i32_1 = arith.constant 0 : i32
    return %c0_i32, %c0_i32_0 : i32, i32
  }
  func.func @transform_3(%arg0: i32) -> (i32, i32) {
    %c0_i32 = arith.constant 0 : i32
    %c0_i32_0 = arith.constant 0 : i32
    return %arg0, %c0_i32 : i32, i32
  }
}

module attributes {stable_mosaic.version = 11 : i64} {
  func.func @linear_kernel(%arg0: i32, %arg1: memref<16x32xbf16, #tpu.memory_space<vmem>>, %arg2: memref<32x32xbf16, #tpu.memory_space<vmem>>, %arg3: memref<1x32xf32, #tpu.memory_space<vmem>>, %arg4: memref<16x32xf32, #tpu.memory_space<vmem>>) attributes {dimension_semantics = [#tpu.dimension_semantics<parallel>], iteration_bounds = array<i64: 1>, scalar_prefetch = 0 : i64, scratch_operands = 0 : i64, tpu.core_type = #tpu.core_type<tc>, window_params = [{transform_indices = @transform_0, window_bounds = array<i64: 16, 32>}, {pipeline_mode = #tpu.pipeline_mode<synchronous>, transform_indices = @transform_1, window_bounds = array<i64: 32, 32>}, {pipeline_mode = #tpu.pipeline_mode<synchronous>, transform_indices = @transform_2, window_bounds = array<i64: 1, 32>}, {transform_indices = @transform_3, window_bounds = array<i64: 16, 32>}]} {
    %c0 = arith.constant 0 : index
    %c0_0 = arith.constant 0 : index
    %0 = vector.load %arg1[%c0, %c0_0] : memref<16x32xbf16, #tpu.memory_space<vmem>>, vector<16x32xbf16>
    %c0_1 = arith.constant 0 : index
    %c0_2 = arith.constant 0 : index
    %1 = vector.load %arg2[%c0_1, %c0_2] : memref<32x32xbf16, #tpu.memory_space<vmem>>, vector<32x32xbf16>
    %cst = arith.constant dense<0.000000e+00> : vector<16x32xf32>
    %2 = tpu.matmul %0, %1, %cst {dimension_numbers = #tpu.dot_dimension_numbers<[1], [0], [0], [1], [0, 0, 1, 1], [], []>} : vector<16x32xbf16>, vector<32x32xbf16>, vector<16x32xf32> -> vector<16x32xf32>
    %c0_3 = arith.constant 0 : index
    %c0_4 = arith.constant 0 : index
    %3 = vector.load %arg3[%c0_3, %c0_4] : memref<1x32xf32, #tpu.memory_space<vmem>>, vector<1x32xf32>
    %4 = vector.broadcast %3 : vector<1x32xf32> to vector<16x32xf32>
    %5 = arith.addf %2, %4 : vector<16x32xf32>
    %c0_5 = arith.constant 0 : index
    %c0_6 = arith.constant 0 : index
    %6 = vector.load %arg4[%c0_5, %c0_6] : memref<16x32xf32, #tpu.memory_space<vmem>>, vector<16x32xf32>
    tpu.vector_store %arg4[%c0_5, %c0_6], %5 {strides = array<i32>} : memref<16x32xf32, #tpu.memory_space<vmem>>, vector<16x32xf32>,
    return
  }
  func.func @transform_0(%arg0: i32) -> (i32, i32) {
    %c0_i32 = arith.constant 0 : i32
    %c0_i32_0 = arith.constant 0 : i32
    return %arg0, %c0_i32 : i32, i32
  }
  func.func @transform_1(%arg0: i32) -> (i32, i32) {
    %c0_i32 = arith.constant 0 : i32
    %c0_i32_0 = arith.constant 0 : i32
    %c0_i32_1 = arith.constant 0 : i32
    return %c0_i32, %c0_i32_0 : i32, i32
  }
  func.func @transform_2(%arg0: i32) -> (i32, i32) {
    %c0_i32 = arith.constant 0 : i32
    %c0_i32_0 = arith.constant 0 : i32
    %c0_i32_1 = arith.constant 0 : i32
    return %c0_i32, %c0_i32_0 : i32, i32
  }
  func.func @transform_3(%arg0: i32) -> (i32, i32) {
    %c0_i32 = arith.constant 0 : i32
    %c0_i32_0 = arith.constant 0 : i32
    return %arg0, %c0_i32 : i32, i32
  }
}

module attributes {stable_mosaic.version = 11 : i64} {
  func.func @attn_kernel(%arg0: i32, %arg1: i32, %arg2: memref<8x1x1x4x8xbf16, #tpu.memory_space<vmem>>, %arg3: memref<8x1x1x4x8xbf16, #tpu.memory_space<vmem>>, %arg4: memref<8x1x1x4x8xbf16, #tpu.memory_space<vmem>>, %arg5: memref<1x1x8xf32, #tpu.memory_space<vmem>>, %arg6: memref<8x1x4x8xbf16, #tpu.memory_space<vmem>>, %arg7: memref<1x8x8xf32, #tpu.memory_space<vmem>>) attributes {dimension_semantics = [#tpu.dimension_semantics<parallel>, #tpu.dimension_semantics<parallel>], iteration_bounds = array<i64: 2, 1>, scalar_prefetch = 0 : i64, scratch_operands = 0 : i64, tpu.core_type = #tpu.core_type<tc>, window_params = [{transform_indices = @transform_0, window_bounds = array<i64: 8, 1, 1, 4, 8>}, {transform_indices = @transform_1, window_bounds = array<i64: 8, 1, 1, 4, 8>}, {transform_indices = @transform_2, window_bounds = array<i64: 8, 1, 1, 4, 8>}, {transform_indices = @transform_3, window_bounds = array<i64: 1, 1, 8>}, {transform_indices = @transform_4, window_bounds = array<i64: 8, 1, 4, 8>}, {transform_indices = @transform_5, window_bounds = array<i64: 1, 8, 8>}]} {
    %c0 = arith.constant 0 : index
    %c0_0 = arith.constant 0 : index
    %c0_1 = arith.constant 0 : index
    %0 = vector.load %arg5[%c0, %c0_0, %c0_1] : memref<1x1x8xf32, #tpu.memory_space<vmem>>, vector<1x1x8xf32>
    %1 = vector.shape_cast %0 : vector<1x1x8xf32> to vector<1x8xf32>
    %cst = arith.constant 0.000000e+00 : f32
    %2 = vector.broadcast %cst : f32 to vector<8x8xf32>
    %c0_2 = arith.constant 0 : index
    %c0_3 = arith.constant 0 : index
    %c0_4 = arith.constant 0 : index
    %c0_5 = arith.constant 0 : index
    %c0_6 = arith.constant 0 : index
    %3 = vector.load %arg2[%c0_2, %c0_3, %c0_4, %c0_5, %c0_6] : memref<8x1x1x4x8xbf16, #tpu.memory_space<vmem>>, vector<8x1x1x1x8xbf16>
    %4 = vector.shape_cast %3 : vector<8x1x1x1x8xbf16> to vector<8x8xbf16>
    %c0_7 = arith.constant 0 : index
    %c0_8 = arith.constant 0 : index
    %c0_9 = arith.constant 0 : index
    %c0_10 = arith.constant 0 : index
    %c0_11 = arith.constant 0 : index
    %5 = vector.load %arg3[%c0_7, %c0_8, %c0_9, %c0_10, %c0_11] : memref<8x1x1x4x8xbf16, #tpu.memory_space<vmem>>, vector<8x1x1x1x8xbf16>
    %6 = vector.shape_cast %5 : vector<8x1x1x1x8xbf16> to vector<8x8xbf16>
    %c0_12 = arith.constant 0 : index
    %c0_13 = arith.constant 0 : index
    %c0_14 = arith.constant 0 : index
    %c0_15 = arith.constant 0 : index
    %c0_16 = arith.constant 0 : index
    %7 = vector.load %arg4[%c0_12, %c0_13, %c0_14, %c0_15, %c0_16] : memref<8x1x1x4x8xbf16, #tpu.memory_space<vmem>>, vector<8x1x1x1x8xbf16>
    %8 = vector.shape_cast %7 : vector<8x1x1x1x8xbf16> to vector<8x8xbf16>
    %cst_17 = arith.constant dense<0.000000e+00> : vector<8x8xf32>
    %9 = tpu.matmul %4, %6, %cst_17 {dimension_numbers = #tpu.dot_dimension_numbers<[1], [1], [0], [0], [0, 0, 1, 0], [], []>} : vector<8x8xbf16>, vector<8x8xbf16>, vector<8x8xf32> -> vector<8x8xf32>
    %cst_18 = arith.constant 0.353553385 : f32
    %10 = vector.broadcast %cst_18 : f32 to vector<8x8xf32>
    %11 = arith.mulf %9, %10 : vector<8x8xf32>
    %12 = vector.broadcast %1 : vector<1x8xf32> to vector<8x8xf32>
    %13 = arith.addf %11, %12 : vector<8x8xf32>
    %cst_19 = arith.constant dense<0xFF800000> : vector<8xf32>
    %14 = vector.multi_reduction <maximumf>, %13, %cst_19 [1] : vector<8x8xf32> to vector<8xf32>
    %15 = vector.shape_cast %14 : vector<8xf32> to vector<8x1xf32>
    %16 = vector.broadcast %15 : vector<8x1xf32> to vector<8x8xf32>
    %17 = arith.subf %13, %16 : vector<8x8xf32>
    %18 = math.exp %17 : vector<8x8xf32>
    %cst_20 = arith.constant dense<0.000000e+00> : vector<8xf32>
    %19 = vector.multi_reduction <add>, %18, %cst_20 [1] : vector<8x8xf32> to vector<8xf32>
    %20 = vector.shape_cast %19 : vector<8xf32> to vector<8x1xf32>
    %21 = tpu.reciprocal %20 {approx = true} : vector<8x1xf32> -> vector<8x1xf32>
    %22 = vector.broadcast %21 : vector<8x1xf32> to vector<8x8xf32>
    %23 = arith.mulf %18, %22 : vector<8x8xf32>
    %24 = arith.truncf %23 : vector<8x8xf32> to vector<8x8xbf16>
    %cst_21 = arith.constant dense<0.000000e+00> : vector<8x8xf32>
    %25 = tpu.matmul %24, %8, %cst_21 {dimension_numbers = #tpu.dot_dimension_numbers<[1], [0], [0], [1], [0, 0, 1, 1], [], []>} : vector<8x8xbf16>, vector<8x8xbf16>, vector<8x8xf32> -> vector<8x8xf32>
    %26 = arith.truncf %25 : vector<8x8xf32> to vector<8x8xbf16>
    %c0_22 = arith.constant 0 : index
    %c0_23 = arith.constant 0 : index
    %c0_24 = arith.constant 0 : index
    %c0_25 = arith.constant 0 : index
    %27 = vector.load %arg6[%c0_22, %c0_23, %c0_24, %c0_25] : memref<8x1x4x8xbf16, #tpu.memory_space<vmem>>, vector<8x1x1x8xbf16>
    %28 = vector.shape_cast %27 : vector<8x1x1x8xbf16> to vector<8x8xbf16>
    %29 = vector.shape_cast %26 : vector<8x8xbf16> to vector<8x1x1x8xbf16>
    tpu.vector_store %arg6[%c0_22, %c0_23, %c0_24, %c0_25], %29 {strides = array<i32>} : memref<8x1x4x8xbf16, #tpu.memory_space<vmem>>, vector<8x1x1x8xbf16>,
    %30 = arith.addf %2, %23 : vector<8x8xf32>
    %c0_26 = arith.constant 0 : index
    %c0_27 = arith.constant 0 : index
    %c0_28 = arith.constant 0 : index
    %c1 = arith.constant 1 : index
    %c0_29 = arith.constant 0 : index
    %31 = vector.load %arg2[%c0_26, %c0_27, %c0_28, %c1, %c0_29] : memref<8x1x1x4x8xbf16, #tpu.memory_space<vmem>>, vector<8x1x1x1x8xbf16>
    %32 = vector.shape_cast %31 : vector<8x1x1x1x8xbf16> to vector<8x8xbf16>
    %c0_30 = arith.constant 0 : index
    %c0_31 = arith.constant 0 : index
    %c0_32 = arith.constant 0 : index
    %c1_33 = arith.constant 1 : index
    %c0_34 = arith.constant 0 : index
    %33 = vector.load %arg3[%c0_30, %c0_31, %c0_32, %c1_33, %c0_34] : memref<8x1x1x4x8xbf16, #tpu.memory_space<vmem>>, vector<8x1x1x1x8xbf16>
    %34 = vector.shape_cast %33 : vector<8x1x1x1x8xbf16> to vector<8x8xbf16>
    %c0_35 = arith.constant 0 : index
    %c0_36 = arith.constant 0 : index
    %c0_37 = arith.constant 0 : index
    %c1_38 = arith.constant 1 : index
    %c0_39 = arith.constant 0 : index
    %35 = vector.load %arg4[%c0_35, %c0_36, %c0_37, %c1_38, %c0_39] : memref<8x1x1x4x8xbf16, #tpu.memory_space<vmem>>, vector<8x1x1x1x8xbf16>
    %36 = vector.shape_cast %35 : vector<8x1x1x1x8xbf16> to vector<8x8xbf16>
    %cst_40 = arith.constant dense<0.000000e+00> : vector<8x8xf32>
    %37 = tpu.matmul %32, %34, %cst_40 {dimension_numbers = #tpu.dot_dimension_numbers<[1], [1], [0], [0], [0, 0, 1, 0], [], []>} : vector<8x8xbf16>, vector<8x8xbf16>, vector<8x8xf32> -> vector<8x8xf32>
    %cst_41 = arith.constant 0.353553385 : f32
    %38 = vector.broadcast %cst_41 : f32 to vector<8x8xf32>
    %39 = arith.mulf %37, %38 : vector<8x8xf32>
    %40 = vector.broadcast %1 : vector<1x8xf32> to vector<8x8xf32>
    %41 = arith.addf %39, %40 : vector<8x8xf32>
    %cst_42 = arith.constant dense<0xFF800000> : vector<8xf32>
    %42 = vector.multi_reduction <maximumf>, %41, %cst_42 [1] : vector<8x8xf32> to vector<8xf32>
    %43 = vector.shape_cast %42 : vector<8xf32> to vector<8x1xf32>
    %44 = vector.broadcast %43 : vector<8x1xf32> to vector<8x8xf32>
    %45 = arith.subf %41, %44 : vector<8x8xf32>
    %46 = math.exp %45 : vector<8x8xf32>
    %cst_43 = arith.constant dense<0.000000e+00> : vector<8xf32>
    %47 = vector.multi_reduction <add>, %46, %cst_43 [1] : vector<8x8xf32> to vector<8xf32>
    %48 = vector.shape_cast %47 : vector<8xf32> to vector<8x1xf32>
    %49 = tpu.reciprocal %48 {approx = true} : vector<8x1xf32> -> vector<8x1xf32>
    %50 = vector.broadcast %49 : vector<8x1xf32> to vector<8x8xf32>
    %51 = arith.mulf %46, %50 : vector<8x8xf32>
    %52 = arith.truncf %51 : vector<8x8xf32> to vector<8x8xbf16>
    %cst_44 = arith.constant dense<0.000000e+00> : vector<8x8xf32>
    %53 = tpu.matmul %52, %36, %cst_44 {dimension_numbers = #tpu.dot_dimension_numbers<[1], [0], [0], [1], [0, 0, 1, 1], [], []>} : vector<8x8xbf16>, vector<8x8xbf16>, vector<8x8xf32> -> vector<8x8xf32>
    %54 = arith.truncf %53 : vector<8x8xf32> to vector<8x8xbf16>
    %c0_45 = arith.constant 0 : index
    %c0_46 = arith.constant 0 : index
    %c1_47 = arith.constant 1 : index
    %c0_48 = arith.constant 0 : index
    %55 = vector.load %arg6[%c0_45, %c0_46, %c1_47, %c0_48] : memref<8x1x4x8xbf16, #tpu.memory_space<vmem>>, vector<8x1x1x8xbf16>
    %56 = vector.shape_cast %55 : vector<8x1x1x8xbf16> to vector<8x8xbf16>
    %57 = vector.shape_cast %54 : vector<8x8xbf16> to vector<8x1x1x8xbf16>
    tpu.vector_store %arg6[%c0_45, %c0_46, %c1_47, %c0_48], %57 {strides = array<i32>} : memref<8x1x4x8xbf16, #tpu.memory_space<vmem>>, vector<8x1x1x8xbf16>,
    %58 = arith.addf %30, %51 : vector<8x8xf32>
    %c0_49 = arith.constant 0 : index
    %c0_50 = arith.constant 0 : index
    %c0_51 = arith.constant 0 : index
    %c2 = arith.constant 2 : index
    %c0_52 = arith.constant 0 : index
    %59 = vector.load %arg2[%c0_49, %c0_50, %c0_51, %c2, %c0_52] : memref<8x1x1x4x8xbf16, #tpu.memory_space<vmem>>, vector<8x1x1x1x8xbf16>
    %60 = vector.shape_cast %59 : vector<8x1x1x1x8xbf16> to vector<8x8xbf16>
    %c0_53 = arith.constant 0 : index
    %c0_54 = arith.constant 0 : index
    %c0_55 = arith.constant 0 : index
    %c2_56 = arith.constant 2 : index
    %c0_57 = arith.constant 0 : index
    %61 = vector.load %arg3[%c0_53, %c0_54, %c0_55, %c2_56, %c0_57] : memref<8x1x1x4x8xbf16, #tpu.memory_space<vmem>>, vector<8x1x1x1x8xbf16>
    %62 = vector.shape_cast %61 : vector<8x1x1x1x8xbf16> to vector<8x8xbf16>
    %c0_58 = arith.constant 0 : index
    %c0_59 = arith.constant 0 : index
    %c0_60 = arith.constant 0 : index
    %c2_61 = arith.constant 2 : index
    %c0_62 = arith.constant 0 : index
    %63 = vector.load %arg4[%c0_58, %c0_59, %c0_60, %c2_61, %c0_62] : memref<8x1x1x4x8xbf16, #tpu.memory_space<vmem>>, vector<8x1x1x1x8xbf16>
    %64 = vector.shape_cast %63 : vector<8x1x1x1x8xbf16> to vector<8x8xbf16>
    %cst_63 = arith.constant dense<0.000000e+00> : vector<8x8xf32>
    %65 = tpu.matmul %60, %62, %cst_63 {dimension_numbers = #tpu.dot_dimension_numbers<[1], [1], [0], [0], [0, 0, 1, 0], [], []>} : vector<8x8xbf16>, vector<8x8xbf16>, vector<8x8xf32> -> vector<8x8xf32>
    %cst_64 = arith.constant 0.353553385 : f32
    %66 = vector.broadcast %cst_64 : f32 to vector<8x8xf32>
    %67 = arith.mulf %65, %66 : vector<8x8xf32>
    %68 = vector.broadcast %1 : vector<1x8xf32> to vector<8x8xf32>
    %69 = arith.addf %67, %68 : vector<8x8xf32>
    %cst_65 = arith.constant dense<0xFF800000> : vector<8xf32>
    %70 = vector.multi_reduction <maximumf>, %69, %cst_65 [1] : vector<8x8xf32> to vector<8xf32>
    %71 = vector.shape_cast %70 : vector<8xf32> to vector<8x1xf32>
    %72 = vector.broadcast %71 : vector<8x1xf32> to vector<8x8xf32>
    %73 = arith.subf %69, %72 : vector<8x8xf32>
    %74 = math.exp %73 : vector<8x8xf32>
    %cst_66 = arith.constant dense<0.000000e+00> : vector<8xf32>
    %75 = vector.multi_reduction <add>, %74, %cst_66 [1] : vector<8x8xf32> to vector<8xf32>
    %76 = vector.shape_cast %75 : vector<8xf32> to vector<8x1xf32>
    %77 = tpu.reciprocal %76 {approx = true} : vector<8x1xf32> -> vector<8x1xf32>
    %78 = vector.broadcast %77 : vector<8x1xf32> to vector<8x8xf32>
    %79 = arith.mulf %74, %78 : vector<8x8xf32>
    %80 = arith.truncf %79 : vector<8x8xf32> to vector<8x8xbf16>
    %cst_67 = arith.constant dense<0.000000e+00> : vector<8x8xf32>
    %81 = tpu.matmul %80, %64, %cst_67 {dimension_numbers = #tpu.dot_dimension_numbers<[1], [0], [0], [1], [0, 0, 1, 1], [], []>} : vector<8x8xbf16>, vector<8x8xbf16>, vector<8x8xf32> -> vector<8x8xf32>
    %82 = arith.truncf %81 : vector<8x8xf32> to vector<8x8xbf16>
    %c0_68 = arith.constant 0 : index
    %c0_69 = arith.constant 0 : index
    %c2_70 = arith.constant 2 : index
    %c0_71 = arith.constant 0 : index
    %83 = vector.load %arg6[%c0_68, %c0_69, %c2_70, %c0_71] : memref<8x1x4x8xbf16, #tpu.memory_space<vmem>>, vector<8x1x1x8xbf16>
    %84 = vector.shape_cast %83 : vector<8x1x1x8xbf16> to vector<8x8xbf16>
    %85 = vector.shape_cast %82 : vector<8x8xbf16> to vector<8x1x1x8xbf16>
    tpu.vector_store %arg6[%c0_68, %c0_69, %c2_70, %c0_71], %85 {strides = array<i32>} : memref<8x1x4x8xbf16, #tpu.memory_space<vmem>>, vector<8x1x1x8xbf16>,
    %86 = arith.addf %58, %79 : vector<8x8xf32>
    %c0_72 = arith.constant 0 : index
    %c0_73 = arith.constant 0 : index
    %c0_74 = arith.constant 0 : index
    %c3 = arith.constant 3 : index
    %c0_75 = arith.constant 0 : index
    %87 = vector.load %arg2[%c0_72, %c0_73, %c0_74, %c3, %c0_75] : memref<8x1x1x4x8xbf16, #tpu.memory_space<vmem>>, vector<8x1x1x1x8xbf16>
    %88 = vector.shape_cast %87 : vector<8x1x1x1x8xbf16> to vector<8x8xbf16>
    %c0_76 = arith.constant 0 : index
    %c0_77 = arith.constant 0 : index
    %c0_78 = arith.constant 0 : index
    %c3_79 = arith.constant 3 : index
    %c0_80 = arith.constant 0 : index
    %89 = vector.load %arg3[%c0_76, %c0_77, %c0_78, %c3_79, %c0_80] : memref<8x1x1x4x8xbf16, #tpu.memory_space<vmem>>, vector<8x1x1x1x8xbf16>
    %90 = vector.shape_cast %89 : vector<8x1x1x1x8xbf16> to vector<8x8xbf16>
    %c0_81 = arith.constant 0 : index
    %c0_82 = arith.constant 0 : index
    %c0_83 = arith.constant 0 : index
    %c3_84 = arith.constant 3 : index
    %c0_85 = arith.constant 0 : index
    %91 = vector.load %arg4[%c0_81, %c0_82, %c0_83, %c3_84, %c0_85] : memref<8x1x1x4x8xbf16, #tpu.memory_space<vmem>>, vector<8x1x1x1x8xbf16>
    %92 = vector.shape_cast %91 : vector<8x1x1x1x8xbf16> to vector<8x8xbf16>
    %cst_86 = arith.constant dense<0.000000e+00> : vector<8x8xf32>
    %93 = tpu.matmul %88, %90, %cst_86 {dimension_numbers = #tpu.dot_dimension_numbers<[1], [1], [0], [0], [0, 0, 1, 0], [], []>} : vector<8x8xbf16>, vector<8x8xbf16>, vector<8x8xf32> -> vector<8x8xf32>
    %cst_87 = arith.constant 0.353553385 : f32
    %94 = vector.broadcast %cst_87 : f32 to vector<8x8xf32>
    %95 = arith.mulf %93, %94 : vector<8x8xf32>
    %96 = vector.broadcast %1 : vector<1x8xf32> to vector<8x8xf32>
    %97 = arith.addf %95, %96 : vector<8x8xf32>
    %cst_88 = arith.constant dense<0xFF800000> : vector<8xf32>
    %98 = vector.multi_reduction <maximumf>, %97, %cst_88 [1] : vector<8x8xf32> to vector<8xf32>
    %99 = vector.shape_cast %98 : vector<8xf32> to vector<8x1xf32>
    %100 = vector.broadcast %99 : vector<8x1xf32> to vector<8x8xf32>
    %101 = arith.subf %97, %100 : vector<8x8xf32>
    %102 = math.exp %101 : vector<8x8xf32>
    %cst_89 = arith.constant dense<0.000000e+00> : vector<8xf32>
    %103 = vector.multi_reduction <add>, %102, %cst_89 [1] : vector<8x8xf32> to vector<8xf32>
    %104 = vector.shape_cast %103 : vector<8xf32> to vector<8x1xf32>
    %105 = tpu.reciprocal %104 {approx = true} : vector<8x1xf32> -> vector<8x1xf32>
    %106 = vector.broadcast %105 : vector<8x1xf32> to vector<8x8xf32>
    %107 = arith.mulf %102, %106 : vector<8x8xf32>
    %108 = arith.truncf %107 : vector<8x8xf32> to vector<8x8xbf16>
    %cst_90 = arith.constant dense<0.000000e+00> : vector<8x8xf32>
    %109 = tpu.matmul %108, %92, %cst_90 {dimension_numbers = #tpu.dot_dimension_numbers<[1], [0], [0], [1], [0, 0, 1, 1], [], []>} : vector<8x8xbf16>, vector<8x8xbf16>, vector<8x8xf32> -> vector<8x8xf32>
    %110 = arith.truncf %109 : vector<8x8xf32> to vector<8x8xbf16>
    %c0_91 = arith.constant 0 : index
    %c0_92 = arith.constant 0 : index
    %c3_93 = arith.constant 3 : index
    %c0_94 = arith.constant 0 : index
    %111 = vector.load %arg6[%c0_91, %c0_92, %c3_93, %c0_94] : memref<8x1x4x8xbf16, #tpu.memory_space<vmem>>, vector<8x1x1x8xbf16>
    %112 = vector.shape_cast %111 : vector<8x1x1x8xbf16> to vector<8x8xbf16>
    %113 = vector.shape_cast %110 : vector<8x8xbf16> to vector<8x1x1x8xbf16>
    tpu.vector_store %arg6[%c0_91, %c0_92, %c3_93, %c0_94], %113 {strides = array<i32>} : memref<8x1x4x8xbf16, #tpu.memory_space<vmem>>, vector<8x1x1x8xbf16>,
    %114 = arith.addf %86, %107 : vector<8x8xf32>
    %cst_95 = arith.constant 2.500000e-01 : f32
    %115 = vector.broadcast %cst_95 : f32 to vector<8x8xf32>
    %116 = arith.mulf %114, %115 : vector<8x8xf32>
    %c0_96 = arith.constant 0 : index
    %c0_97 = arith.constant 0 : index
    %c0_98 = arith.constant 0 : index
    %117 = vector.load %arg7[%c0_96, %c0_97, %c0_98] : memref<1x8x8xf32, #tpu.memory_space<vmem>>, vector<1x8x8xf32>
    %118 = vector.shape_cast %117 : vector<1x8x8xf32> to vector<8x8xf32>
    %119 = vector.shape_cast %116 : vector<8x8xf32> to vector<1x8x8xf32>
    tpu.vector_store %arg7[%c0_96, %c0_97, %c0_98], %119 {strides = array<i32>} : memref<1x8x8xf32, #tpu.memory_space<vmem>>, vector<1x8x8xf32>,
    return
  }
  func.func @transform_0(%arg0: i32, %arg1: i32) -> (i32, i32, i32, i32, i32) {
    %c0_i32 = arith.constant 0 : i32
    %c0_i32_0 = arith.constant 0 : i32
    %c0_i32_1 = arith.constant 0 : i32
    %c0_i32_2 = arith.constant 0 : i32
    return %arg1, %arg0, %c0_i32, %c0_i32_0, %c0_i32_1 : i32, i32, i32, i32, i32
  }
  func.func @transform_1(%arg0: i32, %arg1: i32) -> (i32, i32, i32, i32, i32) {
    %c0_i32 = arith.constant 0 : i32
    %c1_i32 = arith.constant 1 : i32
    %c0_i32_0 = arith.constant 0 : i32
    %c0_i32_1 = arith.constant 0 : i32
    %c0_i32_2 = arith.constant 0 : i32
    return %c0_i32, %arg0, %c1_i32, %c0_i32_0, %c0_i32_1 : i32, i32, i32, i32, i32
  }
  func.func @transform_2(%arg0: i32, %arg1: i32) -> (i32, i32, i32, i32, i32) {
    %c0_i32 = arith.constant 0 : i32
    %c2_i32 = arith.constant 2 : i32
    %c0_i32_0 = arith.constant 0 : i32
    %c0_i32_1 = arith.constant 0 : i32
    %c0_i32_2 = arith.constant 0 : i32
    return %c0_i32, %arg0, %c2_i32, %c0_i32_0, %c0_i32_1 : i32, i32, i32, i32, i32
  }
  func.func @transform_3(%arg0: i32, %arg1: i32) -> (i32, i32, i32) {
    %c0_i32 = arith.constant 0 : i32
    %c0_i32_0 = arith.constant 0 : i32
    %c0_i32_1 = arith.constant 0 : i32
    return %arg0, %c0_i32, %c0_i32_0 : i32, i32, i32
  }
  func.func @transform_4(%arg0: i32, %arg1: i32) -> (i32, i32, i32, i32) {
    %c0_i32 = arith.constant 0 : i32
    %c0_i32_0 = arith.constant 0 : i32
    %c0_i32_1 = arith.constant 0 : i32
    return %arg1, %arg0, %c0_i32, %c0_i32_0 : i32, i32, i32, i32
  }
  func.func @transform_5(%arg0: i32, %arg1: i32) -> (i32, i32, i32) {
    %c0_i32 = arith.constant 0 : i32
    %c0_i32_0 = arith.constant 0 : i32
    return %arg0, %arg1, %c0_i32 : i32, i32, i32
  }
}

</mosaic_0001>

<llo_original>
// kernel: multi_head_attention_forward.5
$region0: #{multi_head_attention_forward.5}
  #allocation0 [shape = 'u32[]', space=smem, size = 0x4, offset = 0x4, fixed_abs, tag = 'smem constant byte address 0x4 - core index']
  #allocation1 [shape = 'u32[144,128]{1,0:T(1,128)}', space=vmem, size = 0x12000, scoped, tag = 'internal scratch']
  %s0 = inlined_call_operand.vmem [shape: bf16[16,32], index: 0, kind: input, shape index: {}]
  %s1 = inlined_call_operand.vmem [shape: bf16[32,32], index: 1, kind: input, shape index: {}]
  %s2 = inlined_call_operand.vmem [shape: f32[1,32], index: 2, kind: input, shape index: {}]
  %s3 = inlined_call_operand.hbm [shape: f32[16,32], index: 3, kind: output, shape index: {}]
  %s4 = sld [smem:[#allocation0]]
  $region22: #{multi_head_attention_forward.5} parent=0
    _
  %s6 = ssub.s32 1, %s4
  %s7 = scalar_select 0, %s6, %s4
  $region1: #{multi_head_attention_forward.5} parent=0
    #allocation2 [shape = 'u8[8192]{0}', space=vmem, size = 0x2000, scoped, tag = 'output window, operand 0, single buffered']
    #allocation3 [shape = 's32[1]{0}', space=sflag, size = 0x4, scoped, tag = 'scoped memory for multi_head_attention_forward.5']
    %8 = vsyncpa [#allocation3], 0
    // Predicated region
    $region2: #{multi_head_attention_forward.5} parent=1 // pred_check
      _
    $region3: #{multi_head_attention_forward.5} parent=1 // pred_check_branch
      %10 = sbr.rel (0) target = $region5
    $region4: #{multi_head_attention_forward.5} parent=1 // pred_region
      _
    $region5: #{multi_head_attention_forward.5} parent=1 // pred_fallthru
      _
    // Predicated region
    $region6: #{multi_head_attention_forward.5} parent=1 // pred_check
      _
    $region7: #{multi_head_attention_forward.5} parent=1 // pred_check_branch
      %12 = sbr.rel (0) target = $region9
    $region8: #{multi_head_attention_forward.5} parent=1 // pred_region
      _
    $region9: #{multi_head_attention_forward.5} parent=1 // pred_fallthru
      _
    // Predicated region
    $region10: #{multi_head_attention_forward.5} parent=1 // pred_check
      _
    $region11: #{multi_head_attention_forward.5} parent=1 // pred_check_branch
      %14 = sbr.rel (0) target = $region13
    $region12: #{multi_head_attention_forward.5} parent=1 // pred_region
      _
    $region13: #{multi_head_attention_forward.5} parent=1 // pred_fallthru
      _
    %v16 = vld [vmem:[%s0] sm:$0xf]
    %v17 = vld [vmem:[%s0 + $0x4] sm:$0xf]
    %v18 = vld [vmem:[%s1] sm:$0xf]
    %v19 = vld [vmem:[%s1 + $0x4] sm:$0xf]
    %v20 = vld [vmem:[%s1 + $0x8] sm:$0xf]
    %v21 = vld [vmem:[%s1 + $0xc] sm:$0xf]
    %v22 = vld [vmem:[%s2] sm:$0x1]
    %v24 = vlaneseq
    %v25 = vshrl.u32 %v24, 7
    %v26 = vsub.s32 0, %v25
    %v27 = vrot.slane %v22, %v26
    %v31 = vunpack.c.l.b16 %v16
    %v32 = vunpack.c.l.b16 %v17
    %v33 = vpack.c.b16 %v32, %v31
    %v38 = vunpack.c.l.b16 %v18
    %v39 = vunpack.c.l.b16 %v19
    %v40 = vunpack.c.l.b16 %v20
    %v41 = vunpack.c.l.b16 %v21
    %v42 = vpack.c.b16 %v39, %v38
    %v43 = vpack.c.b16 %v41, %v40
    %vm46 = vcmask 261120
    %v48 = vsel %vm46, %v33, 0
    %50 = vmatprep.subr.bf16.mxu0 0
    %51 = vmatpush1.bf16.msra.mxu0 0
    %52 = vmatprep.subr.bf16.mxu0 0
    %53 = vmatpush1.bf16.msra.mxu0 0
    %54 = vmatprep.subr.bf16.mxu0 0
    %55 = vmatpush1.bf16.msra.mxu0 0
    %56 = vmatprep.subr.bf16.mxu0 0
    %57 = vmatpush1.bf16.msra.mxu0 0
    %58 = vmatprep.subr.bf16.mxu0 0
    %59 = vmatpush1.bf16.msra.mxu0 0
    %60 = vmatprep.subr.bf16.mxu0 0
    %61 = vmatpush1.bf16.msra.mxu0 0
    %62 = vmatprep.subr.bf16.mxu0 0
    %63 = vmatpush1.bf16.msra.mxu0 %v43
    %64 = vmatprep.subr.bf16.mxu0 0
    %65 = vmatpush1.bf16.msra.mxu0 %v42
    %66 = vmatprep.subr.bf16.mxu0 0
    %67 = vmatpush2.bf16.msra.mxu0 0
    %68 = vmatprep.subr.bf16.mxu0 0
    %69 = vmatpush2.bf16.msra.mxu0 0
    %70 = vmatprep.subr.bf16.mxu0 0
    %71 = vmatpush2.bf16.msra.mxu0 0
    %72 = vmatprep.subr.bf16.mxu0 0
    %73 = vmatpush2.bf16.msra.mxu0 0
    %74 = vmatprep.subr.bf16.mxu0 0
    %75 = vmatpush2.bf16.msra.mxu0 0
    %76 = vmatprep.subr.bf16.mxu0 0
    %77 = vmatpush2.bf16.msra.mxu0 0
    %78 = vmatprep.subr.bf16.mxu0 0
    %79 = vmatpush2.bf16.msra.mxu0 0
    %80 = vmatprep.subr.bf16.mxu0 0
    %81 = vmatpush2.bf16.msra.mxu0 0
    %82 = vmatprep.mubr.bf16.mxu0 0
    %83 = vmatmul.mubr.bf16.gmra.mxu0 %v48
    %v84 = vpop.f32.mrf.mxu0
    %v85 = vadd.f32 %v27, %v84
    %v86 = vpop.f32.mrf.mxu0
    %v87 = vpop.f32.mrf.mxu0
    %v88 = vadd.f32 %v27, %v87
    %v89 = vpop.f32.mrf.mxu0
    %90 = vdwg.mxu0
    %91 = vst.msk [vmem:[#allocation2] sm:$0xff] %vm46, %v85
    %92 = vst.msk [vmem:[#allocation2 + $0x8] sm:$0xff] %vm46, %v88
    // Predicated region
    $region14: #{multi_head_attention_forward.5} parent=1 // pred_check
      _
    $region15: #{multi_head_attention_forward.5} parent=1 // pred_check_branch
      %94 = sbr.rel (0) target = $region17
    $region16: #{multi_head_attention_forward.5} parent=1 // pred_region
      %s96 = ssub.s32 256, 256
      %97 = vsyncadd [#allocation3], %s96
      %s98 = sshll.u32 [#allocation2], 4
      %s99 = int_to_ptr.vmem [resolvable:$true] %s98
      %104 = dma.vmem_to_hbm [thread:$0]  %s99, 256, %s3, [#allocation3], 128, 128, 8
    $region17: #{multi_head_attention_forward.5} parent=1 // pred_fallthru
      _
    // Predicated region
    $region18: #{multi_head_attention_forward.5} parent=1 // pred_check
      _
    $region19: #{multi_head_attention_forward.5} parent=1 // pred_check_branch
      %106 = sbr.rel (0) target = $region21
    $region20: #{multi_head_attention_forward.5} parent=1 // pred_region
      %107 = dma.done [#allocation3], 256
    $region21: #{multi_head_attention_forward.5} parent=1 // pred_fallthru
      _
    %108 = vsyncpa [#allocation3], 1

// kernel: multi_head_attention_forward.3
$region0: #{multi_head_attention_forward.3}
  #allocation0 [shape = 'u32[]', space=smem, size = 0x4, offset = 0x4, fixed_abs, tag = 'smem constant byte address 0x4 - core index']
  #allocation1 [shape = 'u32[144,128]{1,0:T(1,128)}', space=vmem, size = 0x12000, scoped, tag = 'internal scratch']
  %s0 = inlined_call_operand.vmem [shape: bf16[16,32], index: 0, kind: input, shape index: {}]
  %s1 = inlined_call_operand.vmem [shape: bf16[32,96], index: 1, kind: input, shape index: {}]
  %s2 = inlined_call_operand.vmem [shape: f32[1,96], index: 2, kind: input, shape index: {}]
  %s3 = inlined_call_operand.vmem [shape: bf16[16,96], index: 3, kind: output, shape index: {}]
  %s4 = sld [smem:[#allocation0]]
  $region22: #{multi_head_attention_forward.3} parent=0
    _
  %s6 = ssub.s32 1, %s4
  %s7 = scalar_select 0, %s6, %s4
  // Predicated region
  $region2: #{multi_head_attention_forward.3} parent=0 // pred_check
    _
  $region3: #{multi_head_attention_forward.3} parent=0 // pred_check_branch
    %9 = sbr.rel (0) target = $region5
  $region4: #{multi_head_attention_forward.3} parent=0 // pred_region
    _
  $region5: #{multi_head_attention_forward.3} parent=0 // pred_fallthru
    _
  // Predicated region
  $region6: #{multi_head_attention_forward.3} parent=0 // pred_check
    _
  $region7: #{multi_head_attention_forward.3} parent=0 // pred_check_branch
    %11 = sbr.rel (0) target = $region9
  $region8: #{multi_head_attention_forward.3} parent=0 // pred_region
    _
  $region9: #{multi_head_attention_forward.3} parent=0 // pred_fallthru
    _
  // Predicated region
  $region10: #{multi_head_attention_forward.3} parent=0 // pred_check
    _
  $region11: #{multi_head_attention_forward.3} parent=0 // pred_check_branch
    %13 = sbr.rel (0) target = $region13
  $region12: #{multi_head_attention_forward.3} parent=0 // pred_region
    _
  $region13: #{multi_head_attention_forward.3} parent=0 // pred_fallthru
    _
  %v15 = vld [vmem:[%s0] sm:$0xf]
  %v16 = vld [vmem:[%s0 + $0x4] sm:$0xf]
  %v17 = vld [vmem:[%s1] sm:$0xf]
  %v18 = vld [vmem:[%s1 + $0x4] sm:$0xf]
  %v19 = vld [vmem:[%s1 + $0x8] sm:$0xf]
  %v20 = vld [vmem:[%s1 + $0xc] sm:$0xf]
  %v21 = vld [vmem:[%s2] sm:$0x1]
  %v23 = vlaneseq
  %v24 = vshrl.u32 %v23, 7
  %v25 = vsub.s32 0, %v24
  %v26 = vrot.slane %v21, %v25
  %v30 = vunpack.c.l.b16 %v15
  %v31 = vunpack.c.l.b16 %v16
  %v32 = vpack.c.b16 %v31, %v30
  %v37 = vunpack.c.l.b16 %v17
  %v38 = vunpack.c.l.b16 %v18
  %v39 = vunpack.c.l.b16 %v19
  %v40 = vunpack.c.l.b16 %v20
  %v41 = vpack.c.b16 %v38, %v37
  %v42 = vpack.c.b16 %v40, %v39
  %vm45 = vcmask 261120
  %v47 = vsel %vm45, %v32, 0
  %49 = vmatprep.subr.bf16.mxu0 0
  %50 = vmatpush1.bf16.msra.mxu0 0
  %51 = vmatprep.subr.bf16.mxu0 0
  %52 = vmatpush1.bf16.msra.mxu0 0
  %53 = vmatprep.subr.bf16.mxu0 0
  %54 = vmatpush1.bf16.msra.mxu0 0
  %55 = vmatprep.subr.bf16.mxu0 0
  %56 = vmatpush1.bf16.msra.mxu0 0
  %57 = vmatprep.subr.bf16.mxu0 0
  %58 = vmatpush1.bf16.msra.mxu0 0
  %59 = vmatprep.subr.bf16.mxu0 0
  %60 = vmatpush1.bf16.msra.mxu0 0
  %61 = vmatprep.subr.bf16.mxu0 0
  %62 = vmatpush1.bf16.msra.mxu0 %v42
  %63 = vmatprep.subr.bf16.mxu0 0
  %64 = vmatpush1.bf16.msra.mxu0 %v41
  %65 = vmatprep.subr.bf16.mxu0 0
  %66 = vmatpush2.bf16.msra.mxu0 0
  %67 = vmatprep.subr.bf16.mxu0 0
  %68 = vmatpush2.bf16.msra.mxu0 0
  %69 = vmatprep.subr.bf16.mxu0 0
  %70 = vmatpush2.bf16.msra.mxu0 0
  %71 = vmatprep.subr.bf16.mxu0 0
  %72 = vmatpush2.bf16.msra.mxu0 0
  %73 = vmatprep.subr.bf16.mxu0 0
  %74 = vmatpush2.bf16.msra.mxu0 0
  %75 = vmatprep.subr.bf16.mxu0 0
  %76 = vmatpush2.bf16.msra.mxu0 0
  %77 = vmatprep.subr.bf16.mxu0 0
  %78 = vmatpush2.bf16.msra.mxu0 0
  %79 = vmatprep.subr.bf16.mxu0 0
  %80 = vmatpush2.bf16.msra.mxu0 0
  %81 = vmatprep.mubr.bf16.mxu0 0
  %82 = vmatmul.mubr.bf16.gmra.mxu0 %v47
  %v83 = vpop.f32.mrf.mxu0
  %v84 = vadd.f32 %v26, %v83
  %v85 = vpop.f32.mrf.mxu0
  %v86 = vpop.f32.mrf.mxu0
  %v87 = vadd.f32 %v26, %v86
  %v88 = vpop.f32.mrf.mxu0
  %89 = vdwg.mxu0
  %v90 = vpack.c.bf16 %v87, %v84
  %v92 = vunpack.c.l.b16 %v90
  %v93 = vunpack.c.h.b16 %v90
  %v94 = vpack.c.b16 %v92, %v92
  %v95 = vpack.c.b16 %v93, %v93
  %vm98 = vcmask 781312
  %99 = vst.msk [vmem:[%s3] sm:$0xf] %vm98, %v94
  %100 = vst.msk [vmem:[%s3 + $0x4] sm:$0xf] %vm98, %v95
  // Predicated region
  $region14: #{multi_head_attention_forward.3} parent=0 // pred_check
    _
  $region15: #{multi_head_attention_forward.3} parent=0 // pred_check_branch
    %102 = sbr.rel (0) target = $region17
  $region16: #{multi_head_attention_forward.3} parent=0 // pred_region
    _
  $region17: #{multi_head_attention_forward.3} parent=0 // pred_fallthru
    _
  // Predicated region
  $region18: #{multi_head_attention_forward.3} parent=0 // pred_check
    _
  $region19: #{multi_head_attention_forward.3} parent=0 // pred_check_branch
    %104 = sbr.rel (0) target = $region21
  $region20: #{multi_head_attention_forward.3} parent=0 // pred_region
    _
  $region21: #{multi_head_attention_forward.3} parent=0 // pred_fallthru
    _

// kernel: multi_head_attention_forward.4
$region0: #{multi_head_attention_forward.4}
  #allocation0 [shape = 'u32[]', space=smem, size = 0x4, offset = 0x4, fixed_abs, tag = 'smem constant byte address 0x4 - core index']
  #allocation1 [shape = 'u32[144,128]{1,0:T(1,128)}', space=vmem, size = 0x12000, scoped, tag = 'internal scratch']
  %s0 = inlined_call_operand.vmem [shape: bf16[8,2,3,4,8], index: 0, kind: input, shape index: {}, may-alias: {0,1,2}]
  %s1 = inlined_call_operand.vmem [shape: bf16[8,2,3,4,8], index: 1, kind: input, shape index: {}, may-alias: {0,1,2}]
  %s2 = inlined_call_operand.vmem [shape: bf16[8,2,3,4,8], index: 2, kind: input, shape index: {}, may-alias: {0,1,2}]
  %s3 = inlined_call_operand.vmem [shape: f32[2,1,8], index: 3, kind: input, shape index: {}]
  %s4 = inlined_call_operand.vmem [shape: bf16[8,2,4,8], index: 4, kind: output, shape index: {0}]
  %s5 = inlined_call_operand.hbm [shape: f32[2,8,8], index: 5, kind: output, shape index: {1}]
  %6 = xla_tuple %s4, %s5
  %s7 = sld [smem:[#allocation0]]
  $region217: #{multi_head_attention_forward.4} parent=0
    _
  %s9 = ssub.s32 1, %s7
  %s10 = scalar_select 0, %s9, %s7
  $region1: #{multi_head_attention_forward.4} parent=0
    #allocation2 [shape = 'u8[16384]{0}', space=vmem, size = 0x4000, scoped, tag = 'input window, operand 0']
    #allocation3 [shape = 'u8[16384]{0}', space=vmem, size = 0x4000, scoped, tag = 'input window, operand 1']
    #allocation4 [shape = 'u8[16384]{0}', space=vmem, size = 0x4000, scoped, tag = 'input window, operand 2']
    #allocation5 [shape = 'u8[16384]{0}', space=vmem, size = 0x4000, scoped, tag = 'output window, operand 0']
    #allocation6 [shape = 'u8[8192]{0}', space=vmem, size = 0x2000, scoped, tag = 'output window, operand 1']
    #allocation7 [shape = 's32[2]{0}', space=sflag, size = 0x8, scoped, tag = 'scoped memory for multi_head_attention_forward.4']
    %11 = vsyncpa [#allocation7], 0
    %s12 = scalar_lea.sflag [#allocation7], 1
    %13 = vsyncpa %s12, 0
    loop: start=0, step=1, limit=4
    $region2: #{multi_head_attention_forward.4} parent=1 // loop_pre_header
      _
    $region3: #{multi_head_attention_forward.4} parent=1 // loop_header
      %s15 = sphi 0, %s19
      %p16 = scmp.ge.s32.totalorder %s15, 4
      %s22 = sphi 0, %s34
      %s23 = sphi 0, %s30
      %s24 = sphi 0, %s22
      %s25 = sphi 0, %s23
      %s26 = sphi 0, %s24
      %s27 = sphi 0, %s25
      %s39 = sphi 0, %s41
      %s42 = sphi 0, %s39
      %s43 = sphi 0, %s42
      %s59 = sphi 0, %s43
      %s65 = sphi 0, %s67
      %s68 = sphi 0, %s65
      %s69 = sphi 0, %s68
      %s85 = sphi 0, %s69
      %s91 = sphi 0, %s93
      %s94 = sphi 0, %s91
      %s95 = sphi 0, %s94
      %s111 = sphi 0, %s95
      %s117 = sphi 0, %s119
      %s120 = sphi 0, %s117
      %s121 = sphi 0, %s120
      %s137 = sphi 0, %s121
      %s145 = sphi 0, %s147
      %s148 = sphi 0, %s145
      %s149 = sphi 0, %s148
      %s165 = sphi 0, %s149
      %s173 = sphi 0, %s175
      %s176 = sphi 0, %s173
      %s177 = sphi 0, %s176
      %s193 = sphi 0, %s177
    $region4: #{multi_head_attention_forward.4} parent=1 // loop_header_branch
      %18 = sbr.rel (%p16) target = $region8
    $region5: #{multi_head_attention_forward.4} parent=1 // loop_body
      %s20 = ssub.s32 %s15, 1
      %s21 = ssub.s32 %s15, 2
      %s28 = sadd.s32 1, %s23
      %p29 = scmp.ge.s32.totalorder %s28, 1
      %s30 = scalar_select %p29, 0, %s28
      %s31 = sadd.s32 1, %s22
      %s32 = scalar_select %p29, %s31, %s22
      %p33 = scmp.ge.s32.totalorder %s32, 2
      %s34 = scalar_select %p33, 0, %s32
      %s35 = ssub.s32 %s23, %s30
      %s36 = ssub.s32 %s22, %s34
      %s37 = sor.u32 %s35, %s36
      %p38 = scmp.eq.s32.totalorder %s37, 0
      %s40 = sadd.s32 %s39, 1
      %s41 = scalar_select %p38, %s39, %s40
      %p44 = pneg %p38
      %p45 = scmp.eq.s32.totalorder %s15, 1
      %p46 = por %p44, %p45
      %p47 = scmp.ne.s32.totalorder %s39, %s42
      %p48 = scmp.eq.s32.totalorder %s15, 0
      %p49 = por %p47, %p48
      %p50 = scmp.ne.s32.totalorder %s39, %s42
      %p51 = scmp.eq.s32.totalorder %s20, 1
      %p52 = por %p50, %p51
      %p53 = scmp.ne.s32.totalorder %s42, %s43
      %p54 = scmp.eq.s32.totalorder %s20, 0
      %p55 = por %p53, %p54
      %p56 = scmp.ne.s32.totalorder %s42, %s43
      %p57 = scmp.eq.s32.totalorder %s21, 1
      %p58 = por %p56, %p57
      %p60 = scmp.ne.s32.totalorder %s43, %s59
      %p61 = scmp.eq.s32.totalorder %s21, 0
      %p62 = por %p60, %p61
      %s63 = ssub.s32 %s22, %s34
      %p64 = scmp.eq.s32.totalorder %s63, 0
      %s66 = sadd.s32 %s65, 1
      %s67 = scalar_select %p64, %s65, %s66
      %p70 = pneg %p64
      %p71 = scmp.eq.s32.totalorder %s15, 1
      %p72 = por %p70, %p71
      %p73 = scmp.ne.s32.totalorder %s65, %s68
      %p74 = scmp.eq.s32.totalorder %s15, 0
      %p75 = por %p73, %p74
      %p76 = scmp.ne.s32.totalorder %s65, %s68
      %p77 = scmp.eq.s32.totalorder %s20, 1
      %p78 = por %p76, %p77
      %p79 = scmp.ne.s32.totalorder %s68, %s69
      %p80 = scmp.eq.s32.totalorder %s20, 0
      %p81 = por %p79, %p80
      %p82 = scmp.ne.s32.totalorder %s68, %s69
      %p83 = scmp.eq.s32.totalorder %s21, 1
      %p84 = por %p82, %p83
      %p86 = scmp.ne.s32.totalorder %s69, %s85
      %p87 = scmp.eq.s32.totalorder %s21, 0
      %p88 = por %p86, %p87
      %s89 = ssub.s32 %s22, %s34
      %p90 = scmp.eq.s32.totalorder %s89, 0
      %s92 = sadd.s32 %s91, 1
      %s93 = scalar_select %p90, %s91, %s92
      %p96 = pneg %p90
      %p97 = scmp.eq.s32.totalorder %s15, 1
      %p98 = por %p96, %p97
      %p99 = scmp.ne.s32.totalorder %s91, %s94
      %p100 = scmp.eq.s32.totalorder %s15, 0
      %p101 = por %p99, %p100
      %p102 = scmp.ne.s32.totalorder %s91, %s94
      %p103 = scmp.eq.s32.totalorder %s20, 1
      %p104 = por %p102, %p103
      %p105 = scmp.ne.s32.totalorder %s94, %s95
      %p106 = scmp.eq.s32.totalorder %s20, 0
      %p107 = por %p105, %p106
      %p108 = scmp.ne.s32.totalorder %s94, %s95
      %p109 = scmp.eq.s32.totalorder %s21, 1
      %p110 = por %p108, %p109
      %p112 = scmp.ne.s32.totalorder %s95, %s111
      %p113 = scmp.eq.s32.totalorder %s21, 0
      %p114 = por %p112, %p113
      %s115 = ssub.s32 %s22, %s34
      %p116 = scmp.eq.s32.totalorder %s115, 0
      %s118 = sadd.s32 %s117, 1
      %s119 = scalar_select %p116, %s117, %s118
      %p122 = pneg %p116
      %p123 = scmp.eq.s32.totalorder %s15, 1
      %p124 = por %p122, %p123
      %p125 = scmp.ne.s32.totalorder %s117, %s120
      %p126 = scmp.eq.s32.totalorder %s15, 0
      %p127 = por %p125, %p126
      %p128 = scmp.ne.s32.totalorder %s117, %s120
      %p129 = scmp.eq.s32.totalorder %s20, 1
      %p130 = por %p128, %p129
      %p131 = scmp.ne.s32.totalorder %s120, %s121
      %p132 = scmp.eq.s32.totalorder %s20, 0
      %p133 = por %p131, %p132
      %p134 = scmp.ne.s32.totalorder %s120, %s121
      %p135 = scmp.eq.s32.totalorder %s21, 1
      %p136 = por %p134, %p135
      %p138 = scmp.ne.s32.totalorder %s121, %s137
      %p139 = scmp.eq.s32.totalorder %s21, 0
      %p140 = por %p138, %p139
      %s141 = ssub.s32 %s23, %s30
      %s142 = ssub.s32 %s22, %s34
      %s143 = sor.u32 %s141, %s142
      %p144 = scmp.eq.s32.totalorder %s143, 0
      %s146 = sadd.s32 %s145, 1
      %s147 = scalar_select %p144, %s145, %s146
      %p150 = pneg %p144
      %p151 = scmp.eq.s32.totalorder %s15, 1
      %p152 = por %p150, %p151
      %p153 = scmp.ne.s32.totalorder %s145, %s148
      %p154 = scmp.eq.s32.totalorder %s15, 0
      %p155 = por %p153, %p154
      %p156 = scmp.ne.s32.totalorder %s145, %s148
      %p157 = scmp.eq.s32.totalorder %s20, 1
      %p158 = por %p156, %p157
      %p159 = scmp.ne.s32.totalorder %s148, %s149
      %p160 = scmp.eq.s32.totalorder %s20, 0
      %p161 = por %p159, %p160
      %p162 = scmp.ne.s32.totalorder %s148, %s149
      %p163 = scmp.eq.s32.totalorder %s21, 1
      %p164 = por %p162, %p163
      %p166 = scmp.ne.s32.totalorder %s149, %s165
      %p167 = scmp.eq.s32.totalorder %s21, 0
      %p168 = por %p166, %p167
      %s169 = ssub.s32 %s22, %s34
      %s170 = ssub.s32 %s23, %s30
      %s171 = sor.u32 %s169, %s170
      %p172 = scmp.eq.s32.totalorder %s171, 0
      %s174 = sadd.s32 %s173, 1
      %s175 = scalar_select %p172, %s173, %s174
      %p178 = pneg %p172
      %p179 = scmp.eq.s32.totalorder %s15, 1
      %p180 = por %p178, %p179
      %p181 = scmp.ne.s32.totalorder %s173, %s176
      %p182 = scmp.eq.s32.totalorder %s15, 0
      %p183 = por %p181, %p182
      %p184 = scmp.ne.s32.totalorder %s173, %s176
      %p185 = scmp.eq.s32.totalorder %s20, 1
      %p186 = por %p184, %p185
      %p187 = scmp.ne.s32.totalorder %s176, %s177
      %p188 = scmp.eq.s32.totalorder %s20, 0
      %p189 = por %p187, %p188
      %p190 = scmp.ne.s32.totalorder %s176, %s177
      %p191 = scmp.eq.s32.totalorder %s21, 1
      %p192 = por %p190, %p191
      %p194 = scmp.ne.s32.totalorder %s177, %s193
      %p195 = scmp.eq.s32.totalorder %s21, 0
      %p196 = por %p194, %p195
      %p197 = scmp.le.s32.totalorder 1, %s15
      %p198 = scmp.lt.s32.totalorder %s15, 3
      %p199 = pnand %p197, %p198
      %p200 = pneg %p199
      // Predicated region
      $region9: #{multi_head_attention_forward.4} parent=5 // pred_check
        _
      $region10: #{multi_head_attention_forward.4} parent=5 // pred_check_branch
        %202 = sbr.rel (%p199) target = $region12
      $region11: #{multi_head_attention_forward.4} parent=5 // pred_region
        %s203 = ssub.s32 %s15, 1
      $region12: #{multi_head_attention_forward.4} parent=5 // pred_fallthru
        _
      %p204 = scmp.lt.s32.totalorder %s15, 2
      // Predicated region
      $region13: #{multi_head_attention_forward.4} parent=5 // pred_check
        %p205 = pneg %p204
      $region14: #{multi_head_attention_forward.4} parent=5 // pred_check_branch
        %207 = sbr.rel (%p205) target = $region16
      $region15: #{multi_head_attention_forward.4} parent=5 // pred_region
        // Predicated region
        $region17: #{multi_head_attention_forward.4} parent=15 // pred_check
          %p208 = pneg %p49
        $region18: #{multi_head_attention_forward.4} parent=15 // pred_check_branch
          %210 = sbr.rel (%p208) target = $region20
        $region19: #{multi_head_attention_forward.4} parent=15 // pred_region
          %s211 = sand.u32 %s39, 1
          %s212 = sand.u32 %s39, 1
          %s213 = smul.addr %s212, 16
          %s214 = scalar_lea.vmem [#allocation2], %s213
          %s215 = smul.u32 8, %s23
          %s216 = smul.addr %s22, 3
          %s217 = smul.addr %s215, 6
          %s218 = sadd.s32 %s216, %s217
          %s219 = smul.addr %s218, 2
          %s220 = scalar_lea.vmem %s0, %s219
          // Predicated region
          $region21: #{multi_head_attention_forward.4} parent=19 // pred_check
            _
          $region22: #{multi_head_attention_forward.4} parent=19 // pred_check_branch
            %222 = sbr.rel (0) target = $region24
          $region23: #{multi_head_attention_forward.4} parent=19 // pred_region
            // Predicated region
            $region25: #{multi_head_attention_forward.4} parent=23 // pred_check
              _
            $region26: #{multi_head_attention_forward.4} parent=23 // pred_check_branch
              %224 = sbr.rel target = $region28
            $region27: #{multi_head_attention_forward.4} parent=23 // pred_region
              // Predicated region
              $region40: #{multi_head_attention_forward.4} parent=27 // pred_check
                _
              $region41: #{multi_head_attention_forward.4} parent=27 // pred_check_branch
                %254 = sbr.rel (0) target = $region43
              $region42: #{multi_head_attention_forward.4} parent=27 // pred_region
                loop: start=0, step=1, limit=1
                $region44: #{multi_head_attention_forward.4} parent=42 // loop_pre_header
                  _
                $region45: #{multi_head_attention_forward.4} parent=42 // loop_header
                  %s256 = sphi 0, %s260
                  %p257 = scmp.ge.s32.totalorder %s256, 1
                  %s261 = sphi %s220, %s220
                  %s262 = sphi %s214, %s214
                $region46: #{multi_head_attention_forward.4} parent=42 // loop_header_branch
                  %259 = sbr.rel (%p257) target = $region50
                $region47: #{multi_head_attention_forward.4} parent=42 // loop_body
                  _
                $region48: #{multi_head_attention_forward.4} parent=42 // loop_footer
                  %s260 = sadd.s32 1, %s256
                $region49: #{multi_head_attention_forward.4} parent=42 // loop_footer_branch
                  %255 = sbr.rel target = $region45
                $region50: #{multi_head_attention_forward.4} parent=42 // loop_exit
                  _
                %s264 = ssub.s32 4, 1
                loop: start=0, step=1, limit=1
                $region51: #{multi_head_attention_forward.4} parent=42 // loop_pre_header
                  _
                $region52: #{multi_head_attention_forward.4} parent=42 // loop_header
                  %s266 = sphi 0, %s270
                  %p267 = scmp.ge.s32.totalorder %s266, 1
                  %s271 = sphi %s220, %s220
                  %s272 = sphi %s214, %s214
                $region53: #{multi_head_attention_forward.4} parent=42 // loop_header_branch
                  %269 = sbr.rel (%p267) target = $region57
                $region54: #{multi_head_attention_forward.4} parent=42 // loop_body
                  %v273 = vld [vmem:[%s271] sm:%s264]
                  %274 = vst [vmem:[%s272] sm:%s264] %v273
                  %v275 = vld [vmem:[%s271 + $0xc] sm:%s264]
                  %276 = vst [vmem:[%s272 + $0x2] sm:%s264] %v275
                  %v277 = vld [vmem:[%s271 + $0x18] sm:%s264]
                  %278 = vst [vmem:[%s272 + $0x4] sm:%s264] %v277
                  %v279 = vld [vmem:[%s271 + $0x24] sm:%s264]
                  %280 = vst [vmem:[%s272 + $0x6] sm:%s264] %v279
                  %v281 = vld [vmem:[%s271 + $0x30] sm:%s264]
                  %282 = vst [vmem:[%s272 + $0x8] sm:%s264] %v281
                  %v283 = vld [vmem:[%s271 + $0x3c] sm:%s264]
                  %284 = vst [vmem:[%s272 + $0xa] sm:%s264] %v283
                  %v285 = vld [vmem:[%s271 + $0x48] sm:%s264]
                  %286 = vst [vmem:[%s272 + $0xc] sm:%s264] %v285
                  %v287 = vld [vmem:[%s271 + $0x54] sm:%s264]
                  %288 = vst [vmem:[%s272 + $0xe] sm:%s264] %v287
                $region55: #{multi_head_attention_forward.4} parent=42 // loop_footer
                  %s270 = sadd.s32 1, %s266
                $region56: #{multi_head_attention_forward.4} parent=42 // loop_footer_branch
                  %265 = sbr.rel target = $region52
                $region57: #{multi_head_attention_forward.4} parent=42 // loop_exit
                  _
              $region43: #{multi_head_attention_forward.4} parent=27 // pred_fallthru
                _
            $region28: #{multi_head_attention_forward.4} parent=23 // pred_fallthru
              _
            // Predicated region
            $region29: #{multi_head_attention_forward.4} parent=23 // pred_check
              _
            $region30: #{multi_head_attention_forward.4} parent=23 // pred_check_branch
              %226 = sbr.rel (0) target = $region32
            $region31: #{multi_head_attention_forward.4} parent=23 // pred_region
              %s228 = ssub.s32 4, 1
              loop: start=0, step=1, limit=1
              $region33: #{multi_head_attention_forward.4} parent=31 // loop_pre_header
                _
              $region34: #{multi_head_attention_forward.4} parent=31 // loop_header
                %s230 = sphi 0, %s234
                %p231 = scmp.ge.s32.totalorder %s230, 1
                %s235 = sphi %s220, %s220
                %s236 = sphi %s214, %s214
              $region35: #{multi_head_attention_forward.4} parent=31 // loop_header_branch
                %233 = sbr.rel (%p231) target = $region39
              $region36: #{multi_head_attention_forward.4} parent=31 // loop_body
                %v237 = vld [vmem:[%s235] sm:%s228]
                %238 = vst [vmem:[%s236] sm:%s228] %v237
                %v239 = vld [vmem:[%s235 + $0xc] sm:%s228]
                %240 = vst [vmem:[%s236 + $0x2] sm:%s228] %v239
                %v241 = vld [vmem:[%s235 + $0x18] sm:%s228]
                %242 = vst [vmem:[%s236 + $0x4] sm:%s228] %v241
                %v243 = vld [vmem:[%s235 + $0x24] sm:%s228]
                %244 = vst [vmem:[%s236 + $0x6] sm:%s228] %v243
                %v245 = vld [vmem:[%s235 + $0x30] sm:%s228]
                %246 = vst [vmem:[%s236 + $0x8] sm:%s228] %v245
                %v247 = vld [vmem:[%s235 + $0x3c] sm:%s228]
                %248 = vst [vmem:[%s236 + $0xa] sm:%s228] %v247
                %v249 = vld [vmem:[%s235 + $0x48] sm:%s228]
                %250 = vst [vmem:[%s236 + $0xc] sm:%s228] %v249
                %v251 = vld [vmem:[%s235 + $0x54] sm:%s228]
                %252 = vst [vmem:[%s236 + $0xe] sm:%s228] %v251
              $region37: #{multi_head_attention_forward.4} parent=31 // loop_footer
                %s234 = sadd.s32 1, %s230
              $region38: #{multi_head_attention_forward.4} parent=31 // loop_footer_branch
                %229 = sbr.rel target = $region34
              $region39: #{multi_head_attention_forward.4} parent=31 // loop_exit
                _
            $region32: #{multi_head_attention_forward.4} parent=23 // pred_fallthru
              _
          $region24: #{multi_head_attention_forward.4} parent=19 // pred_fallthru
            _
          %289 = vnop
        $region20: #{multi_head_attention_forward.4} parent=15 // pred_fallthru
          _
        // Predicated region
        $region58: #{multi_head_attention_forward.4} parent=15 // pred_check
          %p290 = pneg %p75
        $region59: #{multi_head_attention_forward.4} parent=15 // pred_check_branch
          %292 = sbr.rel (%p290) target = $region61
        $region60: #{multi_head_attention_forward.4} parent=15 // pred_region
          %s293 = sand.u32 %s65, 1
          %s294 = sand.u32 %s65, 1
          %s295 = smul.addr %s294, 16
          %s296 = scalar_lea.vmem [#allocation3], %s295
          %s297 = smul.addr %s22, 3
          %s298 = sadd.s32 1, %s297
          %s299 = smul.addr %s298, 2
          %s300 = scalar_lea.vmem %s1, %s299
          // Predicated region
          $region62: #{multi_head_attention_forward.4} parent=60 // pred_check
            _
          $region63: #{multi_head_attention_forward.4} parent=60 // pred_check_branch
            %302 = sbr.rel (0) target = $region65
          $region64: #{multi_head_attention_forward.4} parent=60 // pred_region
            // Predicated region
            $region66: #{multi_head_attention_forward.4} parent=64 // pred_check
              _
            $region67: #{multi_head_attention_forward.4} parent=64 // pred_check_branch
              %304 = sbr.rel target = $region69
            $region68: #{multi_head_attention_forward.4} parent=64 // pred_region
              // Predicated region
              $region81: #{multi_head_attention_forward.4} parent=68 // pred_check
                _
              $region82: #{multi_head_attention_forward.4} parent=68 // pred_check_branch
                %334 = sbr.rel (0) target = $region84
              $region83: #{multi_head_attention_forward.4} parent=68 // pred_region
                loop: start=0, step=1, limit=1
                $region85: #{multi_head_attention_forward.4} parent=83 // loop_pre_header
                  _
                $region86: #{multi_head_attention_forward.4} parent=83 // loop_header
                  %s336 = sphi 0, %s340
                  %p337 = scmp.ge.s32.totalorder %s336, 1
                  %s341 = sphi %s300, %s300
                  %s342 = sphi %s296, %s296
                $region87: #{multi_head_attention_forward.4} parent=83 // loop_header_branch
                  %339 = sbr.rel (%p337) target = $region91
                $region88: #{multi_head_attention_forward.4} parent=83 // loop_body
                  _
                $region89: #{multi_head_attention_forward.4} parent=83 // loop_footer
                  %s340 = sadd.s32 1, %s336
                $region90: #{multi_head_attention_forward.4} parent=83 // loop_footer_branch
                  %335 = sbr.rel target = $region86
                $region91: #{multi_head_attention_forward.4} parent=83 // loop_exit
                  _
                %s344 = ssub.s32 4, 1
                loop: start=0, step=1, limit=1
                $region92: #{multi_head_attention_forward.4} parent=83 // loop_pre_header
                  _
                $region93: #{multi_head_attention_forward.4} parent=83 // loop_header
                  %s346 = sphi 0, %s350
                  %p347 = scmp.ge.s32.totalorder %s346, 1
                  %s351 = sphi %s300, %s300
                  %s352 = sphi %s296, %s296
                $region94: #{multi_head_attention_forward.4} parent=83 // loop_header_branch
                  %349 = sbr.rel (%p347) target = $region98
                $region95: #{multi_head_attention_forward.4} parent=83 // loop_body
                  %v353 = vld [vmem:[%s351] sm:%s344]
                  %354 = vst [vmem:[%s352] sm:%s344] %v353
                  %v355 = vld [vmem:[%s351 + $0xc] sm:%s344]
                  %356 = vst [vmem:[%s352 + $0x2] sm:%s344] %v355
                  %v357 = vld [vmem:[%s351 + $0x18] sm:%s344]
                  %358 = vst [vmem:[%s352 + $0x4] sm:%s344] %v357
                  %v359 = vld [vmem:[%s351 + $0x24] sm:%s344]
                  %360 = vst [vmem:[%s352 + $0x6] sm:%s344] %v359
                  %v361 = vld [vmem:[%s351 + $0x30] sm:%s344]
                  %362 = vst [vmem:[%s352 + $0x8] sm:%s344] %v361
                  %v363 = vld [vmem:[%s351 + $0x3c] sm:%s344]
                  %364 = vst [vmem:[%s352 + $0xa] sm:%s344] %v363
                  %v365 = vld [vmem:[%s351 + $0x48] sm:%s344]
                  %366 = vst [vmem:[%s352 + $0xc] sm:%s344] %v365
                  %v367 = vld [vmem:[%s351 + $0x54] sm:%s344]
                  %368 = vst [vmem:[%s352 + $0xe] sm:%s344] %v367
                $region96: #{multi_head_attention_forward.4} parent=83 // loop_footer
                  %s350 = sadd.s32 1, %s346
                $region97: #{multi_head_attention_forward.4} parent=83 // loop_footer_branch
                  %345 = sbr.rel target = $region93
                $region98: #{multi_head_attention_forward.4} parent=83 // loop_exit
                  _
              $region84: #{multi_head_attention_forward.4} parent=68 // pred_fallthru
                _
            $region69: #{multi_head_attention_forward.4} parent=64 // pred_fallthru
              _
            // Predicated region
            $region70: #{multi_head_attention_forward.4} parent=64 // pred_check
              _
            $region71: #{multi_head_attention_forward.4} parent=64 // pred_check_branch
              %306 = sbr.rel (0) target = $region73
            $region72: #{multi_head_attention_forward.4} parent=64 // pred_region
              %s308 = ssub.s32 4, 1
              loop: start=0, step=1, limit=1
              $region74: #{multi_head_attention_forward.4} parent=72 // loop_pre_header
                _
              $region75: #{multi_head_attention_forward.4} parent=72 // loop_header
                %s310 = sphi 0, %s314
                %p311 = scmp.ge.s32.totalorder %s310, 1
                %s315 = sphi %s300, %s300
                %s316 = sphi %s296, %s296
              $region76: #{multi_head_attention_forward.4} parent=72 // loop_header_branch
                %313 = sbr.rel (%p311) target = $region80
              $region77: #{multi_head_attention_forward.4} parent=72 // loop_body
                %v317 = vld [vmem:[%s315] sm:%s308]
                %318 = vst [vmem:[%s316] sm:%s308] %v317
                %v319 = vld [vmem:[%s315 + $0xc] sm:%s308]
                %320 = vst [vmem:[%s316 + $0x2] sm:%s308] %v319
                %v321 = vld [vmem:[%s315 + $0x18] sm:%s308]
                %322 = vst [vmem:[%s316 + $0x4] sm:%s308] %v321
                %v323 = vld [vmem:[%s315 + $0x24] sm:%s308]
                %324 = vst [vmem:[%s316 + $0x6] sm:%s308] %v323
                %v325 = vld [vmem:[%s315 + $0x30] sm:%s308]
                %326 = vst [vmem:[%s316 + $0x8] sm:%s308] %v325
                %v327 = vld [vmem:[%s315 + $0x3c] sm:%s308]
                %328 = vst [vmem:[%s316 + $0xa] sm:%s308] %v327
                %v329 = vld [vmem:[%s315 + $0x48] sm:%s308]
                %330 = vst [vmem:[%s316 + $0xc] sm:%s308] %v329
                %v331 = vld [vmem:[%s315 + $0x54] sm:%s308]
                %332 = vst [vmem:[%s316 + $0xe] sm:%s308] %v331
              $region78: #{multi_head_attention_forward.4} parent=72 // loop_footer
                %s314 = sadd.s32 1, %s310
              $region79: #{multi_head_attention_forward.4} parent=72 // loop_footer_branch
                %309 = sbr.rel target = $region75
              $region80: #{multi_head_attention_forward.4} parent=72 // loop_exit
                _
            $region73: #{multi_head_attention_forward.4} parent=64 // pred_fallthru
              _
          $region65: #{multi_head_attention_forward.4} parent=60 // pred_fallthru
            _
          %369 = vnop
        $region61: #{multi_head_attention_forward.4} parent=15 // pred_fallthru
          _
        // Predicated region
        $region99: #{multi_head_attention_forward.4} parent=15 // pred_check
          %p370 = pneg %p101
        $region100: #{multi_head_attention_forward.4} parent=15 // pred_check_branch
          %372 = sbr.rel (%p370) target = $region102
        $region101: #{multi_head_attention_forward.4} parent=15 // pred_region
          %s373 = sand.u32 %s91, 1
          %s374 = sand.u32 %s91, 1
          %s375 = smul.addr %s374, 16
          %s376 = scalar_lea.vmem [#allocation4], %s375
          %s377 = smul.addr %s22, 3
          %s378 = sadd.s32 2, %s377
          %s379 = smul.addr %s378, 2
          %s380 = scalar_lea.vmem %s2, %s379
          // Predicated region
          $region103: #{multi_head_attention_forward.4} parent=101 // pred_check
            _
          $region104: #{multi_head_attention_forward.4} parent=101 // pred_check_branch
            %382 = sbr.rel (0) target = $region106
          $region105: #{multi_head_attention_forward.4} parent=101 // pred_region
            // Predicated region
            $region107: #{multi_head_attention_forward.4} parent=105 // pred_check
              _
            $region108: #{multi_head_attention_forward.4} parent=105 // pred_check_branch
              %384 = sbr.rel target = $region110
            $region109: #{multi_head_attention_forward.4} parent=105 // pred_region
              // Predicated region
              $region122: #{multi_head_attention_forward.4} parent=109 // pred_check
                _
              $region123: #{multi_head_attention_forward.4} parent=109 // pred_check_branch
                %414 = sbr.rel (0) target = $region125
              $region124: #{multi_head_attention_forward.4} parent=109 // pred_region
                loop: start=0, step=1, limit=1
                $region126: #{multi_head_attention_forward.4} parent=124 // loop_pre_header
                  _
                $region127: #{multi_head_attention_forward.4} parent=124 // loop_header
                  %s416 = sphi 0, %s420
                  %p417 = scmp.ge.s32.totalorder %s416, 1
                  %s421 = sphi %s380, %s380
                  %s422 = sphi %s376, %s376
                $region128: #{multi_head_attention_forward.4} parent=124 // loop_header_branch
                  %419 = sbr.rel (%p417) target = $region132
                $region129: #{multi_head_attention_forward.4} parent=124 // loop_body
                  _
                $region130: #{multi_head_attention_forward.4} parent=124 // loop_footer
                  %s420 = sadd.s32 1, %s416
                $region131: #{multi_head_attention_forward.4} parent=124 // loop_footer_branch
                  %415 = sbr.rel target = $region127
                $region132: #{multi_head_attention_forward.4} parent=124 // loop_exit
                  _
                %s424 = ssub.s32 4, 1
                loop: start=0, step=1, limit=1
                $region133: #{multi_head_attention_forward.4} parent=124 // loop_pre_header
                  _
                $region134: #{multi_head_attention_forward.4} parent=124 // loop_header
                  %s426 = sphi 0, %s430
                  %p427 = scmp.ge.s32.totalorder %s426, 1
                  %s431 = sphi %s380, %s380
                  %s432 = sphi %s376, %s376
                $region135: #{multi_head_attention_forward.4} parent=124 // loop_header_branch
                  %429 = sbr.rel (%p427) target = $region139
                $region136: #{multi_head_attention_forward.4} parent=124 // loop_body
                  %v433 = vld [vmem:[%s431] sm:%s424]
                  %434 = vst [vmem:[%s432] sm:%s424] %v433
                  %v435 = vld [vmem:[%s431 + $0xc] sm:%s424]
                  %436 = vst [vmem:[%s432 + $0x2] sm:%s424] %v435
                  %v437 = vld [vmem:[%s431 + $0x18] sm:%s424]
                  %438 = vst [vmem:[%s432 + $0x4] sm:%s424] %v437
                  %v439 = vld [vmem:[%s431 + $0x24] sm:%s424]
                  %440 = vst [vmem:[%s432 + $0x6] sm:%s424] %v439
                  %v441 = vld [vmem:[%s431 + $0x30] sm:%s424]
                  %442 = vst [vmem:[%s432 + $0x8] sm:%s424] %v441
                  %v443 = vld [vmem:[%s431 + $0x3c] sm:%s424]
                  %444 = vst [vmem:[%s432 + $0xa] sm:%s424] %v443
                  %v445 = vld [vmem:[%s431 + $0x48] sm:%s424]
                  %446 = vst [vmem:[%s432 + $0xc] sm:%s424] %v445
                  %v447 = vld [vmem:[%s431 + $0x54] sm:%s424]
                  %448 = vst [vmem:[%s432 + $0xe] sm:%s424] %v447
                $region137: #{multi_head_attention_forward.4} parent=124 // loop_footer
                  %s430 = sadd.s32 1, %s426
                $region138: #{multi_head_attention_forward.4} parent=124 // loop_footer_branch
                  %425 = sbr.rel target = $region134
                $region139: #{multi_head_attention_forward.4} parent=124 // loop_exit
                  _
              $region125: #{multi_head_attention_forward.4} parent=109 // pred_fallthru
                _
            $region110: #{multi_head_attention_forward.4} parent=105 // pred_fallthru
              _
            // Predicated region
            $region111: #{multi_head_attention_forward.4} parent=105 // pred_check
              _
            $region112: #{multi_head_attention_forward.4} parent=105 // pred_check_branch
              %386 = sbr.rel (0) target = $region114
            $region113: #{multi_head_attention_forward.4} parent=105 // pred_region
              %s388 = ssub.s32 4, 1
              loop: start=0, step=1, limit=1
              $region115: #{multi_head_attention_forward.4} parent=113 // loop_pre_header
                _
              $region116: #{multi_head_attention_forward.4} parent=113 // loop_header
                %s390 = sphi 0, %s394
                %p391 = scmp.ge.s32.totalorder %s390, 1
                %s395 = sphi %s380, %s380
                %s396 = sphi %s376, %s376
              $region117: #{multi_head_attention_forward.4} parent=113 // loop_header_branch
                %393 = sbr.rel (%p391) target = $region121
              $region118: #{multi_head_attention_forward.4} parent=113 // loop_body
                %v397 = vld [vmem:[%s395] sm:%s388]
                %398 = vst [vmem:[%s396] sm:%s388] %v397
                %v399 = vld [vmem:[%s395 + $0xc] sm:%s388]
                %400 = vst [vmem:[%s396 + $0x2] sm:%s388] %v399
                %v401 = vld [vmem:[%s395 + $0x18] sm:%s388]
                %402 = vst [vmem:[%s396 + $0x4] sm:%s388] %v401
                %v403 = vld [vmem:[%s395 + $0x24] sm:%s388]
                %404 = vst [vmem:[%s396 + $0x6] sm:%s388] %v403
                %v405 = vld [vmem:[%s395 + $0x30] sm:%s388]
                %406 = vst [vmem:[%s396 + $0x8] sm:%s388] %v405
                %v407 = vld [vmem:[%s395 + $0x3c] sm:%s388]
                %408 = vst [vmem:[%s396 + $0xa] sm:%s388] %v407
                %v409 = vld [vmem:[%s395 + $0x48] sm:%s388]
                %410 = vst [vmem:[%s396 + $0xc] sm:%s388] %v409
                %v411 = vld [vmem:[%s395 + $0x54] sm:%s388]
                %412 = vst [vmem:[%s396 + $0xe] sm:%s388] %v411
              $region119: #{multi_head_attention_forward.4} parent=113 // loop_footer
                %s394 = sadd.s32 1, %s390
              $region120: #{multi_head_attention_forward.4} parent=113 // loop_footer_branch
                %389 = sbr.rel target = $region116
              $region121: #{multi_head_attention_forward.4} parent=113 // loop_exit
                _
            $region114: #{multi_head_attention_forward.4} parent=105 // pred_fallthru
              _
          $region106: #{multi_head_attention_forward.4} parent=101 // pred_fallthru
            _
          %449 = vnop
        $region102: #{multi_head_attention_forward.4} parent=15 // pred_fallthru
          _
        // Predicated region
        $region140: #{multi_head_attention_forward.4} parent=15 // pred_check
          %p450 = pneg %p127
        $region141: #{multi_head_attention_forward.4} parent=15 // pred_check_branch
          %452 = sbr.rel (%p450) target = $region143
        $region142: #{multi_head_attention_forward.4} parent=15 // pred_region
          %p453 = scmp.lt.s32.totalorder %s22, 1
          %s454 = scalar_select %p453, %s22, 1
          %s455 = scalar_lea.vmem %s3, %s454
        $region143: #{multi_head_attention_forward.4} parent=15 // pred_fallthru
          _
      $region16: #{multi_head_attention_forward.4} parent=5 // pred_fallthru
        _
      %p456 = scmp.le.s32.totalorder 1, %s15
      %p457 = scmp.lt.s32.totalorder %s15, 3
      %p458 = pnand %p456, %p457
      %p459 = pneg %p458
      // Predicated region
      $region144: #{multi_head_attention_forward.4} parent=5 // pred_check
        _
      $region145: #{multi_head_attention_forward.4} parent=5 // pred_check_branch
        %461 = sbr.rel (%p458) target = $region147
      $region146: #{multi_head_attention_forward.4} parent=5 // pred_region
        %s462 = ssub.s32 %s15, 1
        %s463 = sand.u32 %s42, 1
        %s464 = sand.u32 %s42, 1
        %s465 = smul.addr %s464, 16
        %s466 = scalar_lea.vmem [#allocation2], %s465
        // Predicated region
        $region148: #{multi_head_attention_forward.4} parent=146 // pred_check
          %p467 = pneg %p55
        $region149: #{multi_head_attention_forward.4} parent=146 // pred_check_branch
          %469 = sbr.rel (%p467) target = $region151
        $region150: #{multi_head_attention_forward.4} parent=146 // pred_region
          _
        $region151: #{multi_head_attention_forward.4} parent=146 // pred_fallthru
          _
        %s470 = sand.u32 %s68, 1
        %s471 = sand.u32 %s68, 1
        %s472 = smul.addr %s471, 16
        %s473 = scalar_lea.vmem [#allocation3], %s472
        // Predicated region
        $region152: #{multi_head_attention_forward.4} parent=146 // pred_check
          %p474 = pneg %p81
        $region153: #{multi_head_attention_forward.4} parent=146 // pred_check_branch
          %476 = sbr.rel (%p474) target = $region155
        $region154: #{multi_head_attention_forward.4} parent=146 // pred_region
          _
        $region155: #{multi_head_attention_forward.4} parent=146 // pred_fallthru
          _
        %s477 = sand.u32 %s94, 1
        %s478 = sand.u32 %s94, 1
        %s479 = smul.addr %s478, 16
        %s480 = scalar_lea.vmem [#allocation4], %s479
        // Predicated region
        $region156: #{multi_head_attention_forward.4} parent=146 // pred_check
          %p481 = pneg %p107
        $region157: #{multi_head_attention_forward.4} parent=146 // pred_check_branch
          %483 = sbr.rel (%p481) target = $region159
        $region158: #{multi_head_attention_forward.4} parent=146 // pred_region
          _
        $region159: #{multi_head_attention_forward.4} parent=146 // pred_fallthru
          _
        %s484 = sand.u32 %s42, 1
        %s485 = sand.u32 %s42, 1
        %s486 = smul.addr %s485, 16
        %s487 = scalar_lea.vmem [#allocation2], %s486
        %p488 = pneg %p55
        %p489 = pneg %p52
        %s490 = sand.u32 %s68, 1
        %s491 = sand.u32 %s68, 1
        %s492 = smul.addr %s491, 16
        %s493 = scalar_lea.vmem [#allocation3], %s492
        %p494 = pneg %p81
        %p495 = pneg %p78
        %s496 = sand.u32 %s94, 1
        %s497 = sand.u32 %s94, 1
        %s498 = smul.addr %s497, 16
        %s499 = scalar_lea.vmem [#allocation4], %s498
        %p500 = pneg %p107
        %p501 = pneg %p104
        %p502 = scmp.lt.s32.totalorder %s24, 1
        %s503 = scalar_select %p502, %s24, 1
        %s504 = scalar_lea.vmem %s3, %s503
        %p505 = pneg %p133
        %p506 = pneg %p130
        %p507 = pneg %p161
        %p508 = pneg %p158
        %s509 = sand.u32 %s148, 1
        %s510 = sand.u32 %s148, 1
        %s511 = smul.addr %s510, 16
        %s512 = scalar_lea.vmem [#allocation5], %s511
        %p513 = pneg %p189
        %p514 = pneg %p186
        %s515 = sand.u32 %s176, 1
        %s516 = scalar_lea.sflag [#allocation7], %s515
        %s517 = sand.u32 %s176, 1
        %s518 = smul.addr %s517, 8
        %s519 = scalar_lea.vmem [#allocation6], %s518
        %s520 = smul.u32 8, %s25
        %p521 = scmp.lt.s32.totalorder %s24, 1
        %s522 = scalar_select %p521, %s24, 1
        %s523 = scalar_lea.vmem %s3, %s522
        %s524 = smul.u32 8, %s25
        %v526 = vld [vmem:[%s523] sm:$0x1]
        %v527 = vld [vmem:[%s466] sm:$0x1]
        %v528 = vld [vmem:[%s466 + $0x2] sm:$0x1]
        %v529 = vld [vmem:[%s466 + $0x4] sm:$0x1]
        %v530 = vld [vmem:[%s466 + $0x6] sm:$0x1]
        %v531 = vld [vmem:[%s466 + $0x8] sm:$0x1]
        %v532 = vld [vmem:[%s466 + $0xa] sm:$0x1]
        %v533 = vld [vmem:[%s466 + $0xc] sm:$0x1]
        %v534 = vld [vmem:[%s466 + $0xe] sm:$0x1]
        %v535 = vld [vmem:[%s473] sm:$0x1]
        %v536 = vld [vmem:[%s473 + $0x2] sm:$0x1]
        %v537 = vld [vmem:[%s473 + $0x4] sm:$0x1]
        %v538 = vld [vmem:[%s473 + $0x6] sm:$0x1]
        %v539 = vld [vmem:[%s473 + $0x8] sm:$0x1]
        %v540 = vld [vmem:[%s473 + $0xa] sm:$0x1]
        %v541 = vld [vmem:[%s473 + $0xc] sm:$0x1]
        %v542 = vld [vmem:[%s473 + $0xe] sm:$0x1]
        %v543 = vld [vmem:[%s480] sm:$0x1]
        %v544 = vld [vmem:[%s480 + $0x2] sm:$0x1]
        %v545 = vld [vmem:[%s480 + $0x4] sm:$0x1]
        %v546 = vld [vmem:[%s480 + $0x6] sm:$0x1]
        %v547 = vld [vmem:[%s480 + $0x8] sm:$0x1]
        %v548 = vld [vmem:[%s480 + $0xa] sm:$0x1]
        %v549 = vld [vmem:[%s480 + $0xc] sm:$0x1]
        %v550 = vld [vmem:[%s480 + $0xe] sm:$0x1]
        %v560 = vunpack.c.l.s4 1983009808
        %v561 = vunpack.c.0.s8 %v560
        %v562 = vlaneseq
        %v563 = vshrl.u32 %v562, 7
        %v564 = vsub.s32 %v561, %v563
        %v565 = vrot.slane %v527, %v564
        %v567 = vunpack.c.l.s4 1983009808
        %v568 = vunpack.c.0.s8 %v567
        %v569 = vlaneseq
        %v570 = vshrl.u32 %v569, 7
        %v571 = vsub.s32 %v568, %v570
        %v572 = vrot.slane %v528, %v571
        %v574 = vunpack.c.l.s4 1983009808
        %v575 = vunpack.c.0.s8 %v574
        %v576 = vlaneseq
        %v577 = vshrl.u32 %v576, 7
        %v578 = vsub.s32 %v575, %v577
        %v579 = vrot.slane %v529, %v578
        %v581 = vunpack.c.l.s4 1983009808
        %v582 = vunpack.c.0.s8 %v581
        %v583 = vlaneseq
        %v584 = vshrl.u32 %v583, 7
        %v585 = vsub.s32 %v582, %v584
        %v586 = vrot.slane %v530, %v585
        %v588 = vunpack.c.l.s4 1983009808
        %v589 = vunpack.c.0.s8 %v588
        %v590 = vlaneseq
        %v591 = vshrl.u32 %v590, 7
        %v592 = vsub.s32 %v589, %v591
        %v593 = vrot.slane %v531, %v592
        %v595 = vunpack.c.l.s4 1983009808
        %v596 = vunpack.c.0.s8 %v595
        %v597 = vlaneseq
        %v598 = vshrl.u32 %v597, 7
        %v599 = vsub.s32 %v596, %v598
        %v600 = vrot.slane %v532, %v599
        %v602 = vunpack.c.l.s4 1983009808
        %v603 = vunpack.c.0.s8 %v602
        %v604 = vlaneseq
        %v605 = vshrl.u32 %v604, 7
        %v606 = vsub.s32 %v603, %v605
        %v607 = vrot.slane %v533, %v606
        %v609 = vunpack.c.l.s4 1983009808
        %v610 = vunpack.c.0.s8 %v609
        %v611 = vlaneseq
        %v612 = vshrl.u32 %v611, 7
        %v613 = vsub.s32 %v610, %v612
        %v614 = vrot.slane %v534, %v613
        %v615 = vunpack.c.l.b16 %v565
        %v616 = vunpack.c.l.b16 %v572
        %v617 = vunpack.c.l.b16 %v579
        %v618 = vunpack.c.l.b16 %v586
        %v619 = vunpack.c.l.b16 %v593
        %v620 = vunpack.c.l.b16 %v600
        %v621 = vunpack.c.l.b16 %v607
        %v622 = vunpack.c.l.b16 %v614
        %v623 = vrot.slane %v616, 7
        %vm624 = vcmask 1041409
        %v625 = vsel %vm624, %v623, %v615
        %v626 = vrot.slane %v617, 6
        %vm627 = vcmask 1042434
        %v628 = vsel %vm627, %v626, %v625
        %v629 = vrot.slane %v618, 5
        %vm630 = vcmask 1043459
        %v631 = vsel %vm630, %v629, %v628
        %v632 = vrot.slane %v619, 4
        %vm633 = vcmask 1044484
        %v634 = vsel %vm633, %v632, %v631
        %v635 = vrot.slane %v620, 3
        %vm636 = vcmask 1045509
        %v637 = vsel %vm636, %v635, %v634
        %v638 = vrot.slane %v621, 2
        %vm639 = vcmask 1046534
        %v640 = vsel %vm639, %v638, %v637
        %v641 = vrot.slane %v622, 1
        %vm642 = vcmask 1047559
        %v643 = vsel %vm642, %v641, %v640
        %v644 = vpack.c.b16 %v643, %v643
        %v654 = vunpack.c.l.s4 1983009808
        %v655 = vunpack.c.0.s8 %v654
        %v656 = vlaneseq
        %v657 = vshrl.u32 %v656, 7
        %v658 = vsub.s32 %v655, %v657
        %v659 = vrot.slane %v535, %v658
        %v661 = vunpack.c.l.s4 1983009808
        %v662 = vunpack.c.0.s8 %v661
        %v663 = vlaneseq
        %v664 = vshrl.u32 %v663, 7
        %v665 = vsub.s32 %v662, %v664
        %v666 = vrot.slane %v536, %v665
        %v668 = vunpack.c.l.s4 1983009808
        %v669 = vunpack.c.0.s8 %v668
        %v670 = vlaneseq
        %v671 = vshrl.u32 %v670, 7
        %v672 = vsub.s32 %v669, %v671
        %v673 = vrot.slane %v537, %v672
        %v675 = vunpack.c.l.s4 1983009808
        %v676 = vunpack.c.0.s8 %v675
        %v677 = vlaneseq
        %v678 = vshrl.u32 %v677, 7
        %v679 = vsub.s32 %v676, %v678
        %v680 = vrot.slane %v538, %v679
        %v682 = vunpack.c.l.s4 1983009808
        %v683 = vunpack.c.0.s8 %v682
        %v684 = vlaneseq
        %v685 = vshrl.u32 %v684, 7
        %v686 = vsub.s32 %v683, %v685
        %v687 = vrot.slane %v539, %v686
        %v689 = vunpack.c.l.s4 1983009808
        %v690 = vunpack.c.0.s8 %v689
        %v691 = vlaneseq
        %v692 = vshrl.u32 %v691, 7
        %v693 = vsub.s32 %v690, %v692
        %v694 = vrot.slane %v540, %v693
        %v696 = vunpack.c.l.s4 1983009808
        %v697 = vunpack.c.0.s8 %v696
        %v698 = vlaneseq
        %v699 = vshrl.u32 %v698, 7
        %v700 = vsub.s32 %v697, %v699
        %v701 = vrot.slane %v541, %v700
        %v703 = vunpack.c.l.s4 1983009808
        %v704 = vunpack.c.0.s8 %v703
        %v705 = vlaneseq
        %v706 = vshrl.u32 %v705, 7
        %v707 = vsub.s32 %v704, %v706
        %v708 = vrot.slane %v542, %v707
        %v709 = vunpack.c.l.b16 %v659
        %v710 = vunpack.c.l.b16 %v666
        %v711 = vunpack.c.l.b16 %v673
        %v712 = vunpack.c.l.b16 %v680
        %v713 = vunpack.c.l.b16 %v687
        %v714 = vunpack.c.l.b16 %v694
        %v715 = vunpack.c.l.b16 %v701
        %v716 = vunpack.c.l.b16 %v708
        %v717 = vrot.slane %v710, 7
        %v718 = vsel %vm624, %v717, %v709
        %v719 = vrot.slane %v711, 6
        %v720 = vsel %vm627, %v719, %v718
        %v721 = vrot.slane %v712, 5
        %v722 = vsel %vm630, %v721, %v720
        %v723 = vrot.slane %v713, 4
        %v724 = vsel %vm633, %v723, %v722
        %v725 = vrot.slane %v714, 3
        %v726 = vsel %vm636, %v725, %v724
        %v727 = vrot.slane %v715, 2
        %v728 = vsel %vm639, %v727, %v726
        %v729 = vrot.slane %v716, 1
        %v730 = vsel %vm642, %v729, %v728
        %v731 = vpack.c.b16 %v730, %v730
        %vm732 = vcmask 64512
        %v734 = vsel %vm732, %v644, 0
        %v737 = vsel %vm732, %v731, 0
        %739 = vmatprep.subr.bf16.mxu0 0
        %740 = vmatpush1.bf16.xpose.msra.mxu0 0
        %741 = vmatprep.subr.bf16.mxu0 0
        %742 = vmatpush1.bf16.xpose.msra.mxu0 0
        %743 = vmatprep.subr.bf16.mxu0 0
        %744 = vmatpush1.bf16.xpose.msra.mxu0 0
        %745 = vmatprep.subr.bf16.mxu0 0
        %746 = vmatpush1.bf16.xpose.msra.mxu0 0
        %747 = vmatprep.subr.bf16.mxu0 0
        %748 = vmatpush1.bf16.xpose.msra.mxu0 0
        %749 = vmatprep.subr.bf16.mxu0 0
        %750 = vmatpush1.bf16.xpose.msra.mxu0 0
        %751 = vmatprep.subr.bf16.mxu0 0
        %752 = vmatpush1.bf16.xpose.msra.mxu0 0
        %753 = vmatprep.subr.bf16.mxu0 0
        %754 = vmatpush1.bf16.xpose.msra.mxu0 %v737
        %755 = vmatprep.subr.bf16.mxu0 0
        %756 = vmatpush2.bf16.xpose.msra.mxu0 0
        %757 = vmatprep.subr.bf16.mxu0 0
        %758 = vmatpush2.bf16.xpose.msra.mxu0 0
        %759 = vmatprep.subr.bf16.mxu0 0
        %760 = vmatpush2.bf16.xpose.msra.mxu0 0
        %761 = vmatprep.subr.bf16.mxu0 0
        %762 = vmatpush2.bf16.xpose.msra.mxu0 0
        %763 = vmatprep.subr.bf16.mxu0 0
        %764 = vmatpush2.bf16.xpose.msra.mxu0 0
        %765 = vmatprep.subr.bf16.mxu0 0
        %766 = vmatpush2.bf16.xpose.msra.mxu0 0
        %767 = vmatprep.subr.bf16.mxu0 0
        %768 = vmatpush2.bf16.xpose.msra.mxu0 0
        %769 = vmatprep.subr.bf16.mxu0 0
        %770 = vmatpush2.bf16.xpose.msra.mxu0 0
        %771 = vmatprep.mubr.bf16.mxu0 0
        %772 = vmatmul.mubr.bf16.gmra.mxu0 %v734
        %v773 = vpop.f32.mrf.mxu0
        %v774 = vadd.f32 0.0, %v773
        %v775 = vpop.f32.mrf.mxu0
        %v776 = vpop.f32.mrf.mxu0
        %v777 = vpop.f32.mrf.mxu0
        %778 = vdwg.mxu0
        %v779 = vmul.f32 %v774, 0.35355338
        %v781 = vlaneseq
        %v782 = vshrl.u32 %v781, 7
        %v783 = vsub.s32 0, %v782
        %v784 = vrot.slane %v526, %v783
        %v786 = vadd.f32 %v779, %v784
        %v787 = vsel %vm732, %v786, -inf
        %788 = vmax.xlane.f32.xlu0 %v787
        %v789 = vpop.xlane.xlu0 %788
        %v790 = vsub.f32 %v786, %v789
        %v791 = vmul.f32 %v790, 1.442695
        %v792 = vpow.pop %v791
        %v793 = vsel %vm732, %v792, 0.0
        %794 = vadd.xlane.f32.xlu0 %v793
        %v795 = vpop.xlane.xlu0 %794
        %v796 = vrcp.pop %v795
        %v797 = vmul.f32 %v792, %v796
        %v798 = vpack.c.bf16 %v797, %v797
        %v808 = vunpack.c.l.s4 1983009808
        %v809 = vunpack.c.0.s8 %v808
        %v810 = vlaneseq
        %v811 = vshrl.u32 %v810, 7
        %v812 = vsub.s32 %v809, %v811
        %v813 = vrot.slane %v543, %v812
        %v815 = vunpack.c.l.s4 1983009808
        %v816 = vunpack.c.0.s8 %v815
        %v817 = vlaneseq
        %v818 = vshrl.u32 %v817, 7
        %v819 = vsub.s32 %v816, %v818
        %v820 = vrot.slane %v544, %v819
        %v822 = vunpack.c.l.s4 1983009808
        %v823 = vunpack.c.0.s8 %v822
        %v824 = vlaneseq
        %v825 = vshrl.u32 %v824, 7
        %v826 = vsub.s32 %v823, %v825
        %v827 = vrot.slane %v545, %v826
        %v829 = vunpack.c.l.s4 1983009808
        %v830 = vunpack.c.0.s8 %v829
        %v831 = vlaneseq
        %v832 = vshrl.u32 %v831, 7
        %v833 = vsub.s32 %v830, %v832
        %v834 = vrot.slane %v546, %v833
        %v836 = vunpack.c.l.s4 1983009808
        %v837 = vunpack.c.0.s8 %v836
        %v838 = vlaneseq
        %v839 = vshrl.u32 %v838, 7
        %v840 = vsub.s32 %v837, %v839
        %v841 = vrot.slane %v547, %v840
        %v843 = vunpack.c.l.s4 1983009808
        %v844 = vunpack.c.0.s8 %v843
        %v845 = vlaneseq
        %v846 = vshrl.u32 %v845, 7
        %v847 = vsub.s32 %v844, %v846
        %v848 = vrot.slane %v548, %v847
        %v850 = vunpack.c.l.s4 1983009808
        %v851 = vunpack.c.0.s8 %v850
        %v852 = vlaneseq
        %v853 = vshrl.u32 %v852, 7
        %v854 = vsub.s32 %v851, %v853
        %v855 = vrot.slane %v549, %v854
        %v857 = vunpack.c.l.s4 1983009808
        %v858 = vunpack.c.0.s8 %v857
        %v859 = vlaneseq
        %v860 = vshrl.u32 %v859, 7
        %v861 = vsub.s32 %v858, %v860
        %v862 = vrot.slane %v550, %v861
        %v863 = vunpack.c.l.b16 %v813
        %v864 = vunpack.c.l.b16 %v820
        %v865 = vunpack.c.l.b16 %v827
        %v866 = vunpack.c.l.b16 %v834
        %v867 = vunpack.c.l.b16 %v841
        %v868 = vunpack.c.l.b16 %v848
        %v869 = vunpack.c.l.b16 %v855
        %v870 = vunpack.c.l.b16 %v862
        %v871 = vrot.slane %v864, 7
        %v872 = vsel %vm624, %v871, %v863
        %v873 = vrot.slane %v865, 6
        %v874 = vsel %vm627, %v873, %v872
        %v875 = vrot.slane %v866, 5
        %v876 = vsel %vm630, %v875, %v874
        %v877 = vrot.slane %v867, 4
        %v878 = vsel %vm633, %v877, %v876
        %v879 = vrot.slane %v868, 3
        %v880 = vsel %vm636, %v879, %v878
        %v881 = vrot.slane %v869, 2
        %v882 = vsel %vm639, %v881, %v880
        %v883 = vrot.slane %v870, 1
        %v884 = vsel %vm642, %v883, %v882
        %v885 = vpack.c.b16 %v884, %v884
        %v887 = vsel %vm732, %v798, 0
        %vm889 = vcmask 1043456
        %v891 = vsel %vm889, %v885, 0
        %893 = vmatprep.subr.bf16.mxu0 0
        %894 = vmatpush1.bf16.msra.mxu0 0
        %895 = vmatprep.subr.bf16.mxu0 0
        %896 = vmatpush1.bf16.msra.mxu0 0
        %897 = vmatprep.subr.bf16.mxu0 0
        %898 = vmatpush1.bf16.msra.mxu0 0
        %899 = vmatprep.subr.bf16.mxu0 0
        %900 = vmatpush1.bf16.msra.mxu0 0
        %901 = vmatprep.subr.bf16.mxu0 0
        %902 = vmatpush1.bf16.msra.mxu0 0
        %903 = vmatprep.subr.bf16.mxu0 0
        %904 = vmatpush1.bf16.msra.mxu0 0
        %905 = vmatprep.subr.bf16.mxu0 0
        %906 = vmatpush1.bf16.msra.mxu0 0
        %907 = vmatprep.subr.bf16.mxu0 0
        %908 = vmatpush1.bf16.msra.mxu0 %v891
        %909 = vmatprep.subr.bf16.mxu0 0
        %910 = vmatpush2.bf16.msra.mxu0 0
        %911 = vmatprep.subr.bf16.mxu0 0
        %912 = vmatpush2.bf16.msra.mxu0 0
        %913 = vmatprep.subr.bf16.mxu0 0
        %914 = vmatpush2.bf16.msra.mxu0 0
        %915 = vmatprep.subr.bf16.mxu0 0
        %916 = vmatpush2.bf16.msra.mxu0 0
        %917 = vmatprep.subr.bf16.mxu0 0
        %918 = vmatpush2.bf16.msra.mxu0 0
        %919 = vmatprep.subr.bf16.mxu0 0
        %920 = vmatpush2.bf16.msra.mxu0 0
        %921 = vmatprep.subr.bf16.mxu0 0
        %922 = vmatpush2.bf16.msra.mxu0 0
        %923 = vmatprep.subr.bf16.mxu0 0
        %924 = vmatpush2.bf16.msra.mxu0 0
        %925 = vmatprep.mubr.bf16.mxu0 0
        %926 = vmatmul.mubr.bf16.gmra.mxu0 %v887
        %v927 = vpop.f32.mrf.mxu0
        %v928 = vadd.f32 0.0, %v927
        %v929 = vpop.f32.mrf.mxu0
        %v930 = vpop.f32.mrf.mxu0
        %v931 = vpop.f32.mrf.mxu0
        %932 = vdwg.mxu0
        %v933 = vpack.c.bf16 %v928, %v928
        %v936 = vunpack.c.l.s4 1966171168
        %v937 = vunpack.c.0.s8 %v936
        %v938 = vlaneseq
        %v939 = vshrl.u32 %v938, 7
        %v940 = vsub.s32 %v937, %v939
        %v941 = vrot.slane %v933, %v940
        %v942 = vcombine.high %v941, %v941
        %v944 = vunpack.c.l.s4 1966171168
        %v945 = vunpack.c.0.s8 %v944
        %v946 = vlaneseq
        %v947 = vshrl.u32 %v946, 7
        %v948 = vsub.s32 %v945, %v947
        %v949 = vrot.slane %v941, %v948
        %v951 = vunpack.c.l.s4 1966171168
        %v952 = vunpack.c.0.s8 %v951
        %v953 = vlaneseq
        %v954 = vshrl.u32 %v953, 7
        %v955 = vsub.s32 %v952, %v954
        %v956 = vrot.slane %v942, %v955
        %v957 = vcombine.high %v949, %v949
        %v958 = vcombine.high %v956, %v956
        %v959 = vunpack.i.l.s16 %v949
        %v960 = vunpack.i.h.s16 %v949
        %v961 = vunpack.i.l.s16 %v956
        %v962 = vunpack.i.h.s16 %v956
        %v963 = vunpack.i.l.s16 %v957
        %v964 = vunpack.i.h.s16 %v957
        %v965 = vunpack.i.l.s16 %v958
        %v966 = vunpack.i.h.s16 %v958
        %v967 = vpack.i.b16 %v959, %v959
        %v968 = vpack.i.b16 %v960, %v960
        %v969 = vpack.i.b16 %v961, %v961
        %v970 = vpack.i.b16 %v962, %v962
        %v971 = vpack.i.b16 %v963, %v963
        %v972 = vpack.i.b16 %v964, %v964
        %v973 = vpack.i.b16 %v965, %v965
        %v974 = vpack.i.b16 %v966, %v966
        %v976 = vunpack.c.l.s4 857870592
        %v977 = vunpack.c.0.s8 %v976
        %v978 = vlaneseq
        %v979 = vshrl.u32 %v978, 7
        %v980 = vsub.s32 %v977, %v979
        %v981 = vrot.slane %v967, %v980
        %v983 = vunpack.c.l.s4 857870592
        %v984 = vunpack.c.0.s8 %v983
        %v985 = vlaneseq
        %v986 = vshrl.u32 %v985, 7
        %v987 = vsub.s32 %v984, %v986
        %v988 = vrot.slane %v968, %v987
        %v990 = vunpack.c.l.s4 857870592
        %v991 = vunpack.c.0.s8 %v990
        %v992 = vlaneseq
        %v993 = vshrl.u32 %v992, 7
        %v994 = vsub.s32 %v991, %v993
        %v995 = vrot.slane %v969, %v994
        %v997 = vunpack.c.l.s4 857870592
        %v998 = vunpack.c.0.s8 %v997
        %v999 = vlaneseq
        %v1000 = vshrl.u32 %v999, 7
        %v1001 = vsub.s32 %v998, %v1000
        %v1002 = vrot.slane %v970, %v1001
        %v1004 = vunpack.c.l.s4 857870592
        %v1005 = vunpack.c.0.s8 %v1004
        %v1006 = vlaneseq
        %v1007 = vshrl.u32 %v1006, 7
        %v1008 = vsub.s32 %v1005, %v1007
        %v1009 = vrot.slane %v971, %v1008
        %v1011 = vunpack.c.l.s4 857870592
        %v1012 = vunpack.c.0.s8 %v1011
        %v1013 = vlaneseq
        %v1014 = vshrl.u32 %v1013, 7
        %v1015 = vsub.s32 %v1012, %v1014
        %v1016 = vrot.slane %v972, %v1015
        %v1018 = vunpack.c.l.s4 857870592
        %v1019 = vunpack.c.0.s8 %v1018
        %v1020 = vlaneseq
        %v1021 = vshrl.u32 %v1020, 7
        %v1022 = vsub.s32 %v1019, %v1021
        %v1023 = vrot.slane %v973, %v1022
        %v1025 = vunpack.c.l.s4 857870592
        %v1026 = vunpack.c.0.s8 %v1025
        %v1027 = vlaneseq
        %v1028 = vshrl.u32 %v1027, 7
        %v1029 = vsub.s32 %v1026, %v1028
        %v1030 = vrot.slane %v974, %v1029
        %vm1039 = vcmask 57344
        %vm1040 = vsmask.f32 256
        %vm1041 = vmand %vm1039, %vm1040
        %v1042 = vld [vmem:[%s512] sm:$0x1]
        %v1043 = vsel %vm1041, %v981, %v1042
        %1044 = vst [vmem:[%s512] sm:$0x1] %v1043
        %v1045 = vld [vmem:[%s512 + $0x2] sm:$0x1]
        %v1046 = vsel %vm1041, %v988, %v1045
        %1047 = vst [vmem:[%s512 + $0x2] sm:$0x1] %v1046
        %v1048 = vld [vmem:[%s512 + $0x4] sm:$0x1]
        %v1049 = vsel %vm1041, %v995, %v1048
        %1050 = vst [vmem:[%s512 + $0x4] sm:$0x1] %v1049
        %v1051 = vld [vmem:[%s512 + $0x6] sm:$0x1]
        %v1052 = vsel %vm1041, %v1002, %v1051
        %1053 = vst [vmem:[%s512 + $0x6] sm:$0x1] %v1052
        %v1054 = vld [vmem:[%s512 + $0x8] sm:$0x1]
        %v1055 = vsel %vm1041, %v1009, %v1054
        %1056 = vst [vmem:[%s512 + $0x8] sm:$0x1] %v1055
        %v1057 = vld [vmem:[%s512 + $0xa] sm:$0x1]
        %v1058 = vsel %vm1041, %v1016, %v1057
        %1059 = vst [vmem:[%s512 + $0xa] sm:$0x1] %v1058
        %v1060 = vld [vmem:[%s512 + $0xc] sm:$0x1]
        %v1061 = vsel %vm1041, %v1023, %v1060
        %1062 = vst [vmem:[%s512 + $0xc] sm:$0x1] %v1061
        %v1063 = vld [vmem:[%s512 + $0xe] sm:$0x1]
        %v1064 = vsel %vm1041, %v1030, %v1063
        %1065 = vst [vmem:[%s512 + $0xe] sm:$0x1] %v1064
        %v1066 = vadd.f32 %v797, 0.0
        %v1067 = vld [vmem:[%s466] sm:$0x1]
        %v1068 = vld [vmem:[%s466 + $0x2] sm:$0x1]
        %v1069 = vld [vmem:[%s466 + $0x4] sm:$0x1]
        %v1070 = vld [vmem:[%s466 + $0x6] sm:$0x1]
        %v1071 = vld [vmem:[%s466 + $0x8] sm:$0x1]
        %v1072 = vld [vmem:[%s466 + $0xa] sm:$0x1]
        %v1073 = vld [vmem:[%s466 + $0xc] sm:$0x1]
        %v1074 = vld [vmem:[%s466 + $0xe] sm:$0x1]
        %v1075 = vld [vmem:[%s473] sm:$0x1]
        %v1076 = vld [vmem:[%s473 + $0x2] sm:$0x1]
        %v1077 = vld [vmem:[%s473 + $0x4] sm:$0x1]
        %v1078 = vld [vmem:[%s473 + $0x6] sm:$0x1]
        %v1079 = vld [vmem:[%s473 + $0x8] sm:$0x1]
        %v1080 = vld [vmem:[%s473 + $0xa] sm:$0x1]
        %v1081 = vld [vmem:[%s473 + $0xc] sm:$0x1]
        %v1082 = vld [vmem:[%s473 + $0xe] sm:$0x1]
        %v1083 = vld [vmem:[%s480] sm:$0x1]
        %v1084 = vld [vmem:[%s480 + $0x2] sm:$0x1]
        %v1085 = vld [vmem:[%s480 + $0x4] sm:$0x1]
        %v1086 = vld [vmem:[%s480 + $0x6] sm:$0x1]
        %v1087 = vld [vmem:[%s480 + $0x8] sm:$0x1]
        %v1088 = vld [vmem:[%s480 + $0xa] sm:$0x1]
        %v1089 = vld [vmem:[%s480 + $0xc] sm:$0x1]
        %v1090 = vld [vmem:[%s480 + $0xe] sm:$0x1]
        %v1100 = vunpack.c.l.s4 1983009808
        %v1101 = vunpack.c.0.s8 %v1100
        %v1102 = vlaneseq
        %v1103 = vshrl.u32 %v1102, 7
        %v1104 = vsub.s32 %v1101, %v1103
        %v1105 = vrot.slane %v1067, %v1104
        %v1107 = vunpack.c.l.s4 1983009808
        %v1108 = vunpack.c.0.s8 %v1107
        %v1109 = vlaneseq
        %v1110 = vshrl.u32 %v1109, 7
        %v1111 = vsub.s32 %v1108, %v1110
        %v1112 = vrot.slane %v1068, %v1111
        %v1114 = vunpack.c.l.s4 1983009808
        %v1115 = vunpack.c.0.s8 %v1114
        %v1116 = vlaneseq
        %v1117 = vshrl.u32 %v1116, 7
        %v1118 = vsub.s32 %v1115, %v1117
        %v1119 = vrot.slane %v1069, %v1118
        %v1121 = vunpack.c.l.s4 1983009808
        %v1122 = vunpack.c.0.s8 %v1121
        %v1123 = vlaneseq
        %v1124 = vshrl.u32 %v1123, 7
        %v1125 = vsub.s32 %v1122, %v1124
        %v1126 = vrot.slane %v1070, %v1125
        %v1128 = vunpack.c.l.s4 1983009808
        %v1129 = vunpack.c.0.s8 %v1128
        %v1130 = vlaneseq
        %v1131 = vshrl.u32 %v1130, 7
        %v1132 = vsub.s32 %v1129, %v1131
        %v1133 = vrot.slane %v1071, %v1132
        %v1135 = vunpack.c.l.s4 1983009808
        %v1136 = vunpack.c.0.s8 %v1135
        %v1137 = vlaneseq
        %v1138 = vshrl.u32 %v1137, 7
        %v1139 = vsub.s32 %v1136, %v1138
        %v1140 = vrot.slane %v1072, %v1139
        %v1142 = vunpack.c.l.s4 1983009808
        %v1143 = vunpack.c.0.s8 %v1142
        %v1144 = vlaneseq
        %v1145 = vshrl.u32 %v1144, 7
        %v1146 = vsub.s32 %v1143, %v1145
        %v1147 = vrot.slane %v1073, %v1146
        %v1149 = vunpack.c.l.s4 1983009808
        %v1150 = vunpack.c.0.s8 %v1149
        %v1151 = vlaneseq
        %v1152 = vshrl.u32 %v1151, 7
        %v1153 = vsub.s32 %v1150, %v1152
        %v1154 = vrot.slane %v1074, %v1153
        %v1155 = vunpack.c.l.b16 %v1105
        %v1156 = vunpack.c.l.b16 %v1112
        %v1157 = vunpack.c.l.b16 %v1119
        %v1158 = vunpack.c.l.b16 %v1126
        %v1159 = vunpack.c.l.b16 %v1133
        %v1160 = vunpack.c.l.b16 %v1140
        %v1161 = vunpack.c.l.b16 %v1147
        %v1162 = vunpack.c.l.b16 %v1154
        %v1163 = vrot.slane %v1155, 1
        %v1164 = vsel %vm624, %v1156, %v1163
        %v1165 = vrot.slane %v1157, 7
        %v1166 = vsel %vm627, %v1165, %v1164
        %v1167 = vrot.slane %v1158, 6
        %v1168 = vsel %vm630, %v1167, %v1166
        %v1169 = vrot.slane %v1159, 5
        %v1170 = vsel %vm633, %v1169, %v1168
        %v1171 = vrot.slane %v1160, 4
        %v1172 = vsel %vm636, %v1171, %v1170
        %v1173 = vrot.slane %v1161, 3
        %v1174 = vsel %vm639, %v1173, %v1172
        %v1175 = vrot.slane %v1162, 2
        %v1176 = vsel %vm642, %v1175, %v1174
        %v1177 = vpack.c.b16 %v1176, %v1176
        %v1187 = vunpack.c.l.s4 1983009808
        %v1188 = vunpack.c.0.s8 %v1187
        %v1189 = vlaneseq
        %v1190 = vshrl.u32 %v1189, 7
        %v1191 = vsub.s32 %v1188, %v1190
        %v1192 = vrot.slane %v1075, %v1191
        %v1194 = vunpack.c.l.s4 1983009808
        %v1195 = vunpack.c.0.s8 %v1194
        %v1196 = vlaneseq
        %v1197 = vshrl.u32 %v1196, 7
        %v1198 = vsub.s32 %v1195, %v1197
        %v1199 = vrot.slane %v1076, %v1198
        %v1201 = vunpack.c.l.s4 1983009808
        %v1202 = vunpack.c.0.s8 %v1201
        %v1203 = vlaneseq
        %v1204 = vshrl.u32 %v1203, 7
        %v1205 = vsub.s32 %v1202, %v1204
        %v1206 = vrot.slane %v1077, %v1205
        %v1208 = vunpack.c.l.s4 1983009808
        %v1209 = vunpack.c.0.s8 %v1208
        %v1210 = vlaneseq
        %v1211 = vshrl.u32 %v1210, 7
        %v1212 = vsub.s32 %v1209, %v1211
        %v1213 = vrot.slane %v1078, %v1212
        %v1215 = vunpack.c.l.s4 1983009808
        %v1216 = vunpack.c.0.s8 %v1215
        %v1217 = vlaneseq
        %v1218 = vshrl.u32 %v1217, 7
        %v1219 = vsub.s32 %v1216, %v1218
        %v1220 = vrot.slane %v1079, %v1219
        %v1222 = vunpack.c.l.s4 1983009808
        %v1223 = vunpack.c.0.s8 %v1222
        %v1224 = vlaneseq
        %v1225 = vshrl.u32 %v1224, 7
        %v1226 = vsub.s32 %v1223, %v1225
        %v1227 = vrot.slane %v1080, %v1226
        %v1229 = vunpack.c.l.s4 1983009808
        %v1230 = vunpack.c.0.s8 %v1229
        %v1231 = vlaneseq
        %v1232 = vshrl.u32 %v1231, 7
        %v1233 = vsub.s32 %v1230, %v1232
        %v1234 = vrot.slane %v1081, %v1233
        %v1236 = vunpack.c.l.s4 1983009808
        %v1237 = vunpack.c.0.s8 %v1236
        %v1238 = vlaneseq
        %v1239 = vshrl.u32 %v1238, 7
        %v1240 = vsub.s32 %v1237, %v1239
        %v1241 = vrot.slane %v1082, %v1240
        %v1242 = vunpack.c.l.b16 %v1192
        %v1243 = vunpack.c.l.b16 %v1199
        %v1244 = vunpack.c.l.b16 %v1206
        %v1245 = vunpack.c.l.b16 %v1213
        %v1246 = vunpack.c.l.b16 %v1220
        %v1247 = vunpack.c.l.b16 %v1227
        %v1248 = vunpack.c.l.b16 %v1234
        %v1249 = vunpack.c.l.b16 %v1241
        %v1250 = vrot.slane %v1242, 1
        %v1251 = vsel %vm624, %v1243, %v1250
        %v1252 = vrot.slane %v1244, 7
        %v1253 = vsel %vm627, %v1252, %v1251
        %v1254 = vrot.slane %v1245, 6
        %v1255 = vsel %vm630, %v1254, %v1253
        %v1256 = vrot.slane %v1246, 5
        %v1257 = vsel %vm633, %v1256, %v1255
        %v1258 = vrot.slane %v1247, 4
        %v1259 = vsel %vm636, %v1258, %v1257
        %v1260 = vrot.slane %v1248, 3
        %v1261 = vsel %vm639, %v1260, %v1259
        %v1262 = vrot.slane %v1249, 2
        %v1263 = vsel %vm642, %v1262, %v1261
        %v1264 = vpack.c.b16 %v1263, %v1263
        %v1266 = vsel %vm732, %v1177, 0
        %v1269 = vsel %vm732, %v1264, 0
        %1271 = vmatprep.subr.bf16.mxu0 0
        %1272 = vmatpush1.bf16.xpose.msra.mxu0 0
        %1273 = vmatprep.subr.bf16.mxu0 0
        %1274 = vmatpush1.bf16.xpose.msra.mxu0 0
        %1275 = vmatprep.subr.bf16.mxu0 0
        %1276 = vmatpush1.bf16.xpose.msra.mxu0 0
        %1277 = vmatprep.subr.bf16.mxu0 0
        %1278 = vmatpush1.bf16.xpose.msra.mxu0 0
        %1279 = vmatprep.subr.bf16.mxu0 0
        %1280 = vmatpush1.bf16.xpose.msra.mxu0 0
        %1281 = vmatprep.subr.bf16.mxu0 0
        %1282 = vmatpush1.bf16.xpose.msra.mxu0 0
        %1283 = vmatprep.subr.bf16.mxu0 0
        %1284 = vmatpush1.bf16.xpose.msra.mxu0 0
        %1285 = vmatprep.subr.bf16.mxu0 0
        %1286 = vmatpush1.bf16.xpose.msra.mxu0 %v1269
        %1287 = vmatprep.subr.bf16.mxu0 0
        %1288 = vmatpush2.bf16.xpose.msra.mxu0 0
        %1289 = vmatprep.subr.bf16.mxu0 0
        %1290 = vmatpush2.bf16.xpose.msra.mxu0 0
        %1291 = vmatprep.subr.bf16.mxu0 0
        %1292 = vmatpush2.bf16.xpose.msra.mxu0 0
        %1293 = vmatprep.subr.bf16.mxu0 0
        %1294 = vmatpush2.bf16.xpose.msra.mxu0 0
        %1295 = vmatprep.subr.bf16.mxu0 0
        %1296 = vmatpush2.bf16.xpose.msra.mxu0 0
        %1297 = vmatprep.subr.bf16.mxu0 0
        %1298 = vmatpush2.bf16.xpose.msra.mxu0 0
        %1299 = vmatprep.subr.bf16.mxu0 0
        %1300 = vmatpush2.bf16.xpose.msra.mxu0 0
        %1301 = vmatprep.subr.bf16.mxu0 0
        %1302 = vmatpush2.bf16.xpose.msra.mxu0 0
        %1303 = vmatprep.mubr.bf16.mxu0 0
        %1304 = vmatmul.mubr.bf16.gmra.mxu0 %v1266
        %v1305 = vpop.f32.mrf.mxu0
        %v1306 = vadd.f32 0.0, %v1305
        %v1307 = vpop.f32.mrf.mxu0
        %v1308 = vpop.f32.mrf.mxu0
        %v1309 = vpop.f32.mrf.mxu0
        %1310 = vdwg.mxu0
        %v1311 = vmul.f32 %v1306, 0.35355338
        %v1312 = vadd.f32 %v1311, %v784
        %v1313 = vsel %vm732, %v1312, -inf
        %1314 = vmax.xlane.f32.xlu0 %v1313
        %v1315 = vpop.xlane.xlu0 %1314
        %v1316 = vsub.f32 %v1312, %v1315
        %v1317 = vmul.f32 %v1316, 1.442695
        %v1318 = vpow.pop %v1317
        %v1319 = vsel %vm732, %v1318, 0.0
        %1320 = vadd.xlane.f32.xlu0 %v1319
        %v1321 = vpop.xlane.xlu0 %1320
        %v1322 = vrcp.pop %v1321
        %v1323 = vmul.f32 %v1318, %v1322
        %v1324 = vpack.c.bf16 %v1323, %v1323
        %v1334 = vunpack.c.l.s4 1983009808
        %v1335 = vunpack.c.0.s8 %v1334
        %v1336 = vlaneseq
        %v1337 = vshrl.u32 %v1336, 7
        %v1338 = vsub.s32 %v1335, %v1337
        %v1339 = vrot.slane %v1083, %v1338
        %v1341 = vunpack.c.l.s4 1983009808
        %v1342 = vunpack.c.0.s8 %v1341
        %v1343 = vlaneseq
        %v1344 = vshrl.u32 %v1343, 7
        %v1345 = vsub.s32 %v1342, %v1344
        %v1346 = vrot.slane %v1084, %v1345
        %v1348 = vunpack.c.l.s4 1983009808
        %v1349 = vunpack.c.0.s8 %v1348
        %v1350 = vlaneseq
        %v1351 = vshrl.u32 %v1350, 7
        %v1352 = vsub.s32 %v1349, %v1351
        %v1353 = vrot.slane %v1085, %v1352
        %v1355 = vunpack.c.l.s4 1983009808
        %v1356 = vunpack.c.0.s8 %v1355
        %v1357 = vlaneseq
        %v1358 = vshrl.u32 %v1357, 7
        %v1359 = vsub.s32 %v1356, %v1358
        %v1360 = vrot.slane %v1086, %v1359
        %v1362 = vunpack.c.l.s4 1983009808
        %v1363 = vunpack.c.0.s8 %v1362
        %v1364 = vlaneseq
        %v1365 = vshrl.u32 %v1364, 7
        %v1366 = vsub.s32 %v1363, %v1365
        %v1367 = vrot.slane %v1087, %v1366
        %v1369 = vunpack.c.l.s4 1983009808
        %v1370 = vunpack.c.0.s8 %v1369
        %v1371 = vlaneseq
        %v1372 = vshrl.u32 %v1371, 7
        %v1373 = vsub.s32 %v1370, %v1372
        %v1374 = vrot.slane %v1088, %v1373
        %v1376 = vunpack.c.l.s4 1983009808
        %v1377 = vunpack.c.0.s8 %v1376
        %v1378 = vlaneseq
        %v1379 = vshrl.u32 %v1378, 7
        %v1380 = vsub.s32 %v1377, %v1379
        %v1381 = vrot.slane %v1089, %v1380
        %v1383 = vunpack.c.l.s4 1983009808
        %v1384 = vunpack.c.0.s8 %v1383
        %v1385 = vlaneseq
        %v1386 = vshrl.u32 %v1385, 7
        %v1387 = vsub.s32 %v1384, %v1386
        %v1388 = vrot.slane %v1090, %v1387
        %v1389 = vunpack.c.l.b16 %v1339
        %v1390 = vunpack.c.l.b16 %v1346
        %v1391 = vunpack.c.l.b16 %v1353
        %v1392 = vunpack.c.l.b16 %v1360
        %v1393 = vunpack.c.l.b16 %v1367
        %v1394 = vunpack.c.l.b16 %v1374
        %v1395 = vunpack.c.l.b16 %v1381
        %v1396 = vunpack.c.l.b16 %v1388
        %v1397 = vrot.slane %v1389, 1
        %v1398 = vsel %vm624, %v1390, %v1397
        %v1399 = vrot.slane %v1391, 7
        %v1400 = vsel %vm627, %v1399, %v1398
        %v1401 = vrot.slane %v1392, 6
        %v1402 = vsel %vm630, %v1401, %v1400
        %v1403 = vrot.slane %v1393, 5
        %v1404 = vsel %vm633, %v1403, %v1402
        %v1405 = vrot.slane %v1394, 4
        %v1406 = vsel %vm636, %v1405, %v1404
        %v1407 = vrot.slane %v1395, 3
        %v1408 = vsel %vm639, %v1407, %v1406
        %v1409 = vrot.slane %v1396, 2
        %v1410 = vsel %vm642, %v1409, %v1408
        %v1411 = vpack.c.b16 %v1410, %v1410
        %v1413 = vsel %vm732, %v1324, 0
        %v1416 = vsel %vm889, %v1411, 0
        %1418 = vmatprep.subr.bf16.mxu0 0
        %1419 = vmatpush1.bf16.msra.mxu0 0
        %1420 = vmatprep.subr.bf16.mxu0 0
        %1421 = vmatpush1.bf16.msra.mxu0 0
        %1422 = vmatprep.subr.bf16.mxu0 0
        %1423 = vmatpush1.bf16.msra.mxu0 0
        %1424 = vmatprep.subr.bf16.mxu0 0
        %1425 = vmatpush1.bf16.msra.mxu0 0
        %1426 = vmatprep.subr.bf16.mxu0 0
        %1427 = vmatpush1.bf16.msra.mxu0 0
        %1428 = vmatprep.subr.bf16.mxu0 0
        %1429 = vmatpush1.bf16.msra.mxu0 0
        %1430 = vmatprep.subr.bf16.mxu0 0
        %1431 = vmatpush1.bf16.msra.mxu0 0
        %1432 = vmatprep.subr.bf16.mxu0 0
        %1433 = vmatpush1.bf16.msra.mxu0 %v1416
        %1434 = vmatprep.subr.bf16.mxu0 0
        %1435 = vmatpush2.bf16.msra.mxu0 0
        %1436 = vmatprep.subr.bf16.mxu0 0
        %1437 = vmatpush2.bf16.msra.mxu0 0
        %1438 = vmatprep.subr.bf16.mxu0 0
        %1439 = vmatpush2.bf16.msra.mxu0 0
        %1440 = vmatprep.subr.bf16.mxu0 0
        %1441 = vmatpush2.bf16.msra.mxu0 0
        %1442 = vmatprep.subr.bf16.mxu0 0
        %1443 = vmatpush2.bf16.msra.mxu0 0
        %1444 = vmatprep.subr.bf16.mxu0 0
        %1445 = vmatpush2.bf16.msra.mxu0 0
        %1446 = vmatprep.subr.bf16.mxu0 0
        %1447 = vmatpush2.bf16.msra.mxu0 0
        %1448 = vmatprep.subr.bf16.mxu0 0
        %1449 = vmatpush2.bf16.msra.mxu0 0
        %1450 = vmatprep.mubr.bf16.mxu0 0
        %1451 = vmatmul.mubr.bf16.gmra.mxu0 %v1413
        %v1452 = vpop.f32.mrf.mxu0
        %v1453 = vadd.f32 0.0, %v1452
        %v1454 = vpop.f32.mrf.mxu0
        %v1455 = vpop.f32.mrf.mxu0
        %v1456 = vpop.f32.mrf.mxu0
        %1457 = vdwg.mxu0
        %v1458 = vpack.c.bf16 %v1453, %v1453
        %v1461 = vunpack.c.l.s4 1966171168
        %v1462 = vunpack.c.0.s8 %v1461
        %v1463 = vlaneseq
        %v1464 = vshrl.u32 %v1463, 7
        %v1465 = vsub.s32 %v1462, %v1464
        %v1466 = vrot.slane %v1458, %v1465
        %v1467 = vcombine.high %v1466, %v1466
        %v1469 = vunpack.c.l.s4 1966171168
        %v1470 = vunpack.c.0.s8 %v1469
        %v1471 = vlaneseq
        %v1472 = vshrl.u32 %v1471, 7
        %v1473 = vsub.s32 %v1470, %v1472
        %v1474 = vrot.slane %v1466, %v1473
        %v1476 = vunpack.c.l.s4 1966171168
        %v1477 = vunpack.c.0.s8 %v1476
        %v1478 = vlaneseq
        %v1479 = vshrl.u32 %v1478, 7
        %v1480 = vsub.s32 %v1477, %v1479
        %v1481 = vrot.slane %v1467, %v1480
        %v1482 = vcombine.high %v1474, %v1474
        %v1483 = vcombine.high %v1481, %v1481
        %v1484 = vunpack.i.l.s16 %v1474
        %v1485 = vunpack.i.h.s16 %v1474
        %v1486 = vunpack.i.l.s16 %v1481
        %v1487 = vunpack.i.h.s16 %v1481
        %v1488 = vunpack.i.l.s16 %v1482
        %v1489 = vunpack.i.h.s16 %v1482
        %v1490 = vunpack.i.l.s16 %v1483
        %v1491 = vunpack.i.h.s16 %v1483
        %v1492 = vpack.i.b16 %v1484, %v1484
        %v1493 = vpack.i.b16 %v1485, %v1485
        %v1494 = vpack.i.b16 %v1486, %v1486
        %v1495 = vpack.i.b16 %v1487, %v1487
        %v1496 = vpack.i.b16 %v1488, %v1488
        %v1497 = vpack.i.b16 %v1489, %v1489
        %v1498 = vpack.i.b16 %v1490, %v1490
        %v1499 = vpack.i.b16 %v1491, %v1491
        %v1501 = vunpack.c.l.s4 857870592
        %v1502 = vunpack.c.0.s8 %v1501
        %v1503 = vlaneseq
        %v1504 = vshrl.u32 %v1503, 7
        %v1505 = vsub.s32 %v1502, %v1504
        %v1506 = vrot.slane %v1492, %v1505
        %v1508 = vunpack.c.l.s4 857870592
        %v1509 = vunpack.c.0.s8 %v1508
        %v1510 = vlaneseq
        %v1511 = vshrl.u32 %v1510, 7
        %v1512 = vsub.s32 %v1509, %v1511
        %v1513 = vrot.slane %v1493, %v1512
        %v1515 = vunpack.c.l.s4 857870592
        %v1516 = vunpack.c.0.s8 %v1515
        %v1517 = vlaneseq
        %v1518 = vshrl.u32 %v1517, 7
        %v1519 = vsub.s32 %v1516, %v1518
        %v1520 = vrot.slane %v1494, %v1519
        %v1522 = vunpack.c.l.s4 857870592
        %v1523 = vunpack.c.0.s8 %v1522
        %v1524 = vlaneseq
        %v1525 = vshrl.u32 %v1524, 7
        %v1526 = vsub.s32 %v1523, %v1525
        %v1527 = vrot.slane %v1495, %v1526
        %v1529 = vunpack.c.l.s4 857870592
        %v1530 = vunpack.c.0.s8 %v1529
        %v1531 = vlaneseq
        %v1532 = vshrl.u32 %v1531, 7
        %v1533 = vsub.s32 %v1530, %v1532
        %v1534 = vrot.slane %v1496, %v1533
        %v1536 = vunpack.c.l.s4 857870592
        %v1537 = vunpack.c.0.s8 %v1536
        %v1538 = vlaneseq
        %v1539 = vshrl.u32 %v1538, 7
        %v1540 = vsub.s32 %v1537, %v1539
        %v1541 = vrot.slane %v1497, %v1540
        %v1543 = vunpack.c.l.s4 857870592
        %v1544 = vunpack.c.0.s8 %v1543
        %v1545 = vlaneseq
        %v1546 = vshrl.u32 %v1545, 7
        %v1547 = vsub.s32 %v1544, %v1546
        %v1548 = vrot.slane %v1498, %v1547
        %v1550 = vunpack.c.l.s4 857870592
        %v1551 = vunpack.c.0.s8 %v1550
        %v1552 = vlaneseq
        %v1553 = vshrl.u32 %v1552, 7
        %v1554 = vsub.s32 %v1551, %v1553
        %v1555 = vrot.slane %v1499, %v1554
        %vm1564 = vsmask.f32 7938
        %vm1565 = vmand %vm1039, %vm1564
        %v1566 = vld [vmem:[%s512] sm:$0x1]
        %v1567 = vsel %vm1565, %v1506, %v1566
        %1568 = vst [vmem:[%s512] sm:$0x1] %v1567
        %v1569 = vld [vmem:[%s512 + $0x2] sm:$0x1]
        %v1570 = vsel %vm1565, %v1513, %v1569
        %1571 = vst [vmem:[%s512 + $0x2] sm:$0x1] %v1570
        %v1572 = vld [vmem:[%s512 + $0x4] sm:$0x1]
        %v1573 = vsel %vm1565, %v1520, %v1572
        %1574 = vst [vmem:[%s512 + $0x4] sm:$0x1] %v1573
        %v1575 = vld [vmem:[%s512 + $0x6] sm:$0x1]
        %v1576 = vsel %vm1565, %v1527, %v1575
        %1577 = vst [vmem:[%s512 + $0x6] sm:$0x1] %v1576
        %v1578 = vld [vmem:[%s512 + $0x8] sm:$0x1]
        %v1579 = vsel %vm1565, %v1534, %v1578
        %1580 = vst [vmem:[%s512 + $0x8] sm:$0x1] %v1579
        %v1581 = vld [vmem:[%s512 + $0xa] sm:$0x1]
        %v1582 = vsel %vm1565, %v1541, %v1581
        %1583 = vst [vmem:[%s512 + $0xa] sm:$0x1] %v1582
        %v1584 = vld [vmem:[%s512 + $0xc] sm:$0x1]
        %v1585 = vsel %vm1565, %v1548, %v1584
        %1586 = vst [vmem:[%s512 + $0xc] sm:$0x1] %v1585
        %v1587 = vld [vmem:[%s512 + $0xe] sm:$0x1]
        %v1588 = vsel %vm1565, %v1555, %v1587
        %1589 = vst [vmem:[%s512 + $0xe] sm:$0x1] %v1588
        %v1590 = vadd.f32 %v1066, %v1323
        %v1591 = vld [vmem:[%s466] sm:$0x2]
        %v1592 = vld [vmem:[%s466 + $0x2] sm:$0x2]
        %v1593 = vld [vmem:[%s466 + $0x4] sm:$0x2]
        %v1594 = vld [vmem:[%s466 + $0x6] sm:$0x2]
        %v1595 = vld [vmem:[%s466 + $0x8] sm:$0x2]
        %v1596 = vld [vmem:[%s466 + $0xa] sm:$0x2]
        %v1597 = vld [vmem:[%s466 + $0xc] sm:$0x2]
        %v1598 = vld [vmem:[%s466 + $0xe] sm:$0x2]
        %v1599 = vld [vmem:[%s473] sm:$0x2]
        %v1600 = vld [vmem:[%s473 + $0x2] sm:$0x2]
        %v1601 = vld [vmem:[%s473 + $0x4] sm:$0x2]
        %v1602 = vld [vmem:[%s473 + $0x6] sm:$0x2]
        %v1603 = vld [vmem:[%s473 + $0x8] sm:$0x2]
        %v1604 = vld [vmem:[%s473 + $0xa] sm:$0x2]
        %v1605 = vld [vmem:[%s473 + $0xc] sm:$0x2]
        %v1606 = vld [vmem:[%s473 + $0xe] sm:$0x2]
        %v1607 = vld [vmem:[%s480] sm:$0x2]
        %v1608 = vld [vmem:[%s480 + $0x2] sm:$0x2]
        %v1609 = vld [vmem:[%s480 + $0x4] sm:$0x2]
        %v1610 = vld [vmem:[%s480 + $0x6] sm:$0x2]
        %v1611 = vld [vmem:[%s480 + $0x8] sm:$0x2]
        %v1612 = vld [vmem:[%s480 + $0xa] sm:$0x2]
        %v1613 = vld [vmem:[%s480 + $0xc] sm:$0x2]
        %v1614 = vld [vmem:[%s480 + $0xe] sm:$0x2]
        %v1624 = vunpack.c.l.s4 1983009808
        %v1625 = vunpack.c.0.s8 %v1624
        %v1626 = vlaneseq
        %v1627 = vshrl.u32 %v1626, 7
        %v1628 = vsub.s32 %v1625, %v1627
        %v1629 = vrot.slane %v1591, %v1628
        %v1631 = vunpack.c.l.s4 1983009808
        %v1632 = vunpack.c.0.s8 %v1631
        %v1633 = vlaneseq
        %v1634 = vshrl.u32 %v1633, 7
        %v1635 = vsub.s32 %v1632, %v1634
        %v1636 = vrot.slane %v1592, %v1635
        %v1638 = vunpack.c.l.s4 1983009808
        %v1639 = vunpack.c.0.s8 %v1638
        %v1640 = vlaneseq
        %v1641 = vshrl.u32 %v1640, 7
        %v1642 = vsub.s32 %v1639, %v1641
        %v1643 = vrot.slane %v1593, %v1642
        %v1645 = vunpack.c.l.s4 1983009808
        %v1646 = vunpack.c.0.s8 %v1645
        %v1647 = vlaneseq
        %v1648 = vshrl.u32 %v1647, 7
        %v1649 = vsub.s32 %v1646, %v1648
        %v1650 = vrot.slane %v1594, %v1649
        %v1652 = vunpack.c.l.s4 1983009808
        %v1653 = vunpack.c.0.s8 %v1652
        %v1654 = vlaneseq
        %v1655 = vshrl.u32 %v1654, 7
        %v1656 = vsub.s32 %v1653, %v1655
        %v1657 = vrot.slane %v1595, %v1656
        %v1659 = vunpack.c.l.s4 1983009808
        %v1660 = vunpack.c.0.s8 %v1659
        %v1661 = vlaneseq
        %v1662 = vshrl.u32 %v1661, 7
        %v1663 = vsub.s32 %v1660, %v1662
        %v1664 = vrot.slane %v1596, %v1663
        %v1666 = vunpack.c.l.s4 1983009808
        %v1667 = vunpack.c.0.s8 %v1666
        %v1668 = vlaneseq
        %v1669 = vshrl.u32 %v1668, 7
        %v1670 = vsub.s32 %v1667, %v1669
        %v1671 = vrot.slane %v1597, %v1670
        %v1673 = vunpack.c.l.s4 1983009808
        %v1674 = vunpack.c.0.s8 %v1673
        %v1675 = vlaneseq
        %v1676 = vshrl.u32 %v1675, 7
        %v1677 = vsub.s32 %v1674, %v1676
        %v1678 = vrot.slane %v1598, %v1677
        %v1679 = vunpack.c.l.b16 %v1629
        %v1680 = vunpack.c.l.b16 %v1636
        %v1681 = vunpack.c.l.b16 %v1643
        %v1682 = vunpack.c.l.b16 %v1650
        %v1683 = vunpack.c.l.b16 %v1657
        %v1684 = vunpack.c.l.b16 %v1664
        %v1685 = vunpack.c.l.b16 %v1671
        %v1686 = vunpack.c.l.b16 %v1678
        %v1687 = vrot.slane %v1679, 2
        %v1688 = vrot.slane %v1680, 1
        %v1689 = vsel %vm624, %v1688, %v1687
        %v1690 = vsel %vm627, %v1681, %v1689
        %v1691 = vrot.slane %v1682, 7
        %v1692 = vsel %vm630, %v1691, %v1690
        %v1693 = vrot.slane %v1683, 6
        %v1694 = vsel %vm633, %v1693, %v1692
        %v1695 = vrot.slane %v1684, 5
        %v1696 = vsel %vm636, %v1695, %v1694
        %v1697 = vrot.slane %v1685, 4
        %v1698 = vsel %vm639, %v1697, %v1696
        %v1699 = vrot.slane %v1686, 3
        %v1700 = vsel %vm642, %v1699, %v1698
        %v1701 = vpack.c.b16 %v1700, %v1700
        %v1711 = vunpack.c.l.s4 1983009808
        %v1712 = vunpack.c.0.s8 %v1711
        %v1713 = vlaneseq
        %v1714 = vshrl.u32 %v1713, 7
        %v1715 = vsub.s32 %v1712, %v1714
        %v1716 = vrot.slane %v1599, %v1715
        %v1718 = vunpack.c.l.s4 1983009808
        %v1719 = vunpack.c.0.s8 %v1718
        %v1720 = vlaneseq
        %v1721 = vshrl.u32 %v1720, 7
        %v1722 = vsub.s32 %v1719, %v1721
        %v1723 = vrot.slane %v1600, %v1722
        %v1725 = vunpack.c.l.s4 1983009808
        %v1726 = vunpack.c.0.s8 %v1725
        %v1727 = vlaneseq
        %v1728 = vshrl.u32 %v1727, 7
        %v1729 = vsub.s32 %v1726, %v1728
        %v1730 = vrot.slane %v1601, %v1729
        %v1732 = vunpack.c.l.s4 1983009808
        %v1733 = vunpack.c.0.s8 %v1732
        %v1734 = vlaneseq
        %v1735 = vshrl.u32 %v1734, 7
        %v1736 = vsub.s32 %v1733, %v1735
        %v1737 = vrot.slane %v1602, %v1736
        %v1739 = vunpack.c.l.s4 1983009808
        %v1740 = vunpack.c.0.s8 %v1739
        %v1741 = vlaneseq
        %v1742 = vshrl.u32 %v1741, 7
        %v1743 = vsub.s32 %v1740, %v1742
        %v1744 = vrot.slane %v1603, %v1743
        %v1746 = vunpack.c.l.s4 1983009808
        %v1747 = vunpack.c.0.s8 %v1746
        %v1748 = vlaneseq
        %v1749 = vshrl.u32 %v1748, 7
        %v1750 = vsub.s32 %v1747, %v1749
        %v1751 = vrot.slane %v1604, %v1750
        %v1753 = vunpack.c.l.s4 1983009808
        %v1754 = vunpack.c.0.s8 %v1753
        %v1755 = vlaneseq
        %v1756 = vshrl.u32 %v1755, 7
        %v1757 = vsub.s32 %v1754, %v1756
        %v1758 = vrot.slane %v1605, %v1757
        %v1760 = vunpack.c.l.s4 1983009808
        %v1761 = vunpack.c.0.s8 %v1760
        %v1762 = vlaneseq
        %v1763 = vshrl.u32 %v1762, 7
        %v1764 = vsub.s32 %v1761, %v1763
        %v1765 = vrot.slane %v1606, %v1764
        %v1766 = vunpack.c.l.b16 %v1716
        %v1767 = vunpack.c.l.b16 %v1723
        %v1768 = vunpack.c.l.b16 %v1730
        %v1769 = vunpack.c.l.b16 %v1737
        %v1770 = vunpack.c.l.b16 %v1744
        %v1771 = vunpack.c.l.b16 %v1751
        %v1772 = vunpack.c.l.b16 %v1758
        %v1773 = vunpack.c.l.b16 %v1765
        %v1774 = vrot.slane %v1766, 2
        %v1775 = vrot.slane %v1767, 1
        %v1776 = vsel %vm624, %v1775, %v1774
        %v1777 = vsel %vm627, %v1768, %v1776
        %v1778 = vrot.slane %v1769, 7
        %v1779 = vsel %vm630, %v1778, %v1777
        %v1780 = vrot.slane %v1770, 6
        %v1781 = vsel %vm633, %v1780, %v1779
        %v1782 = vrot.slane %v1771, 5
        %v1783 = vsel %vm636, %v1782, %v1781
        %v1784 = vrot.slane %v1772, 4
        %v1785 = vsel %vm639, %v1784, %v1783
        %v1786 = vrot.slane %v1773, 3
        %v1787 = vsel %vm642, %v1786, %v1785
        %v1788 = vpack.c.b16 %v1787, %v1787
        %v1790 = vsel %vm732, %v1701, 0
        %v1793 = vsel %vm732, %v1788, 0
        %1795 = vmatprep.subr.bf16.mxu0 0
        %1796 = vmatpush1.bf16.xpose.msra.mxu0 0
        %1797 = vmatprep.subr.bf16.mxu0 0
        %1798 = vmatpush1.bf16.xpose.msra.mxu0 0
        %1799 = vmatprep.subr.bf16.mxu0 0
        %1800 = vmatpush1.bf16.xpose.msra.mxu0 0
        %1801 = vmatprep.subr.bf16.mxu0 0
        %1802 = vmatpush1.bf16.xpose.msra.mxu0 0
        %1803 = vmatprep.subr.bf16.mxu0 0
        %1804 = vmatpush1.bf16.xpose.msra.mxu0 0
        %1805 = vmatprep.subr.bf16.mxu0 0
        %1806 = vmatpush1.bf16.xpose.msra.mxu0 0
        %1807 = vmatprep.subr.bf16.mxu0 0
        %1808 = vmatpush1.bf16.xpose.msra.mxu0 0
        %1809 = vmatprep.subr.bf16.mxu0 0
        %1810 = vmatpush1.bf16.xpose.msra.mxu0 %v1793
        %1811 = vmatprep.subr.bf16.mxu0 0
        %1812 = vmatpush2.bf16.xpose.msra.mxu0 0
        %1813 = vmatprep.subr.bf16.mxu0 0
        %1814 = vmatpush2.bf16.xpose.msra.mxu0 0
        %1815 = vmatprep.subr.bf16.mxu0 0
        %1816 = vmatpush2.bf16.xpose.msra.mxu0 0
        %1817 = vmatprep.subr.bf16.mxu0 0
        %1818 = vmatpush2.bf16.xpose.msra.mxu0 0
        %1819 = vmatprep.subr.bf16.mxu0 0
        %1820 = vmatpush2.bf16.xpose.msra.mxu0 0
        %1821 = vmatprep.subr.bf16.mxu0 0
        %1822 = vmatpush2.bf16.xpose.msra.mxu0 0
        %1823 = vmatprep.subr.bf16.mxu0 0
        %1824 = vmatpush2.bf16.xpose.msra.mxu0 0
        %1825 = vmatprep.subr.bf16.mxu0 0
        %1826 = vmatpush2.bf16.xpose.msra.mxu0 0
        %1827 = vmatprep.mubr.bf16.mxu0 0
        %1828 = vmatmul.mubr.bf16.gmra.mxu0 %v1790
        %v1829 = vpop.f32.mrf.mxu0
        %v1830 = vadd.f32 0.0, %v1829
        %v1831 = vpop.f32.mrf.mxu0
        %v1832 = vpop.f32.mrf.mxu0
        %v1833 = vpop.f32.mrf.mxu0
        %1834 = vdwg.mxu0
        %v1835 = vmul.f32 %v1830, 0.35355338
        %v1836 = vadd.f32 %v1835, %v784
        %v1837 = vsel %vm732, %v1836, -inf
        %1838 = vmax.xlane.f32.xlu0 %v1837
        %v1839 = vpop.xlane.xlu0 %1838
        %v1840 = vsub.f32 %v1836, %v1839
        %v1841 = vmul.f32 %v1840, 1.442695
        %v1842 = vpow.pop %v1841
        %v1843 = vsel %vm732, %v1842, 0.0
        %1844 = vadd.xlane.f32.xlu0 %v1843
        %v1845 = vpop.xlane.xlu0 %1844
        %v1846 = vrcp.pop %v1845
        %v1847 = vmul.f32 %v1842, %v1846
        %v1848 = vpack.c.bf16 %v1847, %v1847
        %v1858 = vunpack.c.l.s4 1983009808
        %v1859 = vunpack.c.0.s8 %v1858
        %v1860 = vlaneseq
        %v1861 = vshrl.u32 %v1860, 7
        %v1862 = vsub.s32 %v1859, %v1861
        %v1863 = vrot.slane %v1607, %v1862
        %v1865 = vunpack.c.l.s4 1983009808
        %v1866 = vunpack.c.0.s8 %v1865
        %v1867 = vlaneseq
        %v1868 = vshrl.u32 %v1867, 7
        %v1869 = vsub.s32 %v1866, %v1868
        %v1870 = vrot.slane %v1608, %v1869
        %v1872 = vunpack.c.l.s4 1983009808
        %v1873 = vunpack.c.0.s8 %v1872
        %v1874 = vlaneseq
        %v1875 = vshrl.u32 %v1874, 7
        %v1876 = vsub.s32 %v1873, %v1875
        %v1877 = vrot.slane %v1609, %v1876
        %v1879 = vunpack.c.l.s4 1983009808
        %v1880 = vunpack.c.0.s8 %v1879
        %v1881 = vlaneseq
        %v1882 = vshrl.u32 %v1881, 7
        %v1883 = vsub.s32 %v1880, %v1882
        %v1884 = vrot.slane %v1610, %v1883
        %v1886 = vunpack.c.l.s4 1983009808
        %v1887 = vunpack.c.0.s8 %v1886
        %v1888 = vlaneseq
        %v1889 = vshrl.u32 %v1888, 7
        %v1890 = vsub.s32 %v1887, %v1889
        %v1891 = vrot.slane %v1611, %v1890
        %v1893 = vunpack.c.l.s4 1983009808
        %v1894 = vunpack.c.0.s8 %v1893
        %v1895 = vlaneseq
        %v1896 = vshrl.u32 %v1895, 7
        %v1897 = vsub.s32 %v1894, %v1896
        %v1898 = vrot.slane %v1612, %v1897
        %v1900 = vunpack.c.l.s4 1983009808
        %v1901 = vunpack.c.0.s8 %v1900
        %v1902 = vlaneseq
        %v1903 = vshrl.u32 %v1902, 7
        %v1904 = vsub.s32 %v1901, %v1903
        %v1905 = vrot.slane %v1613, %v1904
        %v1907 = vunpack.c.l.s4 1983009808
        %v1908 = vunpack.c.0.s8 %v1907
        %v1909 = vlaneseq
        %v1910 = vshrl.u32 %v1909, 7
        %v1911 = vsub.s32 %v1908, %v1910
        %v1912 = vrot.slane %v1614, %v1911
        %v1913 = vunpack.c.l.b16 %v1863
        %v1914 = vunpack.c.l.b16 %v1870
        %v1915 = vunpack.c.l.b16 %v1877
        %v1916 = vunpack.c.l.b16 %v1884
        %v1917 = vunpack.c.l.b16 %v1891
        %v1918 = vunpack.c.l.b16 %v1898
        %v1919 = vunpack.c.l.b16 %v1905
        %v1920 = vunpack.c.l.b16 %v1912
        %v1921 = vrot.slane %v1913, 2
        %v1922 = vrot.slane %v1914, 1
        %v1923 = vsel %vm624, %v1922, %v1921
        %v1924 = vsel %vm627, %v1915, %v1923
        %v1925 = vrot.slane %v1916, 7
        %v1926 = vsel %vm630, %v1925, %v1924
        %v1927 = vrot.slane %v1917, 6
        %v1928 = vsel %vm633, %v1927, %v1926
        %v1929 = vrot.slane %v1918, 5
        %v1930 = vsel %vm636, %v1929, %v1928
        %v1931 = vrot.slane %v1919, 4
        %v1932 = vsel %vm639, %v1931, %v1930
        %v1933 = vrot.slane %v1920, 3
        %v1934 = vsel %vm642, %v1933, %v1932
        %v1935 = vpack.c.b16 %v1934, %v1934
        %v1937 = vsel %vm732, %v1848, 0
        %v1940 = vsel %vm889, %v1935, 0
        %1942 = vmatprep.subr.bf16.mxu0 0
        %1943 = vmatpush1.bf16.msra.mxu0 0
        %1944 = vmatprep.subr.bf16.mxu0 0
        %1945 = vmatpush1.bf16.msra.mxu0 0
        %1946 = vmatprep.subr.bf16.mxu0 0
        %1947 = vmatpush1.bf16.msra.mxu0 0
        %1948 = vmatprep.subr.bf16.mxu0 0
        %1949 = vmatpush1.bf16.msra.mxu0 0
        %1950 = vmatprep.subr.bf16.mxu0 0
        %1951 = vmatpush1.bf16.msra.mxu0 0
        %1952 = vmatprep.subr.bf16.mxu0 0
        %1953 = vmatpush1.bf16.msra.mxu0 0
        %1954 = vmatprep.subr.bf16.mxu0 0
        %1955 = vmatpush1.bf16.msra.mxu0 0
        %1956 = vmatprep.subr.bf16.mxu0 0
        %1957 = vmatpush1.bf16.msra.mxu0 %v1940
        %1958 = vmatprep.subr.bf16.mxu0 0
        %1959 = vmatpush2.bf16.msra.mxu0 0
        %1960 = vmatprep.subr.bf16.mxu0 0
        %1961 = vmatpush2.bf16.msra.mxu0 0
        %1962 = vmatprep.subr.bf16.mxu0 0
        %1963 = vmatpush2.bf16.msra.mxu0 0
        %1964 = vmatprep.subr.bf16.mxu0 0
        %1965 = vmatpush2.bf16.msra.mxu0 0
        %1966 = vmatprep.subr.bf16.mxu0 0
        %1967 = vmatpush2.bf16.msra.mxu0 0
        %1968 = vmatprep.subr.bf16.mxu0 0
        %1969 = vmatpush2.bf16.msra.mxu0 0
        %1970 = vmatprep.subr.bf16.mxu0 0
        %1971 = vmatpush2.bf16.msra.mxu0 0
        %1972 = vmatprep.subr.bf16.mxu0 0
        %1973 = vmatpush2.bf16.msra.mxu0 0
        %1974 = vmatprep.mubr.bf16.mxu0 0
        %1975 = vmatmul.mubr.bf16.gmra.mxu0 %v1937
        %v1976 = vpop.f32.mrf.mxu0
        %v1977 = vadd.f32 0.0, %v1976
        %v1978 = vpop.f32.mrf.mxu0
        %v1979 = vpop.f32.mrf.mxu0
        %v1980 = vpop.f32.mrf.mxu0
        %1981 = vdwg.mxu0
        %v1982 = vpack.c.bf16 %v1977, %v1977
        %v1985 = vunpack.c.l.s4 1966171168
        %v1986 = vunpack.c.0.s8 %v1985
        %v1987 = vlaneseq
        %v1988 = vshrl.u32 %v1987, 7
        %v1989 = vsub.s32 %v1986, %v1988
        %v1990 = vrot.slane %v1982, %v1989
        %v1991 = vcombine.high %v1990, %v1990
        %v1993 = vunpack.c.l.s4 1966171168
        %v1994 = vunpack.c.0.s8 %v1993
        %v1995 = vlaneseq
        %v1996 = vshrl.u32 %v1995, 7
        %v1997 = vsub.s32 %v1994, %v1996
        %v1998 = vrot.slane %v1990, %v1997
        %v2000 = vunpack.c.l.s4 1966171168
        %v2001 = vunpack.c.0.s8 %v2000
        %v2002 = vlaneseq
        %v2003 = vshrl.u32 %v2002, 7
        %v2004 = vsub.s32 %v2001, %v2003
        %v2005 = vrot.slane %v1991, %v2004
        %v2006 = vcombine.high %v1998, %v1998
        %v2007 = vcombine.high %v2005, %v2005
        %v2008 = vunpack.i.l.s16 %v1998
        %v2009 = vunpack.i.h.s16 %v1998
        %v2010 = vunpack.i.l.s16 %v2005
        %v2011 = vunpack.i.h.s16 %v2005
        %v2012 = vunpack.i.l.s16 %v2006
        %v2013 = vunpack.i.h.s16 %v2006
        %v2014 = vunpack.i.l.s16 %v2007
        %v2015 = vunpack.i.h.s16 %v2007
        %v2016 = vpack.i.b16 %v2008, %v2008
        %v2017 = vpack.i.b16 %v2009, %v2009
        %v2018 = vpack.i.b16 %v2010, %v2010
        %v2019 = vpack.i.b16 %v2011, %v2011
        %v2020 = vpack.i.b16 %v2012, %v2012
        %v2021 = vpack.i.b16 %v2013, %v2013
        %v2022 = vpack.i.b16 %v2014, %v2014
        %v2023 = vpack.i.b16 %v2015, %v2015
        %v2025 = vunpack.c.l.s4 857870592
        %v2026 = vunpack.c.0.s8 %v2025
        %v2027 = vlaneseq
        %v2028 = vshrl.u32 %v2027, 7
        %v2029 = vsub.s32 %v2026, %v2028
        %v2030 = vrot.slane %v2016, %v2029
        %v2032 = vunpack.c.l.s4 857870592
        %v2033 = vunpack.c.0.s8 %v2032
        %v2034 = vlaneseq
        %v2035 = vshrl.u32 %v2034, 7
        %v2036 = vsub.s32 %v2033, %v2035
        %v2037 = vrot.slane %v2017, %v2036
        %v2039 = vunpack.c.l.s4 857870592
        %v2040 = vunpack.c.0.s8 %v2039
        %v2041 = vlaneseq
        %v2042 = vshrl.u32 %v2041, 7
        %v2043 = vsub.s32 %v2040, %v2042
        %v2044 = vrot.slane %v2018, %v2043
        %v2046 = vunpack.c.l.s4 857870592
        %v2047 = vunpack.c.0.s8 %v2046
        %v2048 = vlaneseq
        %v2049 = vshrl.u32 %v2048, 7
        %v2050 = vsub.s32 %v2047, %v2049
        %v2051 = vrot.slane %v2019, %v2050
        %v2053 = vunpack.c.l.s4 857870592
        %v2054 = vunpack.c.0.s8 %v2053
        %v2055 = vlaneseq
        %v2056 = vshrl.u32 %v2055, 7
        %v2057 = vsub.s32 %v2054, %v2056
        %v2058 = vrot.slane %v2020, %v2057
        %v2060 = vunpack.c.l.s4 857870592
        %v2061 = vunpack.c.0.s8 %v2060
        %v2062 = vlaneseq
        %v2063 = vshrl.u32 %v2062, 7
        %v2064 = vsub.s32 %v2061, %v2063
        %v2065 = vrot.slane %v2021, %v2064
        %v2067 = vunpack.c.l.s4 857870592
        %v2068 = vunpack.c.0.s8 %v2067
        %v2069 = vlaneseq
        %v2070 = vshrl.u32 %v2069, 7
        %v2071 = vsub.s32 %v2068, %v2070
        %v2072 = vrot.slane %v2022, %v2071
        %v2074 = vunpack.c.l.s4 857870592
        %v2075 = vunpack.c.0.s8 %v2074
        %v2076 = vlaneseq
        %v2077 = vshrl.u32 %v2076, 7
        %v2078 = vsub.s32 %v2075, %v2077
        %v2079 = vrot.slane %v2023, %v2078
        %vm2088 = vcmask 58369
        %vm2089 = vsmask.f32 1280
        %vm2090 = vmand %vm2088, %vm2089
        %v2091 = vld [vmem:[%s512] sm:$0x2]
        %v2092 = vsel %vm2090, %v2030, %v2091
        %2093 = vst [vmem:[%s512] sm:$0x2] %v2092
        %v2094 = vld [vmem:[%s512 + $0x2] sm:$0x2]
        %v2095 = vsel %vm2090, %v2037, %v2094
        %2096 = vst [vmem:[%s512 + $0x2] sm:$0x2] %v2095
        %v2097 = vld [vmem:[%s512 + $0x4] sm:$0x2]
        %v2098 = vsel %vm2090, %v2044, %v2097
        %2099 = vst [vmem:[%s512 + $0x4] sm:$0x2] %v2098
        %v2100 = vld [vmem:[%s512 + $0x6] sm:$0x2]
        %v2101 = vsel %vm2090, %v2051, %v2100
        %2102 = vst [vmem:[%s512 + $0x6] sm:$0x2] %v2101
        %v2103 = vld [vmem:[%s512 + $0x8] sm:$0x2]
        %v2104 = vsel %vm2090, %v2058, %v2103
        %2105 = vst [vmem:[%s512 + $0x8] sm:$0x2] %v2104
        %v2106 = vld [vmem:[%s512 + $0xa] sm:$0x2]
        %v2107 = vsel %vm2090, %v2065, %v2106
        %2108 = vst [vmem:[%s512 + $0xa] sm:$0x2] %v2107
        %v2109 = vld [vmem:[%s512 + $0xc] sm:$0x2]
        %v2110 = vsel %vm2090, %v2072, %v2109
        %2111 = vst [vmem:[%s512 + $0xc] sm:$0x2] %v2110
        %v2112 = vld [vmem:[%s512 + $0xe] sm:$0x2]
        %v2113 = vsel %vm2090, %v2079, %v2112
        %2114 = vst [vmem:[%s512 + $0xe] sm:$0x2] %v2113
        %v2115 = vadd.f32 %v1590, %v1847
        %v2116 = vld [vmem:[%s466] sm:$0x2]
        %v2117 = vld [vmem:[%s466 + $0x2] sm:$0x2]
        %v2118 = vld [vmem:[%s466 + $0x4] sm:$0x2]
        %v2119 = vld [vmem:[%s466 + $0x6] sm:$0x2]
        %v2120 = vld [vmem:[%s466 + $0x8] sm:$0x2]
        %v2121 = vld [vmem:[%s466 + $0xa] sm:$0x2]
        %v2122 = vld [vmem:[%s466 + $0xc] sm:$0x2]
        %v2123 = vld [vmem:[%s466 + $0xe] sm:$0x2]
        %v2124 = vld [vmem:[%s473] sm:$0x2]
        %v2125 = vld [vmem:[%s473 + $0x2] sm:$0x2]
        %v2126 = vld [vmem:[%s473 + $0x4] sm:$0x2]
        %v2127 = vld [vmem:[%s473 + $0x6] sm:$0x2]
        %v2128 = vld [vmem:[%s473 + $0x8] sm:$0x2]
        %v2129 = vld [vmem:[%s473 + $0xa] sm:$0x2]
        %v2130 = vld [vmem:[%s473 + $0xc] sm:$0x2]
        %v2131 = vld [vmem:[%s473 + $0xe] sm:$0x2]
        %v2132 = vld [vmem:[%s480] sm:$0x2]
        %v2133 = vld [vmem:[%s480 + $0x2] sm:$0x2]
        %v2134 = vld [vmem:[%s480 + $0x4] sm:$0x2]
        %v2135 = vld [vmem:[%s480 + $0x6] sm:$0x2]
        %v2136 = vld [vmem:[%s480 + $0x8] sm:$0x2]
        %v2137 = vld [vmem:[%s480 + $0xa] sm:$0x2]
        %v2138 = vld [vmem:[%s480 + $0xc] sm:$0x2]
        %v2139 = vld [vmem:[%s480 + $0xe] sm:$0x2]
        %v2149 = vunpack.c.l.s4 1983009808
        %v2150 = vunpack.c.0.s8 %v2149
        %v2151 = vlaneseq
        %v2152 = vshrl.u32 %v2151, 7
        %v2153 = vsub.s32 %v2150, %v2152
        %v2154 = vrot.slane %v2116, %v2153
        %v2156 = vunpack.c.l.s4 1983009808
        %v2157 = vunpack.c.0.s8 %v2156
        %v2158 = vlaneseq
        %v2159 = vshrl.u32 %v2158, 7
        %v2160 = vsub.s32 %v2157, %v2159
        %v2161 = vrot.slane %v2117, %v2160
        %v2163 = vunpack.c.l.s4 1983009808
        %v2164 = vunpack.c.0.s8 %v2163
        %v2165 = vlaneseq
        %v2166 = vshrl.u32 %v2165, 7
        %v2167 = vsub.s32 %v2164, %v2166
        %v2168 = vrot.slane %v2118, %v2167
        %v2170 = vunpack.c.l.s4 1983009808
        %v2171 = vunpack.c.0.s8 %v2170
        %v2172 = vlaneseq
        %v2173 = vshrl.u32 %v2172, 7
        %v2174 = vsub.s32 %v2171, %v2173
        %v2175 = vrot.slane %v2119, %v2174
        %v2177 = vunpack.c.l.s4 1983009808
        %v2178 = vunpack.c.0.s8 %v2177
        %v2179 = vlaneseq
        %v2180 = vshrl.u32 %v2179, 7
        %v2181 = vsub.s32 %v2178, %v2180
        %v2182 = vrot.slane %v2120, %v2181
        %v2184 = vunpack.c.l.s4 1983009808
        %v2185 = vunpack.c.0.s8 %v2184
        %v2186 = vlaneseq
        %v2187 = vshrl.u32 %v2186, 7
        %v2188 = vsub.s32 %v2185, %v2187
        %v2189 = vrot.slane %v2121, %v2188
        %v2191 = vunpack.c.l.s4 1983009808
        %v2192 = vunpack.c.0.s8 %v2191
        %v2193 = vlaneseq
        %v2194 = vshrl.u32 %v2193, 7
        %v2195 = vsub.s32 %v2192, %v2194
        %v2196 = vrot.slane %v2122, %v2195
        %v2198 = vunpack.c.l.s4 1983009808
        %v2199 = vunpack.c.0.s8 %v2198
        %v2200 = vlaneseq
        %v2201 = vshrl.u32 %v2200, 7
        %v2202 = vsub.s32 %v2199, %v2201
        %v2203 = vrot.slane %v2123, %v2202
        %v2204 = vunpack.c.l.b16 %v2154
        %v2205 = vunpack.c.l.b16 %v2161
        %v2206 = vunpack.c.l.b16 %v2168
        %v2207 = vunpack.c.l.b16 %v2175
        %v2208 = vunpack.c.l.b16 %v2182
        %v2209 = vunpack.c.l.b16 %v2189
        %v2210 = vunpack.c.l.b16 %v2196
        %v2211 = vunpack.c.l.b16 %v2203
        %v2212 = vrot.slane %v2204, 3
        %v2213 = vrot.slane %v2205, 2
        %v2214 = vsel %vm624, %v2213, %v2212
        %v2215 = vrot.slane %v2206, 1
        %v2216 = vsel %vm627, %v2215, %v2214
        %v2217 = vsel %vm630, %v2207, %v2216
        %v2218 = vrot.slane %v2208, 7
        %v2219 = vsel %vm633, %v2218, %v2217
        %v2220 = vrot.slane %v2209, 6
        %v2221 = vsel %vm636, %v2220, %v2219
        %v2222 = vrot.slane %v2210, 5
        %v2223 = vsel %vm639, %v2222, %v2221
        %v2224 = vrot.slane %v2211, 4
        %v2225 = vsel %vm642, %v2224, %v2223
        %v2226 = vpack.c.b16 %v2225, %v2225
        %v2236 = vunpack.c.l.s4 1983009808
        %v2237 = vunpack.c.0.s8 %v2236
        %v2238 = vlaneseq
        %v2239 = vshrl.u32 %v2238, 7
        %v2240 = vsub.s32 %v2237, %v2239
        %v2241 = vrot.slane %v2124, %v2240
        %v2243 = vunpack.c.l.s4 1983009808
        %v2244 = vunpack.c.0.s8 %v2243
        %v2245 = vlaneseq
        %v2246 = vshrl.u32 %v2245, 7
        %v2247 = vsub.s32 %v2244, %v2246
        %v2248 = vrot.slane %v2125, %v2247
        %v2250 = vunpack.c.l.s4 1983009808
        %v2251 = vunpack.c.0.s8 %v2250
        %v2252 = vlaneseq
        %v2253 = vshrl.u32 %v2252, 7
        %v2254 = vsub.s32 %v2251, %v2253
        %v2255 = vrot.slane %v2126, %v2254
        %v2257 = vunpack.c.l.s4 1983009808
        %v2258 = vunpack.c.0.s8 %v2257
        %v2259 = vlaneseq
        %v2260 = vshrl.u32 %v2259, 7
        %v2261 = vsub.s32 %v2258, %v2260
        %v2262 = vrot.slane %v2127, %v2261
        %v2264 = vunpack.c.l.s4 1983009808
        %v2265 = vunpack.c.0.s8 %v2264
        %v2266 = vlaneseq
        %v2267 = vshrl.u32 %v2266, 7
        %v2268 = vsub.s32 %v2265, %v2267
        %v2269 = vrot.slane %v2128, %v2268
        %v2271 = vunpack.c.l.s4 1983009808
        %v2272 = vunpack.c.0.s8 %v2271
        %v2273 = vlaneseq
        %v2274 = vshrl.u32 %v2273, 7
        %v2275 = vsub.s32 %v2272, %v2274
        %v2276 = vrot.slane %v2129, %v2275
        %v2278 = vunpack.c.l.s4 1983009808
        %v2279 = vunpack.c.0.s8 %v2278
        %v2280 = vlaneseq
        %v2281 = vshrl.u32 %v2280, 7
        %v2282 = vsub.s32 %v2279, %v2281
        %v2283 = vrot.slane %v2130, %v2282
        %v2285 = vunpack.c.l.s4 1983009808
        %v2286 = vunpack.c.0.s8 %v2285
        %v2287 = vlaneseq
        %v2288 = vshrl.u32 %v2287, 7
        %v2289 = vsub.s32 %v2286, %v2288
        %v2290 = vrot.slane %v2131, %v2289
        %v2291 = vunpack.c.l.b16 %v2241
        %v2292 = vunpack.c.l.b16 %v2248
        %v2293 = vunpack.c.l.b16 %v2255
        %v2294 = vunpack.c.l.b16 %v2262
        %v2295 = vunpack.c.l.b16 %v2269
        %v2296 = vunpack.c.l.b16 %v2276
        %v2297 = vunpack.c.l.b16 %v2283
        %v2298 = vunpack.c.l.b16 %v2290
        %v2299 = vrot.slane %v2291, 3
        %v2300 = vrot.slane %v2292, 2
        %v2301 = vsel %vm624, %v2300, %v2299
        %v2302 = vrot.slane %v2293, 1
        %v2303 = vsel %vm627, %v2302, %v2301
        %v2304 = vsel %vm630, %v2294, %v2303
        %v2305 = vrot.slane %v2295, 7
        %v2306 = vsel %vm633, %v2305, %v2304
        %v2307 = vrot.slane %v2296, 6
        %v2308 = vsel %vm636, %v2307, %v2306
        %v2309 = vrot.slane %v2297, 5
        %v2310 = vsel %vm639, %v2309, %v2308
        %v2311 = vrot.slane %v2298, 4
        %v2312 = vsel %vm642, %v2311, %v2310
        %v2313 = vpack.c.b16 %v2312, %v2312
        %v2315 = vsel %vm732, %v2226, 0
        %v2318 = vsel %vm732, %v2313, 0
        %2320 = vmatprep.subr.bf16.mxu0 0
        %2321 = vmatpush1.bf16.xpose.msra.mxu0 0
        %2322 = vmatprep.subr.bf16.mxu0 0
        %2323 = vmatpush1.bf16.xpose.msra.mxu0 0
        %2324 = vmatprep.subr.bf16.mxu0 0
        %2325 = vmatpush1.bf16.xpose.msra.mxu0 0
        %2326 = vmatprep.subr.bf16.mxu0 0
        %2327 = vmatpush1.bf16.xpose.msra.mxu0 0
        %2328 = vmatprep.subr.bf16.mxu0 0
        %2329 = vmatpush1.bf16.xpose.msra.mxu0 0
        %2330 = vmatprep.subr.bf16.mxu0 0
        %2331 = vmatpush1.bf16.xpose.msra.mxu0 0
        %2332 = vmatprep.subr.bf16.mxu0 0
        %2333 = vmatpush1.bf16.xpose.msra.mxu0 0
        %2334 = vmatprep.subr.bf16.mxu0 0
        %2335 = vmatpush1.bf16.xpose.msra.mxu0 %v2318
        %2336 = vmatprep.subr.bf16.mxu0 0
        %2337 = vmatpush2.bf16.xpose.msra.mxu0 0
        %2338 = vmatprep.subr.bf16.mxu0 0
        %2339 = vmatpush2.bf16.xpose.msra.mxu0 0
        %2340 = vmatprep.subr.bf16.mxu0 0
        %2341 = vmatpush2.bf16.xpose.msra.mxu0 0
        %2342 = vmatprep.subr.bf16.mxu0 0
        %2343 = vmatpush2.bf16.xpose.msra.mxu0 0
        %2344 = vmatprep.subr.bf16.mxu0 0
        %2345 = vmatpush2.bf16.xpose.msra.mxu0 0
        %2346 = vmatprep.subr.bf16.mxu0 0
        %2347 = vmatpush2.bf16.xpose.msra.mxu0 0
        %2348 = vmatprep.subr.bf16.mxu0 0
        %2349 = vmatpush2.bf16.xpose.msra.mxu0 0
        %2350 = vmatprep.subr.bf16.mxu0 0
        %2351 = vmatpush2.bf16.xpose.msra.mxu0 0
        %2352 = vmatprep.mubr.bf16.mxu0 0
        %2353 = vmatmul.mubr.bf16.gmra.mxu0 %v2315
        %v2354 = vpop.f32.mrf.mxu0
        %v2355 = vadd.f32 0.0, %v2354
        %v2356 = vpop.f32.mrf.mxu0
        %v2357 = vpop.f32.mrf.mxu0
        %v2358 = vpop.f32.mrf.mxu0
        %2359 = vdwg.mxu0
        %v2360 = vmul.f32 %v2355, 0.35355338
        %v2361 = vadd.f32 %v2360, %v784
        %v2362 = vsel %vm732, %v2361, -inf
        %2363 = vmax.xlane.f32.xlu0 %v2362
        %v2364 = vpop.xlane.xlu0 %2363
        %v2365 = vsub.f32 %v2361, %v2364
        %v2366 = vmul.f32 %v2365, 1.442695
        %v2367 = vpow.pop %v2366
        %v2368 = vsel %vm732, %v2367, 0.0
        %2369 = vadd.xlane.f32.xlu0 %v2368
        %v2370 = vpop.xlane.xlu0 %2369
        %v2371 = vrcp.pop %v2370
        %v2372 = vmul.f32 %v2367, %v2371
        %v2373 = vpack.c.bf16 %v2372, %v2372
        %v2383 = vunpack.c.l.s4 1983009808
        %v2384 = vunpack.c.0.s8 %v2383
        %v2385 = vlaneseq
        %v2386 = vshrl.u32 %v2385, 7
        %v2387 = vsub.s32 %v2384, %v2386
        %v2388 = vrot.slane %v2132, %v2387
        %v2390 = vunpack.c.l.s4 1983009808
        %v2391 = vunpack.c.0.s8 %v2390
        %v2392 = vlaneseq
        %v2393 = vshrl.u32 %v2392, 7
        %v2394 = vsub.s32 %v2391, %v2393
        %v2395 = vrot.slane %v2133, %v2394
        %v2397 = vunpack.c.l.s4 1983009808
        %v2398 = vunpack.c.0.s8 %v2397
        %v2399 = vlaneseq
        %v2400 = vshrl.u32 %v2399, 7
        %v2401 = vsub.s32 %v2398, %v2400
        %v2402 = vrot.slane %v2134, %v2401
        %v2404 = vunpack.c.l.s4 1983009808
        %v2405 = vunpack.c.0.s8 %v2404
        %v2406 = vlaneseq
        %v2407 = vshrl.u32 %v2406, 7
        %v2408 = vsub.s32 %v2405, %v2407
        %v2409 = vrot.slane %v2135, %v2408
        %v2411 = vunpack.c.l.s4 1983009808
        %v2412 = vunpack.c.0.s8 %v2411
        %v2413 = vlaneseq
        %v2414 = vshrl.u32 %v2413, 7
        %v2415 = vsub.s32 %v2412, %v2414
        %v2416 = vrot.slane %v2136, %v2415
        %v2418 = vunpack.c.l.s4 1983009808
        %v2419 = vunpack.c.0.s8 %v2418
        %v2420 = vlaneseq
        %v2421 = vshrl.u32 %v2420, 7
        %v2422 = vsub.s32 %v2419, %v2421
        %v2423 = vrot.slane %v2137, %v2422
        %v2425 = vunpack.c.l.s4 1983009808
        %v2426 = vunpack.c.0.s8 %v2425
        %v2427 = vlaneseq
        %v2428 = vshrl.u32 %v2427, 7
        %v2429 = vsub.s32 %v2426, %v2428
        %v2430 = vrot.slane %v2138, %v2429
        %v2432 = vunpack.c.l.s4 1983009808
        %v2433 = vunpack.c.0.s8 %v2432
        %v2434 = vlaneseq
        %v2435 = vshrl.u32 %v2434, 7
        %v2436 = vsub.s32 %v2433, %v2435
        %v2437 = vrot.slane %v2139, %v2436
        %v2438 = vunpack.c.l.b16 %v2388
        %v2439 = vunpack.c.l.b16 %v2395
        %v2440 = vunpack.c.l.b16 %v2402
        %v2441 = vunpack.c.l.b16 %v2409
        %v2442 = vunpack.c.l.b16 %v2416
        %v2443 = vunpack.c.l.b16 %v2423
        %v2444 = vunpack.c.l.b16 %v2430
        %v2445 = vunpack.c.l.b16 %v2437
        %v2446 = vrot.slane %v2438, 3
        %v2447 = vrot.slane %v2439, 2
        %v2448 = vsel %vm624, %v2447, %v2446
        %v2449 = vrot.slane %v2440, 1
        %v2450 = vsel %vm627, %v2449, %v2448
        %v2451 = vsel %vm630, %v2441, %v2450
        %v2452 = vrot.slane %v2442, 7
        %v2453 = vsel %vm633, %v2452, %v2451
        %v2454 = vrot.slane %v2443, 6
        %v2455 = vsel %vm636, %v2454, %v2453
        %v2456 = vrot.slane %v2444, 5
        %v2457 = vsel %vm639, %v2456, %v2455
        %v2458 = vrot.slane %v2445, 4
        %v2459 = vsel %vm642, %v2458, %v2457
        %v2460 = vpack.c.b16 %v2459, %v2459
        %v2462 = vsel %vm732, %v2373, 0
        %v2465 = vsel %vm889, %v2460, 0
        %2467 = vmatprep.subr.bf16.mxu0 0
        %2468 = vmatpush1.bf16.msra.mxu0 0
        %2469 = vmatprep.subr.bf16.mxu0 0
        %2470 = vmatpush1.bf16.msra.mxu0 0
        %2471 = vmatprep.subr.bf16.mxu0 0
        %2472 = vmatpush1.bf16.msra.mxu0 0
        %2473 = vmatprep.subr.bf16.mxu0 0
        %2474 = vmatpush1.bf16.msra.mxu0 0
        %2475 = vmatprep.subr.bf16.mxu0 0
        %2476 = vmatpush1.bf16.msra.mxu0 0
        %2477 = vmatprep.subr.bf16.mxu0 0
        %2478 = vmatpush1.bf16.msra.mxu0 0
        %2479 = vmatprep.subr.bf16.mxu0 0
        %2480 = vmatpush1.bf16.msra.mxu0 0
        %2481 = vmatprep.subr.bf16.mxu0 0
        %2482 = vmatpush1.bf16.msra.mxu0 %v2465
        %2483 = vmatprep.subr.bf16.mxu0 0
        %2484 = vmatpush2.bf16.msra.mxu0 0
        %2485 = vmatprep.subr.bf16.mxu0 0
        %2486 = vmatpush2.bf16.msra.mxu0 0
        %2487 = vmatprep.subr.bf16.mxu0 0
        %2488 = vmatpush2.bf16.msra.mxu0 0
        %2489 = vmatprep.subr.bf16.mxu0 0
        %2490 = vmatpush2.bf16.msra.mxu0 0
        %2491 = vmatprep.subr.bf16.mxu0 0
        %2492 = vmatpush2.bf16.msra.mxu0 0
        %2493 = vmatprep.subr.bf16.mxu0 0
        %2494 = vmatpush2.bf16.msra.mxu0 0
        %2495 = vmatprep.subr.bf16.mxu0 0
        %2496 = vmatpush2.bf16.msra.mxu0 0
        %2497 = vmatprep.subr.bf16.mxu0 0
        %2498 = vmatpush2.bf16.msra.mxu0 0
        %2499 = vmatprep.mubr.bf16.mxu0 0
        %2500 = vmatmul.mubr.bf16.gmra.mxu0 %v2462
        %v2501 = vpop.f32.mrf.mxu0
        %v2502 = vadd.f32 0.0, %v2501
        %v2503 = vpop.f32.mrf.mxu0
        %v2504 = vpop.f32.mrf.mxu0
        %v2505 = vpop.f32.mrf.mxu0
        %2506 = vdwg.mxu0
        %v2507 = vpack.c.bf16 %v2502, %v2502
        %v2510 = vunpack.c.l.s4 1966171168
        %v2511 = vunpack.c.0.s8 %v2510
        %v2512 = vlaneseq
        %v2513 = vshrl.u32 %v2512, 7
        %v2514 = vsub.s32 %v2511, %v2513
        %v2515 = vrot.slane %v2507, %v2514
        %v2516 = vcombine.high %v2515, %v2515
        %v2518 = vunpack.c.l.s4 1966171168
        %v2519 = vunpack.c.0.s8 %v2518
        %v2520 = vlaneseq
        %v2521 = vshrl.u32 %v2520, 7
        %v2522 = vsub.s32 %v2519, %v2521
        %v2523 = vrot.slane %v2515, %v2522
        %v2525 = vunpack.c.l.s4 1966171168
        %v2526 = vunpack.c.0.s8 %v2525
        %v2527 = vlaneseq
        %v2528 = vshrl.u32 %v2527, 7
        %v2529 = vsub.s32 %v2526, %v2528
        %v2530 = vrot.slane %v2516, %v2529
        %v2531 = vcombine.high %v2523, %v2523
        %v2532 = vcombine.high %v2530, %v2530
        %v2533 = vunpack.i.l.s16 %v2523
        %v2534 = vunpack.i.h.s16 %v2523
        %v2535 = vunpack.i.l.s16 %v2530
        %v2536 = vunpack.i.h.s16 %v2530
        %v2537 = vunpack.i.l.s16 %v2531
        %v2538 = vunpack.i.h.s16 %v2531
        %v2539 = vunpack.i.l.s16 %v2532
        %v2540 = vunpack.i.h.s16 %v2532
        %v2541 = vpack.i.b16 %v2533, %v2533
        %v2542 = vpack.i.b16 %v2534, %v2534
        %v2543 = vpack.i.b16 %v2535, %v2535
        %v2544 = vpack.i.b16 %v2536, %v2536
        %v2545 = vpack.i.b16 %v2537, %v2537
        %v2546 = vpack.i.b16 %v2538, %v2538
        %v2547 = vpack.i.b16 %v2539, %v2539
        %v2548 = vpack.i.b16 %v2540, %v2540
        %v2550 = vunpack.c.l.s4 857870592
        %v2551 = vunpack.c.0.s8 %v2550
        %v2552 = vlaneseq
        %v2553 = vshrl.u32 %v2552, 7
        %v2554 = vsub.s32 %v2551, %v2553
        %v2555 = vrot.slane %v2541, %v2554
        %v2557 = vunpack.c.l.s4 857870592
        %v2558 = vunpack.c.0.s8 %v2557
        %v2559 = vlaneseq
        %v2560 = vshrl.u32 %v2559, 7
        %v2561 = vsub.s32 %v2558, %v2560
        %v2562 = vrot.slane %v2542, %v2561
        %v2564 = vunpack.c.l.s4 857870592
        %v2565 = vunpack.c.0.s8 %v2564
        %v2566 = vlaneseq
        %v2567 = vshrl.u32 %v2566, 7
        %v2568 = vsub.s32 %v2565, %v2567
        %v2569 = vrot.slane %v2543, %v2568
        %v2571 = vunpack.c.l.s4 857870592
        %v2572 = vunpack.c.0.s8 %v2571
        %v2573 = vlaneseq
        %v2574 = vshrl.u32 %v2573, 7
        %v2575 = vsub.s32 %v2572, %v2574
        %v2576 = vrot.slane %v2544, %v2575
        %v2578 = vunpack.c.l.s4 857870592
        %v2579 = vunpack.c.0.s8 %v2578
        %v2580 = vlaneseq
        %v2581 = vshrl.u32 %v2580, 7
        %v2582 = vsub.s32 %v2579, %v2581
        %v2583 = vrot.slane %v2545, %v2582
        %v2585 = vunpack.c.l.s4 857870592
        %v2586 = vunpack.c.0.s8 %v2585
        %v2587 = vlaneseq
        %v2588 = vshrl.u32 %v2587, 7
        %v2589 = vsub.s32 %v2586, %v2588
        %v2590 = vrot.slane %v2546, %v2589
        %v2592 = vunpack.c.l.s4 857870592
        %v2593 = vunpack.c.0.s8 %v2592
        %v2594 = vlaneseq
        %v2595 = vshrl.u32 %v2594, 7
        %v2596 = vsub.s32 %v2593, %v2595
        %v2597 = vrot.slane %v2547, %v2596
        %v2599 = vunpack.c.l.s4 857870592
        %v2600 = vunpack.c.0.s8 %v2599
        %v2601 = vlaneseq
        %v2602 = vshrl.u32 %v2601, 7
        %v2603 = vsub.s32 %v2600, %v2602
        %v2604 = vrot.slane %v2548, %v2603
        %vm2613 = vsmask.f32 7942
        %vm2614 = vmand %vm2088, %vm2613
        %v2615 = vld [vmem:[%s512] sm:$0x2]
        %v2616 = vsel %vm2614, %v2555, %v2615
        %2617 = vst [vmem:[%s512] sm:$0x2] %v2616
        %v2618 = vld [vmem:[%s512 + $0x2] sm:$0x2]
        %v2619 = vsel %vm2614, %v2562, %v2618
        %2620 = vst [vmem:[%s512 + $0x2] sm:$0x2] %v2619
        %v2621 = vld [vmem:[%s512 + $0x4] sm:$0x2]
        %v2622 = vsel %vm2614, %v2569, %v2621
        %2623 = vst [vmem:[%s512 + $0x4] sm:$0x2] %v2622
        %v2624 = vld [vmem:[%s512 + $0x6] sm:$0x2]
        %v2625 = vsel %vm2614, %v2576, %v2624
        %2626 = vst [vmem:[%s512 + $0x6] sm:$0x2] %v2625
        %v2627 = vld [vmem:[%s512 + $0x8] sm:$0x2]
        %v2628 = vsel %vm2614, %v2583, %v2627
        %2629 = vst [vmem:[%s512 + $0x8] sm:$0x2] %v2628
        %v2630 = vld [vmem:[%s512 + $0xa] sm:$0x2]
        %v2631 = vsel %vm2614, %v2590, %v2630
        %2632 = vst [vmem:[%s512 + $0xa] sm:$0x2] %v2631
        %v2633 = vld [vmem:[%s512 + $0xc] sm:$0x2]
        %v2634 = vsel %vm2614, %v2597, %v2633
        %2635 = vst [vmem:[%s512 + $0xc] sm:$0x2] %v2634
        %v2636 = vld [vmem:[%s512 + $0xe] sm:$0x2]
        %v2637 = vsel %vm2614, %v2604, %v2636
        %2638 = vst [vmem:[%s512 + $0xe] sm:$0x2] %v2637
        %v2639 = vadd.f32 %v2115, %v2372
        %v2640 = vmul.f32 %v2639, 0.25
        %2641 = vst.msk [vmem:[%s519] sm:$0xff] %vm732, %v2640
        %s2642 = sand.u32 %s148, 1
        %s2643 = sand.u32 %s148, 1
        %s2644 = smul.addr %s2643, 16
        %s2645 = scalar_lea.vmem [#allocation5], %s2644
        %s2646 = sand.u32 %s176, 1
        %s2647 = scalar_lea.sflag [#allocation7], %s2646
        %s2648 = sand.u32 %s176, 1
        %s2649 = smul.addr %s2648, 8
        %s2650 = scalar_lea.vmem [#allocation6], %s2649
        // Predicated region
        $region160: #{multi_head_attention_forward.4} parent=146 // pred_check
          %p2651 = pneg %p158
        $region161: #{multi_head_attention_forward.4} parent=146 // pred_check_branch
          %2653 = sbr.rel (%p2651) target = $region163
        $region162: #{multi_head_attention_forward.4} parent=146 // pred_region
          %s2654 = smul.u32 8, %s25
          %s2655 = smul.addr %s2654, 2
          %s2656 = sadd.s32 %s24, %s2655
          %s2657 = smul.addr %s2656, 2
          %s2658 = scalar_lea.vmem %s4, %s2657
          // Predicated region
          $region164: #{multi_head_attention_forward.4} parent=162 // pred_check
            _
          $region165: #{multi_head_attention_forward.4} parent=162 // pred_check_branch
            %2660 = sbr.rel (0) target = $region167
          $region166: #{multi_head_attention_forward.4} parent=162 // pred_region
            // Predicated region
            $region168: #{multi_head_attention_forward.4} parent=166 // pred_check
              _
            $region169: #{multi_head_attention_forward.4} parent=166 // pred_check_branch
              %2662 = sbr.rel target = $region171
            $region170: #{multi_head_attention_forward.4} parent=166 // pred_region
              // Predicated region
              $region183: #{multi_head_attention_forward.4} parent=170 // pred_check
                _
              $region184: #{multi_head_attention_forward.4} parent=170 // pred_check_branch
                %2692 = sbr.rel (0) target = $region186
              $region185: #{multi_head_attention_forward.4} parent=170 // pred_region
                loop: start=0, step=1, limit=1
                $region187: #{multi_head_attention_forward.4} parent=185 // loop_pre_header
                  _
                $region188: #{multi_head_attention_forward.4} parent=185 // loop_header
                  %s2694 = sphi 0, %s2698
                  %p2695 = scmp.ge.s32.totalorder %s2694, 1
                  %s2699 = sphi %s2645, %s2645
                  %s2700 = sphi %s2658, %s2658
                $region189: #{multi_head_attention_forward.4} parent=185 // loop_header_branch
                  %2697 = sbr.rel (%p2695) target = $region193
                $region190: #{multi_head_attention_forward.4} parent=185 // loop_body
                  _
                $region191: #{multi_head_attention_forward.4} parent=185 // loop_footer
                  %s2698 = sadd.s32 1, %s2694
                $region192: #{multi_head_attention_forward.4} parent=185 // loop_footer_branch
                  %2693 = sbr.rel target = $region188
                $region193: #{multi_head_attention_forward.4} parent=185 // loop_exit
                  _
                %s2702 = ssub.s32 4, 1
                loop: start=0, step=1, limit=1
                $region194: #{multi_head_attention_forward.4} parent=185 // loop_pre_header
                  _
                $region195: #{multi_head_attention_forward.4} parent=185 // loop_header
                  %s2704 = sphi 0, %s2708
                  %p2705 = scmp.ge.s32.totalorder %s2704, 1
                  %s2709 = sphi %s2645, %s2645
                  %s2710 = sphi %s2658, %s2658
                $region196: #{multi_head_attention_forward.4} parent=185 // loop_header_branch
                  %2707 = sbr.rel (%p2705) target = $region200
                $region197: #{multi_head_attention_forward.4} parent=185 // loop_body
                  %v2711 = vld [vmem:[%s2709] sm:%s2702]
                  %2712 = vst [vmem:[%s2710] sm:%s2702] %v2711
                  %v2713 = vld [vmem:[%s2709 + $0x2] sm:%s2702]
                  %2714 = vst [vmem:[%s2710 + $0x4] sm:%s2702] %v2713
                  %v2715 = vld [vmem:[%s2709 + $0x4] sm:%s2702]
                  %2716 = vst [vmem:[%s2710 + $0x8] sm:%s2702] %v2715
                  %v2717 = vld [vmem:[%s2709 + $0x6] sm:%s2702]
                  %2718 = vst [vmem:[%s2710 + $0xc] sm:%s2702] %v2717
                  %v2719 = vld [vmem:[%s2709 + $0x8] sm:%s2702]
                  %2720 = vst [vmem:[%s2710 + $0x10] sm:%s2702] %v2719
                  %v2721 = vld [vmem:[%s2709 + $0xa] sm:%s2702]
                  %2722 = vst [vmem:[%s2710 + $0x14] sm:%s2702] %v2721
                  %v2723 = vld [vmem:[%s2709 + $0xc] sm:%s2702]
                  %2724 = vst [vmem:[%s2710 + $0x18] sm:%s2702] %v2723
                  %v2725 = vld [vmem:[%s2709 + $0xe] sm:%s2702]
                  %2726 = vst [vmem:[%s2710 + $0x1c] sm:%s2702] %v2725
                $region198: #{multi_head_attention_forward.4} parent=185 // loop_footer
                  %s2708 = sadd.s32 1, %s2704
                $region199: #{multi_head_attention_forward.4} parent=185 // loop_footer_branch
                  %2703 = sbr.rel target = $region195
                $region200: #{multi_head_attention_forward.4} parent=185 // loop_exit
                  _
              $region186: #{multi_head_attention_forward.4} parent=170 // pred_fallthru
                _
            $region171: #{multi_head_attention_forward.4} parent=166 // pred_fallthru
              _
            // Predicated region
            $region172: #{multi_head_attention_forward.4} parent=166 // pred_check
              _
            $region173: #{multi_head_attention_forward.4} parent=166 // pred_check_branch
              %2664 = sbr.rel (0) target = $region175
            $region174: #{multi_head_attention_forward.4} parent=166 // pred_region
              %s2666 = ssub.s32 4, 1
              loop: start=0, step=1, limit=1
              $region176: #{multi_head_attention_forward.4} parent=174 // loop_pre_header
                _
              $region177: #{multi_head_attention_forward.4} parent=174 // loop_header
                %s2668 = sphi 0, %s2672
                %p2669 = scmp.ge.s32.totalorder %s2668, 1
                %s2673 = sphi %s2645, %s2645
                %s2674 = sphi %s2658, %s2658
              $region178: #{multi_head_attention_forward.4} parent=174 // loop_header_branch
                %2671 = sbr.rel (%p2669) target = $region182
              $region179: #{multi_head_attention_forward.4} parent=174 // loop_body
                %v2675 = vld [vmem:[%s2673] sm:%s2666]
                %2676 = vst [vmem:[%s2674] sm:%s2666] %v2675
                %v2677 = vld [vmem:[%s2673 + $0x2] sm:%s2666]
                %2678 = vst [vmem:[%s2674 + $0x4] sm:%s2666] %v2677
                %v2679 = vld [vmem:[%s2673 + $0x4] sm:%s2666]
                %2680 = vst [vmem:[%s2674 + $0x8] sm:%s2666] %v2679
                %v2681 = vld [vmem:[%s2673 + $0x6] sm:%s2666]
                %2682 = vst [vmem:[%s2674 + $0xc] sm:%s2666] %v2681
                %v2683 = vld [vmem:[%s2673 + $0x8] sm:%s2666]
                %2684 = vst [vmem:[%s2674 + $0x10] sm:%s2666] %v2683
                %v2685 = vld [vmem:[%s2673 + $0xa] sm:%s2666]
                %2686 = vst [vmem:[%s2674 + $0x14] sm:%s2666] %v2685
                %v2687 = vld [vmem:[%s2673 + $0xc] sm:%s2666]
                %2688 = vst [vmem:[%s2674 + $0x18] sm:%s2666] %v2687
                %v2689 = vld [vmem:[%s2673 + $0xe] sm:%s2666]
                %2690 = vst [vmem:[%s2674 + $0x1c] sm:%s2666] %v2689
              $region180: #{multi_head_attention_forward.4} parent=174 // loop_footer
                %s2672 = sadd.s32 1, %s2668
              $region181: #{multi_head_attention_forward.4} parent=174 // loop_footer_branch
                %2667 = sbr.rel target = $region177
              $region182: #{multi_head_attention_forward.4} parent=174 // loop_exit
                _
            $region175: #{multi_head_attention_forward.4} parent=166 // pred_fallthru
              _
          $region167: #{multi_head_attention_forward.4} parent=162 // pred_fallthru
            _
          %2727 = vnop
        $region163: #{multi_head_attention_forward.4} parent=146 // pred_fallthru
          _
        // Predicated region
        $region201: #{multi_head_attention_forward.4} parent=146 // pred_check
          %p2728 = pneg %p186
        $region202: #{multi_head_attention_forward.4} parent=146 // pred_check_branch
          %2730 = sbr.rel (%p2728) target = $region204
        $region203: #{multi_head_attention_forward.4} parent=146 // pred_region
          %s2732 = ssub.s32 128, 128
          %2733 = vsyncadd %s2647, %s2732
          %s2734 = sadd.s32 %s25, %s24
          %s2735 = smul.addr %s2734, 128
          %s2736 = scalar_lea.hbm %s5, %s2735
          %s2738 = sshll.u32 %s2650, 4
          %s2739 = int_to_ptr.vmem [resolvable:$true] %s2738
          %2741 = dma.vmem_to_hbm [thread:$0]  %s2739, 128, %s2736, %s2647
        $region204: #{multi_head_attention_forward.4} parent=146 // pred_fallthru
          _
      $region147: #{multi_head_attention_forward.4} parent=5 // pred_fallthru
        _
      %p2742 = scmp.le.s32.totalorder 2, %s15
      // Predicated region
      $region205: #{multi_head_attention_forward.4} parent=5 // pred_check
        %p2743 = pneg %p2742
      $region206: #{multi_head_attention_forward.4} parent=5 // pred_check_branch
        %2745 = sbr.rel (%p2743) target = $region208
      $region207: #{multi_head_attention_forward.4} parent=5 // pred_region
        %s2746 = ssub.s32 %s15, 2
        // Predicated region
        $region209: #{multi_head_attention_forward.4} parent=207 // pred_check
          %p2747 = pneg %p164
        $region210: #{multi_head_attention_forward.4} parent=207 // pred_check_branch
          %2749 = sbr.rel (%p2747) target = $region212
        $region211: #{multi_head_attention_forward.4} parent=207 // pred_region
          %s2750 = sand.u32 %s149, 1
          %s2751 = sand.u32 %s149, 1
          %s2752 = smul.addr %s2751, 16
          %s2753 = scalar_lea.vmem [#allocation5], %s2752
        $region212: #{multi_head_attention_forward.4} parent=207 // pred_fallthru
          _
        // Predicated region
        $region213: #{multi_head_attention_forward.4} parent=207 // pred_check
          %p2754 = pneg %p192
        $region214: #{multi_head_attention_forward.4} parent=207 // pred_check_branch
          %2756 = sbr.rel (%p2754) target = $region216
        $region215: #{multi_head_attention_forward.4} parent=207 // pred_region
          %s2757 = sand.u32 %s177, 1
          %s2758 = scalar_lea.sflag [#allocation7], %s2757
          %s2759 = sand.u32 %s177, 1
          %s2760 = smul.addr %s2759, 8
          %s2761 = scalar_lea.vmem [#allocation6], %s2760
          %2762 = dma.done %s2758, 128
        $region216: #{multi_head_attention_forward.4} parent=207 // pred_fallthru
          _
      $region208: #{multi_head_attention_forward.4} parent=5 // pred_fallthru
        _
    $region6: #{multi_head_attention_forward.4} parent=1 // loop_footer
      %s19 = sadd.s32 1, %s15
    $region7: #{multi_head_attention_forward.4} parent=1 // loop_footer_branch
      %14 = sbr.rel target = $region3
    $region8: #{multi_head_attention_forward.4} parent=1 // loop_exit
      _
    %2763 = vsyncpa [#allocation7], 1
    %s2764 = scalar_lea.sflag [#allocation7], 1
    %2765 = vsyncpa %s2764, 1

</llo_original>
